<compile_context>
chip_gen: v5e
topology: v5e:2x2
jax: 0.10.0
libtpu: 0.0.40
codegen_flags: <defaults>
</compile_context>

<pallas_src>
import functools
import math

import jax
import jax.numpy as jnp
from jax.experimental import pallas as pl
from jax.experimental.pallas import tpu as pltpu

CLASS_PAD = 128  # lane-dense classifier output width

_WEIGHT_KEYS = (
    'w_qkv', 'b_qkv', 'wo', 'bo',                              # stacked MHAs
    'lin1_w', 'lin1_b', 'lin2_w', 'lin2_b',                    # stacked FFNs
    'n1_g', 'n1_b', 'n2_g', 'n2_b',                            # stacked LayerNorms
    'fc1_w', 'fc1_b', 'fc2_w', 'fc2_b',                        # classifier head
)


# ----------------------------------------------------------------------------
# Fused forward kernel: one grid step == full forward for `bb` batch elements.
# ----------------------------------------------------------------------------

def _fused_forward_kernel(
        x_ref,
        w_qkv_ref, b_qkv_ref, wo_ref, bo_ref,
        lin1_w_ref, lin1_b_ref, lin2_w_ref, lin2_b_ref,
        n1_g_ref, n1_b_ref, n2_g_ref, n2_b_ref,
        fc1_w_ref, fc1_b_ref, fc2_w_ref, fc2_b_ref,
        out_ref, *, seq, num_heads):
    f32 = jnp.float32
    bf16 = jnp.bfloat16
    E = x_ref.shape[-1]
    Dh = E // num_heads
    num_layers = lin1_w_ref.shape[0]
    n_tok = x_ref.shape[0]                      # bb * seq (folded batch tokens)
    bb = n_tok // seq

    def mha(x, m):
        """nn.MultiheadAttention(x, x, x) for stacked-MHA index m.  x: (n_tok, E)."""
        # Fused QKV projection: one MXU push for all heads and q/k/v.
        # (1/sqrt(Dh) is already folded into the Q columns at pack time.)
        qkv = jnp.dot(x.astype(bf16), w_qkv_ref[m],
                      preferred_element_type=f32) + b_qkv_ref[m]     # (n_tok, 3E)
        outs = []
        for bi in range(bb):                    # attention never mixes batch rows
            r0 = bi * seq
            head_outs = []
            for h in range(num_heads):
                q = qkv[r0:r0 + seq, h * Dh:(h + 1) * Dh].astype(bf16)
                k = qkv[r0:r0 + seq, E + h * Dh:E + (h + 1) * Dh].astype(bf16)
                v = qkv[r0:r0 + seq, 2 * E + h * Dh:2 * E + (h + 1) * Dh].astype(bf16)
                s = jax.lax.dot_general(q, k, (((1,), (1,)), ((), ())),
                                        preferred_element_type=f32)   # (S, S)
                s = s - jnp.max(s, axis=-1, keepdims=True)
                p = jnp.exp(s)
                inv_l = pl.reciprocal(jnp.sum(p, axis=-1, keepdims=True),
                                      approx=False)
                o = jnp.dot(p.astype(bf16), v,
                            preferred_element_type=f32) * inv_l        # (S, Dh)
                head_outs.append(o)
            outs.append(jnp.concatenate(head_outs, axis=1))            # (S, E)
        o_all = outs[0] if bb == 1 else jnp.concatenate(outs, axis=0)  # (n_tok, E)
        # Fused output projection: one (n_tok,E)@(E,E) push.
        return jnp.dot(o_all.astype(bf16), wo_ref[m],
                       preferred_element_type=f32) + bo_ref[m]

    def layer_norm(x, g, b):
        mu = jnp.mean(x, axis=-1, keepdims=True)
        xc = x - mu
        var = jnp.mean(xc * xc, axis=-1, keepdims=True)
        return xc * jax.lax.rsqrt(var + 1e-5) * g + b

    x = x_ref[...].astype(f32)                                  # (n_tok, E)

    # standalone nn.MultiheadAttention (stacked-MHA slot 0)
    x = mha(x, 0)

    # nn.TransformerEncoder: post-norm layers, ReLU FFN (dropout = identity, eval)
    for l in range(num_layers):
        a = mha(x, l + 1)
        x = layer_norm(x + a, n1_g_ref[l], n1_b_ref[l])
        h = jnp.dot(x.astype(bf16), lin1_w_ref[l],
                    preferred_element_type=f32) + lin1_b_ref[l]
        h = jnp.maximum(h, 0.0)
        ff = jnp.dot(h.astype(bf16), lin2_w_ref[l],
                     preferred_element_type=f32) + lin2_b_ref[l]
        x = layer_norm(x + ff, n2_g_ref[l], n2_b_ref[l])

    # classifier head on the last sequence position of each batch element
    rows = [x[bi * seq + seq - 1: bi * seq + seq, :] for bi in range(bb)]
    last = rows[0] if bb == 1 else jnp.concatenate(rows, axis=0)   # (bb, E)
    h = jnp.dot(last.astype(bf16), fc1_w_ref[...],
                preferred_element_type=f32) + fc1_b_ref[...]
    h = jnp.maximum(h, 0.0)
    logits = jnp.dot(h.astype(bf16), fc2_w_ref[...],
                     preferred_element_type=f32) + fc2_b_ref[...]   # (bb, CLASS_PAD)
    out_ref[...] = logits.reshape(out_ref.shape)


def _default_batch_block(batch):
    """Chip-aware default: fold the batch on single-TC chips (v5e/v6e), keep a
    2-way parallel batch axis on v7x (2 TensorCores per chip)."""
    try:
        kind = jax.devices()[0].device_kind.lower()
    except Exception:  # pragma: no cover
        kind = ""
    if ("v7" in kind or "tpu7" in kind) and batch % 2 == 0 and batch > 1:
        return batch // 2
    return batch


def transformer_forward(x, packed, *, num_heads, num_classes, batch_block=None):
    """Fused forward. x: (batch, seq, embed) -> (batch, num_classes)."""
    B, S, E = x.shape
    bb = _default_batch_block(B) if batch_block is None else batch_block
    assert B % bb == 0
    c_pad = packed['fc2_w'].shape[1]
    weights = [packed[k] for k in _WEIGHT_KEYS]

    # Host-side (B*S, E) token matrix: sublane-dense projections in the kernel,
    # no in-kernel reshape needed.
    x2d = x.reshape(B * S, E).astype(jnp.float32)

    def whole(arr):
        zeros = (0,) * arr.ndim
        return pl.BlockSpec(arr.shape, lambda b, _z=zeros: _z)

    kernel = functools.partial(_fused_forward_kernel, seq=S, num_heads=num_heads)

    out = pl.pallas_call(
        kernel,
        out_shape=jax.ShapeDtypeStruct((B, 1, c_pad), jnp.float32),
        grid=(B // bb,),
        in_specs=[pl.BlockSpec((bb * S, E), lambda b: (b, 0))]
                 + [whole(w) for w in weights],
        out_specs=pl.BlockSpec((bb, 1, c_pad), lambda b: (b, 0, 0)),
        compiler_params=pltpu.CompilerParams(
            dimension_semantics=("parallel",)),      # 2 TCs on v7x when bb < B
    )(x2d, *weights)
    return out.reshape(B, c_pad)[:, :num_classes]


# ----------------------------------------------------------------------------
# Parameter init ("math" layout: w is (in, out), i.e. PyTorch weight.T) and
# host-side packing into the kernel layout (fused QKV, bf16 matmul weights,
# folded attention scale, lane-dense classifier).
# ----------------------------------------------------------------------------

def init_params(key, embed, num_heads, hidden, num_classes, num_layers):
    keys = iter(jax.random.split(key, 64))

    def nrm(shape, scale=0.1):
        return scale * jax.random.normal(next(keys), shape, jnp.float32)

    def mha_params():
        return dict(in_w=nrm((embed, 3 * embed)), in_b=nrm((3 * embed,)),
                    out_w=nrm((embed, embed)), out_b=nrm((embed,)))

    params = {'attn': mha_params(), 'layers': []}
    for _ in range(num_layers):
        lp = mha_params()
        lp.update(
            lin1_w=nrm((embed, hidden)), lin1_b=nrm((hidden,)),
            lin2_w=nrm((hidden, embed)), lin2_b=nrm((embed,)),
            n1_g=jnp.ones((embed,), jnp.float32), n1_b=jnp.zeros((embed,), jnp.float32),
            n2_g=jnp.ones((embed,), jnp.float32), n2_b=jnp.zeros((embed,), jnp.float32))
        params['layers'].append(lp)

    params.update(fc1_w=nrm((embed, hidden)), fc1_b=nrm((hidden,)),
                  fc2_w=nrm((hidden, num_classes)), fc2_b=nrm((num_classes,)))
    return params


def pack_params(params, *, embed_dim, num_heads, num_layers, num_classes,
                class_pad=CLASS_PAD):
    E, H = embed_dim, num_heads
    Dh = E // H
    q_scale = 1.0 / math.sqrt(Dh)
    bf16 = jnp.bfloat16

    def mha_pack(p):
        in_w, in_b = p['in_w'], p['in_b']
        # fused QKV weight/bias, attention scale folded into the Q columns
        w_qkv = jnp.concatenate(
            [in_w[:, 0:E] * q_scale, in_w[:, E:2 * E], in_w[:, 2 * E:3 * E]], axis=1)
        b_qkv = jnp.concatenate(
            [in_b[0:E] * q_scale, in_b[E:2 * E], in_b[2 * E:3 * E]]).reshape(1, 3 * E)
        return (w_qkv.astype(bf16), b_qkv,
                p['out_w'].astype(bf16), p['out_b'].reshape(1, E))

    mhas = [mha_pack(params['attn'])] + [mha_pack(lp) for lp in params['layers']]
    stk = lambda i: jnp.stack([m[i] for m in mhas])                # (1+L, ...)

    layers = params['layers']
    pad_c = class_pad - num_classes
    return dict(
        w_qkv=stk(0), b_qkv=stk(1), wo=stk(2), bo=stk(3),
        lin1_w=jnp.stack([lp['lin1_w'] for lp in layers]).astype(bf16),
        lin1_b=jnp.stack([lp['lin1_b'].reshape(1, -1) for lp in layers]),
        lin2_w=jnp.stack([lp['lin2_w'] for lp in layers]).astype(bf16),
        lin2_b=jnp.stack([lp['lin2_b'].reshape(1, -1) for lp in layers]),
        n1_g=jnp.stack([lp['n1_g'].reshape(1, -1) for lp in layers]),
        n1_b=jnp.stack([lp['n1_b'].reshape(1, -1) for lp in layers]),
        n2_g=jnp.stack([lp['n2_g'].reshape(1, -1) for lp in layers]),
        n2_b=jnp.stack([lp['n2_b'].reshape(1, -1) for lp in layers]),
        fc1_w=params['fc1_w'].astype(bf16),
        fc1_b=params['fc1_b'].reshape(1, -1),
        fc2_w=jnp.pad(params['fc2_w'], ((0, 0), (0, pad_c))).astype(bf16),  # lane-dense
        fc2_b=jnp.pad(params['fc2_b'], (0, pad_c)).reshape(1, -1),
    )


# ----------------------------------------------------------------------------
# Pure-JAX f32 reference (mirrors PyTorch eval-mode semantics) for validation.
# ----------------------------------------------------------------------------

def reference_forward(x, params, num_heads):
    x = jnp.transpose(x, (1, 0, 2)).astype(jnp.float32)        # (S, B, E)

    def mha(x, p):
        S, B, E = x.shape
        H, Dh = num_heads, E // num_heads
        qkv = x.reshape(S * B, E) @ p['in_w'] + p['in_b']
        q, k, v = jnp.split(qkv, 3, axis=-1)
        heads = lambda t: t.reshape(S, B, H, Dh).transpose(1, 2, 0, 3)  # (B,H,S,Dh)
        qh, kh, vh = map(heads, (q, k, v))
        s = jnp.einsum('bhqd,bhkd->bhqk', qh, kh) / math.sqrt(Dh)
        pr = jax.nn.softmax(s, axis=-1)
        o = jnp.einsum('bhqk,bhkd->bhqd', pr, vh)
        o = o.transpose(2, 0, 1, 3).reshape(S * B, E)
        return (o @ p['out_w'] + p['out_b']).reshape(S, B, E)

    def ln(t, g, b):
        m = t.mean(-1, keepdims=True)
        v = ((t - m) ** 2).mean(-1, keepdims=True)
        return (t - m) * jax.lax.rsqrt(v + 1e-5) * g + b

    x = mha(x, params['attn'])
    for lp in params['layers']:
        a = mha(x, lp)
        x = ln(x + a, lp['n1_g'], lp['n1_b'])
        h = jnp.maximum(x @ lp['lin1_w'] + lp['lin1_b'], 0.0)
        ff = h @ lp['lin2_w'] + lp['lin2_b']
        x = ln(x + ff, lp['n2_g'], lp['n2_b'])
    last = x[-1]                                               # (B, E)
    h = jnp.maximum(last @ params['fc1_w'] + params['fc1_b'], 0.0)
    return h @ params['fc2_w'] + params['fc2_b']               # (B, C)


# ----------------------------------------------------------------------------

if __name__ == "__main__":
    BATCH, SEQ = 2, 8
    INPUT_SIZE, HIDDEN_SIZE = 32, 64
    NUM_CLASSES, NUM_HEADS, NUM_LAYERS = 10, 4, 2

    key = jax.random.PRNGKey(0)
    kx, kp = jax.random.split(key)
    x = jax.random.normal(kx, (BATCH, SEQ, INPUT_SIZE), jnp.float32)
    params = init_params(kp, INPUT_SIZE, NUM_HEADS, HIDDEN_SIZE,
                         NUM_CLASSES, NUM_LAYERS)
    packed = pack_params(params, embed_dim=INPUT_SIZE, num_heads=NUM_HEADS,
                         num_layers=NUM_LAYERS, num_classes=NUM_CLASSES)

    fwd = jax.jit(functools.partial(transformer_forward,
                                    num_heads=NUM_HEADS, num_classes=NUM_CLASSES))
    out = jax.block_until_ready(fwd(x, packed))

    assert out.shape == (BATCH, NUM_CLASSES), out.shape
    assert bool(jnp.all(jnp.isfinite(out)))

    # bf16 MXU operands (f32 accumulation) put the kernel ~1e-2 off the pure
    # f32 reference; 3e-2 gives margin while still catching structural bugs.
    ref = reference_forward(x, params, NUM_HEADS)
    max_err = float(jnp.max(jnp.abs(out - ref)))
    assert max_err < 3e-2, f"max abs diff vs reference: {max_err}"

    print("KERNEL_OK")
</pallas_src>

<mosaic_0001>
module attributes {stable_mosaic.version = 11 : i64} {
  func.func @_fused_forward_kernel(%arg0: i32, %arg1: memref<16x32xf32, #tpu.memory_space<vmem>>, %arg2: memref<3x32x96xbf16, #tpu.memory_space<vmem>>, %arg3: memref<3x1x96xf32, #tpu.memory_space<vmem>>, %arg4: memref<3x32x32xbf16, #tpu.memory_space<vmem>>, %arg5: memref<3x1x32xf32, #tpu.memory_space<vmem>>, %arg6: memref<2x32x64xbf16, #tpu.memory_space<vmem>>, %arg7: memref<2x1x64xf32, #tpu.memory_space<vmem>>, %arg8: memref<2x64x32xbf16, #tpu.memory_space<vmem>>, %arg9: memref<2x1x32xf32, #tpu.memory_space<vmem>>, %arg10: memref<2x1x32xf32, #tpu.memory_space<vmem>>, %arg11: memref<2x1x32xf32, #tpu.memory_space<vmem>>, %arg12: memref<2x1x32xf32, #tpu.memory_space<vmem>>, %arg13: memref<2x1x32xf32, #tpu.memory_space<vmem>>, %arg14: memref<32x64xbf16, #tpu.memory_space<vmem>>, %arg15: memref<1x64xf32, #tpu.memory_space<vmem>>, %arg16: memref<64x128xbf16, #tpu.memory_space<vmem>>, %arg17: memref<1x128xf32, #tpu.memory_space<vmem>>, %arg18: memref<2x1x128xf32, #tpu.memory_space<vmem>>) attributes {dimension_semantics = [#tpu.dimension_semantics<parallel>], iteration_bounds = array<i64: 1>, scalar_prefetch = 0 : i64, scratch_operands = 0 : i64, tpu.core_type = #tpu.core_type<tc>, window_params = [{transform_indices = @transform_0, window_bounds = array<i64: 16, 32>}, {pipeline_mode = #tpu.pipeline_mode<synchronous>, transform_indices = @transform_1, window_bounds = array<i64: 3, 32, 96>}, {pipeline_mode = #tpu.pipeline_mode<synchronous>, transform_indices = @transform_2, window_bounds = array<i64: 3, 1, 96>}, {pipeline_mode = #tpu.pipeline_mode<synchronous>, transform_indices = @transform_3, window_bounds = array<i64: 3, 32, 32>}, {pipeline_mode = #tpu.pipeline_mode<synchronous>, transform_indices = @transform_4, window_bounds = array<i64: 3, 1, 32>}, {pipeline_mode = #tpu.pipeline_mode<synchronous>, transform_indices = @transform_5, window_bounds = array<i64: 2, 32, 64>}, {pipeline_mode = #tpu.pipeline_mode<synchronous>, transform_indices = @transform_6, window_bounds = array<i64: 2, 1, 64>}, {pipeline_mode = #tpu.pipeline_mode<synchronous>, transform_indices = @transform_7, window_bounds = array<i64: 2, 64, 32>}, {pipeline_mode = #tpu.pipeline_mode<synchronous>, transform_indices = @transform_8, window_bounds = array<i64: 2, 1, 32>}, {pipeline_mode = #tpu.pipeline_mode<synchronous>, transform_indices = @transform_9, window_bounds = array<i64: 2, 1, 32>}, {pipeline_mode = #tpu.pipeline_mode<synchronous>, transform_indices = @transform_10, window_bounds = array<i64: 2, 1, 32>}, {pipeline_mode = #tpu.pipeline_mode<synchronous>, transform_indices = @transform_11, window_bounds = array<i64: 2, 1, 32>}, {pipeline_mode = #tpu.pipeline_mode<synchronous>, transform_indices = @transform_12, window_bounds = array<i64: 2, 1, 32>}, {pipeline_mode = #tpu.pipeline_mode<synchronous>, transform_indices = @transform_13, window_bounds = array<i64: 32, 64>}, {pipeline_mode = #tpu.pipeline_mode<synchronous>, transform_indices = @transform_14, window_bounds = array<i64: 1, 64>}, {pipeline_mode = #tpu.pipeline_mode<synchronous>, transform_indices = @transform_15, window_bounds = array<i64: 64, 128>}, {pipeline_mode = #tpu.pipeline_mode<synchronous>, transform_indices = @transform_16, window_bounds = array<i64: 1, 128>}, {transform_indices = @transform_17, window_bounds = array<i64: 2, 1, 128>}]} {
    %c0 = arith.constant 0 : index
    %c0_0 = arith.constant 0 : index
    %0 = vector.load %arg1[%c0, %c0_0] : memref<16x32xf32, #tpu.memory_space<vmem>>, vector<16x32xf32>
    %1 = arith.truncf %0 : vector<16x32xf32> to vector<16x32xbf16>
    %c0_1 = arith.constant 0 : index
    %c0_2 = arith.constant 0 : index
    %c0_3 = arith.constant 0 : index
    %2 = vector.load %arg2[%c0_1, %c0_2, %c0_3] : memref<3x32x96xbf16, #tpu.memory_space<vmem>>, vector<1x32x96xbf16>
    %3 = vector.shape_cast %2 : vector<1x32x96xbf16> to vector<32x96xbf16>
    %cst = arith.constant dense<0.000000e+00> : vector<16x96xf32>
    %4 = tpu.matmul %1, %3, %cst {dimension_numbers = #tpu.dot_dimension_numbers<[1], [0], [0], [1], [0, 0, 1, 1], [], []>} : vector<16x32xbf16>, vector<32x96xbf16>, vector<16x96xf32> -> vector<16x96xf32>
    %c0_4 = arith.constant 0 : index
    %c0_5 = arith.constant 0 : index
    %c0_6 = arith.constant 0 : index
    %5 = vector.load %arg3[%c0_4, %c0_5, %c0_6] : memref<3x1x96xf32, #tpu.memory_space<vmem>>, vector<1x1x96xf32>
    %6 = vector.shape_cast %5 : vector<1x1x96xf32> to vector<1x96xf32>
    %7 = vector.broadcast %6 : vector<1x96xf32> to vector<16x96xf32>
    %8 = arith.addf %4, %7 : vector<16x96xf32>
    %9 = vector.extract_strided_slice %8 {offsets = [0, 0], sizes = [8, 8], strides = [1, 1]} : vector<16x96xf32> to vector<8x8xf32>
    %10 = arith.truncf %9 : vector<8x8xf32> to vector<8x8xbf16>
    %11 = vector.extract_strided_slice %8 {offsets = [0, 32], sizes = [8, 8], strides = [1, 1]} : vector<16x96xf32> to vector<8x8xf32>
    %12 = arith.truncf %11 : vector<8x8xf32> to vector<8x8xbf16>
    %13 = vector.extract_strided_slice %8 {offsets = [0, 64], sizes = [8, 8], strides = [1, 1]} : vector<16x96xf32> to vector<8x8xf32>
    %14 = arith.truncf %13 : vector<8x8xf32> to vector<8x8xbf16>
    %cst_7 = arith.constant dense<0.000000e+00> : vector<8x8xf32>
    %15 = tpu.matmul %10, %12, %cst_7 {dimension_numbers = #tpu.dot_dimension_numbers<[1], [1], [0], [0], [0, 0, 1, 0], [], []>} : vector<8x8xbf16>, vector<8x8xbf16>, vector<8x8xf32> -> vector<8x8xf32>
    %cst_8 = arith.constant dense<0xFF800000> : vector<8xf32>
    %16 = vector.multi_reduction <maximumf>, %15, %cst_8 [1] : vector<8x8xf32> to vector<8xf32>
    %17 = vector.shape_cast %16 : vector<8xf32> to vector<8x1xf32>
    %18 = vector.broadcast %17 : vector<8x1xf32> to vector<8x8xf32>
    %19 = arith.subf %15, %18 : vector<8x8xf32>
    %20 = math.exp %19 : vector<8x8xf32>
    %cst_9 = arith.constant dense<0.000000e+00> : vector<8xf32>
    %21 = vector.multi_reduction <add>, %20, %cst_9 [1] : vector<8x8xf32> to vector<8xf32>
    %22 = vector.shape_cast %21 : vector<8xf32> to vector<8x1xf32>
    %23 = tpu.reciprocal %22 : vector<8x1xf32> -> vector<8x1xf32>
    %24 = arith.truncf %20 : vector<8x8xf32> to vector<8x8xbf16>
    %cst_10 = arith.constant dense<0.000000e+00> : vector<8x8xf32>
    %25 = tpu.matmul %24, %14, %cst_10 {dimension_numbers = #tpu.dot_dimension_numbers<[1], [0], [0], [1], [0, 0, 1, 1], [], []>} : vector<8x8xbf16>, vector<8x8xbf16>, vector<8x8xf32> -> vector<8x8xf32>
    %26 = vector.broadcast %23 : vector<8x1xf32> to vector<8x8xf32>
    %27 = arith.mulf %25, %26 : vector<8x8xf32>
    %28 = vector.extract_strided_slice %8 {offsets = [0, 8], sizes = [8, 8], strides = [1, 1]} : vector<16x96xf32> to vector<8x8xf32>
    %29 = arith.truncf %28 : vector<8x8xf32> to vector<8x8xbf16>
    %30 = vector.extract_strided_slice %8 {offsets = [0, 40], sizes = [8, 8], strides = [1, 1]} : vector<16x96xf32> to vector<8x8xf32>
    %31 = arith.truncf %30 : vector<8x8xf32> to vector<8x8xbf16>
    %32 = vector.extract_strided_slice %8 {offsets = [0, 72], sizes = [8, 8], strides = [1, 1]} : vector<16x96xf32> to vector<8x8xf32>
    %33 = arith.truncf %32 : vector<8x8xf32> to vector<8x8xbf16>
    %cst_11 = arith.constant dense<0.000000e+00> : vector<8x8xf32>
    %34 = tpu.matmul %29, %31, %cst_11 {dimension_numbers = #tpu.dot_dimension_numbers<[1], [1], [0], [0], [0, 0, 1, 0], [], []>} : vector<8x8xbf16>, vector<8x8xbf16>, vector<8x8xf32> -> vector<8x8xf32>
    %cst_12 = arith.constant dense<0xFF800000> : vector<8xf32>
    %35 = vector.multi_reduction <maximumf>, %34, %cst_12 [1] : vector<8x8xf32> to vector<8xf32>
    %36 = vector.shape_cast %35 : vector<8xf32> to vector<8x1xf32>
    %37 = vector.broadcast %36 : vector<8x1xf32> to vector<8x8xf32>
    %38 = arith.subf %34, %37 : vector<8x8xf32>
    %39 = math.exp %38 : vector<8x8xf32>
    %cst_13 = arith.constant dense<0.000000e+00> : vector<8xf32>
    %40 = vector.multi_reduction <add>, %39, %cst_13 [1] : vector<8x8xf32> to vector<8xf32>
    %41 = vector.shape_cast %40 : vector<8xf32> to vector<8x1xf32>
    %42 = tpu.reciprocal %41 : vector<8x1xf32> -> vector<8x1xf32>
    %43 = arith.truncf %39 : vector<8x8xf32> to vector<8x8xbf16>
    %cst_14 = arith.constant dense<0.000000e+00> : vector<8x8xf32>
    %44 = tpu.matmul %43, %33, %cst_14 {dimension_numbers = #tpu.dot_dimension_numbers<[1], [0], [0], [1], [0, 0, 1, 1], [], []>} : vector<8x8xbf16>, vector<8x8xbf16>, vector<8x8xf32> -> vector<8x8xf32>
    %45 = vector.broadcast %42 : vector<8x1xf32> to vector<8x8xf32>
    %46 = arith.mulf %44, %45 : vector<8x8xf32>
    %47 = vector.extract_strided_slice %8 {offsets = [0, 16], sizes = [8, 8], strides = [1, 1]} : vector<16x96xf32> to vector<8x8xf32>
    %48 = arith.truncf %47 : vector<8x8xf32> to vector<8x8xbf16>
    %49 = vector.extract_strided_slice %8 {offsets = [0, 48], sizes = [8, 8], strides = [1, 1]} : vector<16x96xf32> to vector<8x8xf32>
    %50 = arith.truncf %49 : vector<8x8xf32> to vector<8x8xbf16>
    %51 = vector.extract_strided_slice %8 {offsets = [0, 80], sizes = [8, 8], strides = [1, 1]} : vector<16x96xf32> to vector<8x8xf32>
    %52 = arith.truncf %51 : vector<8x8xf32> to vector<8x8xbf16>
    %cst_15 = arith.constant dense<0.000000e+00> : vector<8x8xf32>
    %53 = tpu.matmul %48, %50, %cst_15 {dimension_numbers = #tpu.dot_dimension_numbers<[1], [1], [0], [0], [0, 0, 1, 0], [], []>} : vector<8x8xbf16>, vector<8x8xbf16>, vector<8x8xf32> -> vector<8x8xf32>
    %cst_16 = arith.constant dense<0xFF800000> : vector<8xf32>
    %54 = vector.multi_reduction <maximumf>, %53, %cst_16 [1] : vector<8x8xf32> to vector<8xf32>
    %55 = vector.shape_cast %54 : vector<8xf32> to vector<8x1xf32>
    %56 = vector.broadcast %55 : vector<8x1xf32> to vector<8x8xf32>
    %57 = arith.subf %53, %56 : vector<8x8xf32>
    %58 = math.exp %57 : vector<8x8xf32>
    %cst_17 = arith.constant dense<0.000000e+00> : vector<8xf32>
    %59 = vector.multi_reduction <add>, %58, %cst_17 [1] : vector<8x8xf32> to vector<8xf32>
    %60 = vector.shape_cast %59 : vector<8xf32> to vector<8x1xf32>
    %61 = tpu.reciprocal %60 : vector<8x1xf32> -> vector<8x1xf32>
    %62 = arith.truncf %58 : vector<8x8xf32> to vector<8x8xbf16>
    %cst_18 = arith.constant dense<0.000000e+00> : vector<8x8xf32>
    %63 = tpu.matmul %62, %52, %cst_18 {dimension_numbers = #tpu.dot_dimension_numbers<[1], [0], [0], [1], [0, 0, 1, 1], [], []>} : vector<8x8xbf16>, vector<8x8xbf16>, vector<8x8xf32> -> vector<8x8xf32>
    %64 = vector.broadcast %61 : vector<8x1xf32> to vector<8x8xf32>
    %65 = arith.mulf %63, %64 : vector<8x8xf32>
    %66 = vector.extract_strided_slice %8 {offsets = [0, 24], sizes = [8, 8], strides = [1, 1]} : vector<16x96xf32> to vector<8x8xf32>
    %67 = arith.truncf %66 : vector<8x8xf32> to vector<8x8xbf16>
    %68 = vector.extract_strided_slice %8 {offsets = [0, 56], sizes = [8, 8], strides = [1, 1]} : vector<16x96xf32> to vector<8x8xf32>
    %69 = arith.truncf %68 : vector<8x8xf32> to vector<8x8xbf16>
    %70 = vector.extract_strided_slice %8 {offsets = [0, 88], sizes = [8, 8], strides = [1, 1]} : vector<16x96xf32> to vector<8x8xf32>
    %71 = arith.truncf %70 : vector<8x8xf32> to vector<8x8xbf16>
    %cst_19 = arith.constant dense<0.000000e+00> : vector<8x8xf32>
    %72 = tpu.matmul %67, %69, %cst_19 {dimension_numbers = #tpu.dot_dimension_numbers<[1], [1], [0], [0], [0, 0, 1, 0], [], []>} : vector<8x8xbf16>, vector<8x8xbf16>, vector<8x8xf32> -> vector<8x8xf32>
    %cst_20 = arith.constant dense<0xFF800000> : vector<8xf32>
    %73 = vector.multi_reduction <maximumf>, %72, %cst_20 [1] : vector<8x8xf32> to vector<8xf32>
    %74 = vector.shape_cast %73 : vector<8xf32> to vector<8x1xf32>
    %75 = vector.broadcast %74 : vector<8x1xf32> to vector<8x8xf32>
    %76 = arith.subf %72, %75 : vector<8x8xf32>
    %77 = math.exp %76 : vector<8x8xf32>
    %cst_21 = arith.constant dense<0.000000e+00> : vector<8xf32>
    %78 = vector.multi_reduction <add>, %77, %cst_21 [1] : vector<8x8xf32> to vector<8xf32>
    %79 = vector.shape_cast %78 : vector<8xf32> to vector<8x1xf32>
    %80 = tpu.reciprocal %79 : vector<8x1xf32> -> vector<8x1xf32>
    %81 = arith.truncf %77 : vector<8x8xf32> to vector<8x8xbf16>
    %cst_22 = arith.constant dense<0.000000e+00> : vector<8x8xf32>
    %82 = tpu.matmul %81, %71, %cst_22 {dimension_numbers = #tpu.dot_dimension_numbers<[1], [0], [0], [1], [0, 0, 1, 1], [], []>} : vector<8x8xbf16>, vector<8x8xbf16>, vector<8x8xf32> -> vector<8x8xf32>
    %83 = vector.broadcast %80 : vector<8x1xf32> to vector<8x8xf32>
    %84 = arith.mulf %82, %83 : vector<8x8xf32>
    %85 = tpu.concatenate %27, %46, %65, %84 in 1 : vector<8x8xf32>, vector<8x8xf32>, vector<8x8xf32>, vector<8x8xf32> -> vector<8x32xf32>
    %86 = vector.extract_strided_slice %8 {offsets = [8, 0], sizes = [8, 8], strides = [1, 1]} : vector<16x96xf32> to vector<8x8xf32>
    %87 = arith.truncf %86 : vector<8x8xf32> to vector<8x8xbf16>
    %88 = vector.extract_strided_slice %8 {offsets = [8, 32], sizes = [8, 8], strides = [1, 1]} : vector<16x96xf32> to vector<8x8xf32>
    %89 = arith.truncf %88 : vector<8x8xf32> to vector<8x8xbf16>
    %90 = vector.extract_strided_slice %8 {offsets = [8, 64], sizes = [8, 8], strides = [1, 1]} : vector<16x96xf32> to vector<8x8xf32>
    %91 = arith.truncf %90 : vector<8x8xf32> to vector<8x8xbf16>
    %cst_23 = arith.constant dense<0.000000e+00> : vector<8x8xf32>
    %92 = tpu.matmul %87, %89, %cst_23 {dimension_numbers = #tpu.dot_dimension_numbers<[1], [1], [0], [0], [0, 0, 1, 0], [], []>} : vector<8x8xbf16>, vector<8x8xbf16>, vector<8x8xf32> -> vector<8x8xf32>
    %cst_24 = arith.constant dense<0xFF800000> : vector<8xf32>
    %93 = vector.multi_reduction <maximumf>, %92, %cst_24 [1] : vector<8x8xf32> to vector<8xf32>
    %94 = vector.shape_cast %93 : vector<8xf32> to vector<8x1xf32>
    %95 = vector.broadcast %94 : vector<8x1xf32> to vector<8x8xf32>
    %96 = arith.subf %92, %95 : vector<8x8xf32>
    %97 = math.exp %96 : vector<8x8xf32>
    %cst_25 = arith.constant dense<0.000000e+00> : vector<8xf32>
    %98 = vector.multi_reduction <add>, %97, %cst_25 [1] : vector<8x8xf32> to vector<8xf32>
    %99 = vector.shape_cast %98 : vector<8xf32> to vector<8x1xf32>
    %100 = tpu.reciprocal %99 : vector<8x1xf32> -> vector<8x1xf32>
    %101 = arith.truncf %97 : vector<8x8xf32> to vector<8x8xbf16>
    %cst_26 = arith.constant dense<0.000000e+00> : vector<8x8xf32>
    %102 = tpu.matmul %101, %91, %cst_26 {dimension_numbers = #tpu.dot_dimension_numbers<[1], [0], [0], [1], [0, 0, 1, 1], [], []>} : vector<8x8xbf16>, vector<8x8xbf16>, vector<8x8xf32> -> vector<8x8xf32>
    %103 = vector.broadcast %100 : vector<8x1xf32> to vector<8x8xf32>
    %104 = arith.mulf %102, %103 : vector<8x8xf32>
    %105 = vector.extract_strided_slice %8 {offsets = [8, 8], sizes = [8, 8], strides = [1, 1]} : vector<16x96xf32> to vector<8x8xf32>
    %106 = arith.truncf %105 : vector<8x8xf32> to vector<8x8xbf16>
    %107 = vector.extract_strided_slice %8 {offsets = [8, 40], sizes = [8, 8], strides = [1, 1]} : vector<16x96xf32> to vector<8x8xf32>
    %108 = arith.truncf %107 : vector<8x8xf32> to vector<8x8xbf16>
    %109 = vector.extract_strided_slice %8 {offsets = [8, 72], sizes = [8, 8], strides = [1, 1]} : vector<16x96xf32> to vector<8x8xf32>
    %110 = arith.truncf %109 : vector<8x8xf32> to vector<8x8xbf16>
    %cst_27 = arith.constant dense<0.000000e+00> : vector<8x8xf32>
    %111 = tpu.matmul %106, %108, %cst_27 {dimension_numbers = #tpu.dot_dimension_numbers<[1], [1], [0], [0], [0, 0, 1, 0], [], []>} : vector<8x8xbf16>, vector<8x8xbf16>, vector<8x8xf32> -> vector<8x8xf32>
    %cst_28 = arith.constant dense<0xFF800000> : vector<8xf32>
    %112 = vector.multi_reduction <maximumf>, %111, %cst_28 [1] : vector<8x8xf32> to vector<8xf32>
    %113 = vector.shape_cast %112 : vector<8xf32> to vector<8x1xf32>
    %114 = vector.broadcast %113 : vector<8x1xf32> to vector<8x8xf32>
    %115 = arith.subf %111, %114 : vector<8x8xf32>
    %116 = math.exp %115 : vector<8x8xf32>
    %cst_29 = arith.constant dense<0.000000e+00> : vector<8xf32>
    %117 = vector.multi_reduction <add>, %116, %cst_29 [1] : vector<8x8xf32> to vector<8xf32>
    %118 = vector.shape_cast %117 : vector<8xf32> to vector<8x1xf32>
    %119 = tpu.reciprocal %118 : vector<8x1xf32> -> vector<8x1xf32>
    %120 = arith.truncf %116 : vector<8x8xf32> to vector<8x8xbf16>
    %cst_30 = arith.constant dense<0.000000e+00> : vector<8x8xf32>
    %121 = tpu.matmul %120, %110, %cst_30 {dimension_numbers = #tpu.dot_dimension_numbers<[1], [0], [0], [1], [0, 0, 1, 1], [], []>} : vector<8x8xbf16>, vector<8x8xbf16>, vector<8x8xf32> -> vector<8x8xf32>
    %122 = vector.broadcast %119 : vector<8x1xf32> to vector<8x8xf32>
    %123 = arith.mulf %121, %122 : vector<8x8xf32>
    %124 = vector.extract_strided_slice %8 {offsets = [8, 16], sizes = [8, 8], strides = [1, 1]} : vector<16x96xf32> to vector<8x8xf32>
    %125 = arith.truncf %124 : vector<8x8xf32> to vector<8x8xbf16>
    %126 = vector.extract_strided_slice %8 {offsets = [8, 48], sizes = [8, 8], strides = [1, 1]} : vector<16x96xf32> to vector<8x8xf32>
    %127 = arith.truncf %126 : vector<8x8xf32> to vector<8x8xbf16>
    %128 = vector.extract_strided_slice %8 {offsets = [8, 80], sizes = [8, 8], strides = [1, 1]} : vector<16x96xf32> to vector<8x8xf32>
    %129 = arith.truncf %128 : vector<8x8xf32> to vector<8x8xbf16>
    %cst_31 = arith.constant dense<0.000000e+00> : vector<8x8xf32>
    %130 = tpu.matmul %125, %127, %cst_31 {dimension_numbers = #tpu.dot_dimension_numbers<[1], [1], [0], [0], [0, 0, 1, 0], [], []>} : vector<8x8xbf16>, vector<8x8xbf16>, vector<8x8xf32> -> vector<8x8xf32>
    %cst_32 = arith.constant dense<0xFF800000> : vector<8xf32>
    %131 = vector.multi_reduction <maximumf>, %130, %cst_32 [1] : vector<8x8xf32> to vector<8xf32>
    %132 = vector.shape_cast %131 : vector<8xf32> to vector<8x1xf32>
    %133 = vector.broadcast %132 : vector<8x1xf32> to vector<8x8xf32>
    %134 = arith.subf %130, %133 : vector<8x8xf32>
    %135 = math.exp %134 : vector<8x8xf32>
    %cst_33 = arith.constant dense<0.000000e+00> : vector<8xf32>
    %136 = vector.multi_reduction <add>, %135, %cst_33 [1] : vector<8x8xf32> to vector<8xf32>
    %137 = vector.shape_cast %136 : vector<8xf32> to vector<8x1xf32>
    %138 = tpu.reciprocal %137 : vector<8x1xf32> -> vector<8x1xf32>
    %139 = arith.truncf %135 : vector<8x8xf32> to vector<8x8xbf16>
    %cst_34 = arith.constant dense<0.000000e+00> : vector<8x8xf32>
    %140 = tpu.matmul %139, %129, %cst_34 {dimension_numbers = #tpu.dot_dimension_numbers<[1], [0], [0], [1], [0, 0, 1, 1], [], []>} : vector<8x8xbf16>, vector<8x8xbf16>, vector<8x8xf32> -> vector<8x8xf32>
    %141 = vector.broadcast %138 : vector<8x1xf32> to vector<8x8xf32>
    %142 = arith.mulf %140, %141 : vector<8x8xf32>
    %143 = vector.extract_strided_slice %8 {offsets = [8, 24], sizes = [8, 8], strides = [1, 1]} : vector<16x96xf32> to vector<8x8xf32>
    %144 = arith.truncf %143 : vector<8x8xf32> to vector<8x8xbf16>
    %145 = vector.extract_strided_slice %8 {offsets = [8, 56], sizes = [8, 8], strides = [1, 1]} : vector<16x96xf32> to vector<8x8xf32>
    %146 = arith.truncf %145 : vector<8x8xf32> to vector<8x8xbf16>
    %147 = vector.extract_strided_slice %8 {offsets = [8, 88], sizes = [8, 8], strides = [1, 1]} : vector<16x96xf32> to vector<8x8xf32>
    %148 = arith.truncf %147 : vector<8x8xf32> to vector<8x8xbf16>
    %cst_35 = arith.constant dense<0.000000e+00> : vector<8x8xf32>
    %149 = tpu.matmul %144, %146, %cst_35 {dimension_numbers = #tpu.dot_dimension_numbers<[1], [1], [0], [0], [0, 0, 1, 0], [], []>} : vector<8x8xbf16>, vector<8x8xbf16>, vector<8x8xf32> -> vector<8x8xf32>
    %cst_36 = arith.constant dense<0xFF800000> : vector<8xf32>
    %150 = vector.multi_reduction <maximumf>, %149, %cst_36 [1] : vector<8x8xf32> to vector<8xf32>
    %151 = vector.shape_cast %150 : vector<8xf32> to vector<8x1xf32>
    %152 = vector.broadcast %151 : vector<8x1xf32> to vector<8x8xf32>
    %153 = arith.subf %149, %152 : vector<8x8xf32>
    %154 = math.exp %153 : vector<8x8xf32>
    %cst_37 = arith.constant dense<0.000000e+00> : vector<8xf32>
    %155 = vector.multi_reduction <add>, %154, %cst_37 [1] : vector<8x8xf32> to vector<8xf32>
    %156 = vector.shape_cast %155 : vector<8xf32> to vector<8x1xf32>
    %157 = tpu.reciprocal %156 : vector<8x1xf32> -> vector<8x1xf32>
    %158 = arith.truncf %154 : vector<8x8xf32> to vector<8x8xbf16>
    %cst_38 = arith.constant dense<0.000000e+00> : vector<8x8xf32>
    %159 = tpu.matmul %158, %148, %cst_38 {dimension_numbers = #tpu.dot_dimension_numbers<[1], [0], [0], [1], [0, 0, 1, 1], [], []>} : vector<8x8xbf16>, vector<8x8xbf16>, vector<8x8xf32> -> vector<8x8xf32>
    %160 = vector.broadcast %157 : vector<8x1xf32> to vector<8x8xf32>
    %161 = arith.mulf %159, %160 : vector<8x8xf32>
    %162 = tpu.concatenate %104, %123, %142, %161 in 1 : vector<8x8xf32>, vector<8x8xf32>, vector<8x8xf32>, vector<8x8xf32> -> vector<8x32xf32>
    %163 = tpu.concatenate %85, %162 in 0 : vector<8x32xf32>, vector<8x32xf32> -> vector<16x32xf32>
    %164 = arith.truncf %163 : vector<16x32xf32> to vector<16x32xbf16>
    %c0_39 = arith.constant 0 : index
    %c0_40 = arith.constant 0 : index
    %c0_41 = arith.constant 0 : index
    %165 = vector.load %arg4[%c0_39, %c0_40, %c0_41] : memref<3x32x32xbf16, #tpu.memory_space<vmem>>, vector<1x32x32xbf16>
    %166 = vector.shape_cast %165 : vector<1x32x32xbf16> to vector<32x32xbf16>
    %cst_42 = arith.constant dense<0.000000e+00> : vector<16x32xf32>
    %167 = tpu.matmul %164, %166, %cst_42 {dimension_numbers = #tpu.dot_dimension_numbers<[1], [0], [0], [1], [0, 0, 1, 1], [], []>} : vector<16x32xbf16>, vector<32x32xbf16>, vector<16x32xf32> -> vector<16x32xf32>
    %c0_43 = arith.constant 0 : index
    %c0_44 = arith.constant 0 : index
    %c0_45 = arith.constant 0 : index
    %168 = vector.load %arg5[%c0_43, %c0_44, %c0_45] : memref<3x1x32xf32, #tpu.memory_space<vmem>>, vector<1x1x32xf32>
    %169 = vector.shape_cast %168 : vector<1x1x32xf32> to vector<1x32xf32>
    %170 = vector.broadcast %169 : vector<1x32xf32> to vector<16x32xf32>
    %171 = arith.addf %167, %170 : vector<16x32xf32>
    %172 = arith.truncf %171 : vector<16x32xf32> to vector<16x32xbf16>
    %c1 = arith.constant 1 : index
    %c0_46 = arith.constant 0 : index
    %c0_47 = arith.constant 0 : index
    %173 = vector.load %arg2[%c1, %c0_46, %c0_47] : memref<3x32x96xbf16, #tpu.memory_space<vmem>>, vector<1x32x96xbf16>
    %174 = vector.shape_cast %173 : vector<1x32x96xbf16> to vector<32x96xbf16>
    %cst_48 = arith.constant dense<0.000000e+00> : vector<16x96xf32>
    %175 = tpu.matmul %172, %174, %cst_48 {dimension_numbers = #tpu.dot_dimension_numbers<[1], [0], [0], [1], [0, 0, 1, 1], [], []>} : vector<16x32xbf16>, vector<32x96xbf16>, vector<16x96xf32> -> vector<16x96xf32>
    %c1_49 = arith.constant 1 : index
    %c0_50 = arith.constant 0 : index
    %c0_51 = arith.constant 0 : index
    %176 = vector.load %arg3[%c1_49, %c0_50, %c0_51] : memref<3x1x96xf32, #tpu.memory_space<vmem>>, vector<1x1x96xf32>
    %177 = vector.shape_cast %176 : vector<1x1x96xf32> to vector<1x96xf32>
    %178 = vector.broadcast %177 : vector<1x96xf32> to vector<16x96xf32>
    %179 = arith.addf %175, %178 : vector<16x96xf32>
    %180 = vector.extract_strided_slice %179 {offsets = [0, 0], sizes = [8, 8], strides = [1, 1]} : vector<16x96xf32> to vector<8x8xf32>
    %181 = arith.truncf %180 : vector<8x8xf32> to vector<8x8xbf16>
    %182 = vector.extract_strided_slice %179 {offsets = [0, 32], sizes = [8, 8], strides = [1, 1]} : vector<16x96xf32> to vector<8x8xf32>
    %183 = arith.truncf %182 : vector<8x8xf32> to vector<8x8xbf16>
    %184 = vector.extract_strided_slice %179 {offsets = [0, 64], sizes = [8, 8], strides = [1, 1]} : vector<16x96xf32> to vector<8x8xf32>
    %185 = arith.truncf %184 : vector<8x8xf32> to vector<8x8xbf16>
    %cst_52 = arith.constant dense<0.000000e+00> : vector<8x8xf32>
    %186 = tpu.matmul %181, %183, %cst_52 {dimension_numbers = #tpu.dot_dimension_numbers<[1], [1], [0], [0], [0, 0, 1, 0], [], []>} : vector<8x8xbf16>, vector<8x8xbf16>, vector<8x8xf32> -> vector<8x8xf32>
    %cst_53 = arith.constant dense<0xFF800000> : vector<8xf32>
    %187 = vector.multi_reduction <maximumf>, %186, %cst_53 [1] : vector<8x8xf32> to vector<8xf32>
    %188 = vector.shape_cast %187 : vector<8xf32> to vector<8x1xf32>
    %189 = vector.broadcast %188 : vector<8x1xf32> to vector<8x8xf32>
    %190 = arith.subf %186, %189 : vector<8x8xf32>
    %191 = math.exp %190 : vector<8x8xf32>
    %cst_54 = arith.constant dense<0.000000e+00> : vector<8xf32>
    %192 = vector.multi_reduction <add>, %191, %cst_54 [1] : vector<8x8xf32> to vector<8xf32>
    %193 = vector.shape_cast %192 : vector<8xf32> to vector<8x1xf32>
    %194 = tpu.reciprocal %193 : vector<8x1xf32> -> vector<8x1xf32>
    %195 = arith.truncf %191 : vector<8x8xf32> to vector<8x8xbf16>
    %cst_55 = arith.constant dense<0.000000e+00> : vector<8x8xf32>
    %196 = tpu.matmul %195, %185, %cst_55 {dimension_numbers = #tpu.dot_dimension_numbers<[1], [0], [0], [1], [0, 0, 1, 1], [], []>} : vector<8x8xbf16>, vector<8x8xbf16>, vector<8x8xf32> -> vector<8x8xf32>
    %197 = vector.broadcast %194 : vector<8x1xf32> to vector<8x8xf32>
    %198 = arith.mulf %196, %197 : vector<8x8xf32>
    %199 = vector.extract_strided_slice %179 {offsets = [0, 8], sizes = [8, 8], strides = [1, 1]} : vector<16x96xf32> to vector<8x8xf32>
    %200 = arith.truncf %199 : vector<8x8xf32> to vector<8x8xbf16>
    %201 = vector.extract_strided_slice %179 {offsets = [0, 40], sizes = [8, 8], strides = [1, 1]} : vector<16x96xf32> to vector<8x8xf32>
    %202 = arith.truncf %201 : vector<8x8xf32> to vector<8x8xbf16>
    %203 = vector.extract_strided_slice %179 {offsets = [0, 72], sizes = [8, 8], strides = [1, 1]} : vector<16x96xf32> to vector<8x8xf32>
    %204 = arith.truncf %203 : vector<8x8xf32> to vector<8x8xbf16>
    %cst_56 = arith.constant dense<0.000000e+00> : vector<8x8xf32>
    %205 = tpu.matmul %200, %202, %cst_56 {dimension_numbers = #tpu.dot_dimension_numbers<[1], [1], [0], [0], [0, 0, 1, 0], [], []>} : vector<8x8xbf16>, vector<8x8xbf16>, vector<8x8xf32> -> vector<8x8xf32>
    %cst_57 = arith.constant dense<0xFF800000> : vector<8xf32>
    %206 = vector.multi_reduction <maximumf>, %205, %cst_57 [1] : vector<8x8xf32> to vector<8xf32>
    %207 = vector.shape_cast %206 : vector<8xf32> to vector<8x1xf32>
    %208 = vector.broadcast %207 : vector<8x1xf32> to vector<8x8xf32>
    %209 = arith.subf %205, %208 : vector<8x8xf32>
    %210 = math.exp %209 : vector<8x8xf32>
    %cst_58 = arith.constant dense<0.000000e+00> : vector<8xf32>
    %211 = vector.multi_reduction <add>, %210, %cst_58 [1] : vector<8x8xf32> to vector<8xf32>
    %212 = vector.shape_cast %211 : vector<8xf32> to vector<8x1xf32>
    %213 = tpu.reciprocal %212 : vector<8x1xf32> -> vector<8x1xf32>
    %214 = arith.truncf %210 : vector<8x8xf32> to vector<8x8xbf16>
    %cst_59 = arith.constant dense<0.000000e+00> : vector<8x8xf32>
    %215 = tpu.matmul %214, %204, %cst_59 {dimension_numbers = #tpu.dot_dimension_numbers<[1], [0], [0], [1], [0, 0, 1, 1], [], []>} : vector<8x8xbf16>, vector<8x8xbf16>, vector<8x8xf32> -> vector<8x8xf32>
    %216 = vector.broadcast %213 : vector<8x1xf32> to vector<8x8xf32>
    %217 = arith.mulf %215, %216 : vector<8x8xf32>
    %218 = vector.extract_strided_slice %179 {offsets = [0, 16], sizes = [8, 8], strides = [1, 1]} : vector<16x96xf32> to vector<8x8xf32>
    %219 = arith.truncf %218 : vector<8x8xf32> to vector<8x8xbf16>
    %220 = vector.extract_strided_slice %179 {offsets = [0, 48], sizes = [8, 8], strides = [1, 1]} : vector<16x96xf32> to vector<8x8xf32>
    %221 = arith.truncf %220 : vector<8x8xf32> to vector<8x8xbf16>
    %222 = vector.extract_strided_slice %179 {offsets = [0, 80], sizes = [8, 8], strides = [1, 1]} : vector<16x96xf32> to vector<8x8xf32>
    %223 = arith.truncf %222 : vector<8x8xf32> to vector<8x8xbf16>
    %cst_60 = arith.constant dense<0.000000e+00> : vector<8x8xf32>
    %224 = tpu.matmul %219, %221, %cst_60 {dimension_numbers = #tpu.dot_dimension_numbers<[1], [1], [0], [0], [0, 0, 1, 0], [], []>} : vector<8x8xbf16>, vector<8x8xbf16>, vector<8x8xf32> -> vector<8x8xf32>
    %cst_61 = arith.constant dense<0xFF800000> : vector<8xf32>
    %225 = vector.multi_reduction <maximumf>, %224, %cst_61 [1] : vector<8x8xf32> to vector<8xf32>
    %226 = vector.shape_cast %225 : vector<8xf32> to vector<8x1xf32>
    %227 = vector.broadcast %226 : vector<8x1xf32> to vector<8x8xf32>
    %228 = arith.subf %224, %227 : vector<8x8xf32>
    %229 = math.exp %228 : vector<8x8xf32>
    %cst_62 = arith.constant dense<0.000000e+00> : vector<8xf32>
    %230 = vector.multi_reduction <add>, %229, %cst_62 [1] : vector<8x8xf32> to vector<8xf32>
    %231 = vector.shape_cast %230 : vector<8xf32> to vector<8x1xf32>
    %232 = tpu.reciprocal %231 : vector<8x1xf32> -> vector<8x1xf32>
    %233 = arith.truncf %229 : vector<8x8xf32> to vector<8x8xbf16>
    %cst_63 = arith.constant dense<0.000000e+00> : vector<8x8xf32>
    %234 = tpu.matmul %233, %223, %cst_63 {dimension_numbers = #tpu.dot_dimension_numbers<[1], [0], [0], [1], [0, 0, 1, 1], [], []>} : vector<8x8xbf16>, vector<8x8xbf16>, vector<8x8xf32> -> vector<8x8xf32>
    %235 = vector.broadcast %232 : vector<8x1xf32> to vector<8x8xf32>
    %236 = arith.mulf %234, %235 : vector<8x8xf32>
    %237 = vector.extract_strided_slice %179 {offsets = [0, 24], sizes = [8, 8], strides = [1, 1]} : vector<16x96xf32> to vector<8x8xf32>
    %238 = arith.truncf %237 : vector<8x8xf32> to vector<8x8xbf16>
    %239 = vector.extract_strided_slice %179 {offsets = [0, 56], sizes = [8, 8], strides = [1, 1]} : vector<16x96xf32> to vector<8x8xf32>
    %240 = arith.truncf %239 : vector<8x8xf32> to vector<8x8xbf16>
    %241 = vector.extract_strided_slice %179 {offsets = [0, 88], sizes = [8, 8], strides = [1, 1]} : vector<16x96xf32> to vector<8x8xf32>
    %242 = arith.truncf %241 : vector<8x8xf32> to vector<8x8xbf16>
    %cst_64 = arith.constant dense<0.000000e+00> : vector<8x8xf32>
    %243 = tpu.matmul %238, %240, %cst_64 {dimension_numbers = #tpu.dot_dimension_numbers<[1], [1], [0], [0], [0, 0, 1, 0], [], []>} : vector<8x8xbf16>, vector<8x8xbf16>, vector<8x8xf32> -> vector<8x8xf32>
    %cst_65 = arith.constant dense<0xFF800000> : vector<8xf32>
    %244 = vector.multi_reduction <maximumf>, %243, %cst_65 [1] : vector<8x8xf32> to vector<8xf32>
    %245 = vector.shape_cast %244 : vector<8xf32> to vector<8x1xf32>
    %246 = vector.broadcast %245 : vector<8x1xf32> to vector<8x8xf32>
    %247 = arith.subf %243, %246 : vector<8x8xf32>
    %248 = math.exp %247 : vector<8x8xf32>
    %cst_66 = arith.constant dense<0.000000e+00> : vector<8xf32>
    %249 = vector.multi_reduction <add>, %248, %cst_66 [1] : vector<8x8xf32> to vector<8xf32>
    %250 = vector.shape_cast %249 : vector<8xf32> to vector<8x1xf32>
    %251 = tpu.reciprocal %250 : vector<8x1xf32> -> vector<8x1xf32>
    %252 = arith.truncf %248 : vector<8x8xf32> to vector<8x8xbf16>
    %cst_67 = arith.constant dense<0.000000e+00> : vector<8x8xf32>
    %253 = tpu.matmul %252, %242, %cst_67 {dimension_numbers = #tpu.dot_dimension_numbers<[1], [0], [0], [1], [0, 0, 1, 1], [], []>} : vector<8x8xbf16>, vector<8x8xbf16>, vector<8x8xf32> -> vector<8x8xf32>
    %254 = vector.broadcast %251 : vector<8x1xf32> to vector<8x8xf32>
    %255 = arith.mulf %253, %254 : vector<8x8xf32>
    %256 = tpu.concatenate %198, %217, %236, %255 in 1 : vector<8x8xf32>, vector<8x8xf32>, vector<8x8xf32>, vector<8x8xf32> -> vector<8x32xf32>
    %257 = vector.extract_strided_slice %179 {offsets = [8, 0], sizes = [8, 8], strides = [1, 1]} : vector<16x96xf32> to vector<8x8xf32>
    %258 = arith.truncf %257 : vector<8x8xf32> to vector<8x8xbf16>
    %259 = vector.extract_strided_slice %179 {offsets = [8, 32], sizes = [8, 8], strides = [1, 1]} : vector<16x96xf32> to vector<8x8xf32>
    %260 = arith.truncf %259 : vector<8x8xf32> to vector<8x8xbf16>
    %261 = vector.extract_strided_slice %179 {offsets = [8, 64], sizes = [8, 8], strides = [1, 1]} : vector<16x96xf32> to vector<8x8xf32>
    %262 = arith.truncf %261 : vector<8x8xf32> to vector<8x8xbf16>
    %cst_68 = arith.constant dense<0.000000e+00> : vector<8x8xf32>
    %263 = tpu.matmul %258, %260, %cst_68 {dimension_numbers = #tpu.dot_dimension_numbers<[1], [1], [0], [0], [0, 0, 1, 0], [], []>} : vector<8x8xbf16>, vector<8x8xbf16>, vector<8x8xf32> -> vector<8x8xf32>
    %cst_69 = arith.constant dense<0xFF800000> : vector<8xf32>
    %264 = vector.multi_reduction <maximumf>, %263, %cst_69 [1] : vector<8x8xf32> to vector<8xf32>
    %265 = vector.shape_cast %264 : vector<8xf32> to vector<8x1xf32>
    %266 = vector.broadcast %265 : vector<8x1xf32> to vector<8x8xf32>
    %267 = arith.subf %263, %266 : vector<8x8xf32>
    %268 = math.exp %267 : vector<8x8xf32>
    %cst_70 = arith.constant dense<0.000000e+00> : vector<8xf32>
    %269 = vector.multi_reduction <add>, %268, %cst_70 [1] : vector<8x8xf32> to vector<8xf32>
    %270 = vector.shape_cast %269 : vector<8xf32> to vector<8x1xf32>
    %271 = tpu.reciprocal %270 : vector<8x1xf32> -> vector<8x1xf32>
    %272 = arith.truncf %268 : vector<8x8xf32> to vector<8x8xbf16>
    %cst_71 = arith.constant dense<0.000000e+00> : vector<8x8xf32>
    %273 = tpu.matmul %272, %262, %cst_71 {dimension_numbers = #tpu.dot_dimension_numbers<[1], [0], [0], [1], [0, 0, 1, 1], [], []>} : vector<8x8xbf16>, vector<8x8xbf16>, vector<8x8xf32> -> vector<8x8xf32>
    %274 = vector.broadcast %271 : vector<8x1xf32> to vector<8x8xf32>
    %275 = arith.mulf %273, %274 : vector<8x8xf32>
    %276 = vector.extract_strided_slice %179 {offsets = [8, 8], sizes = [8, 8], strides = [1, 1]} : vector<16x96xf32> to vector<8x8xf32>
    %277 = arith.truncf %276 : vector<8x8xf32> to vector<8x8xbf16>
    %278 = vector.extract_strided_slice %179 {offsets = [8, 40], sizes = [8, 8], strides = [1, 1]} : vector<16x96xf32> to vector<8x8xf32>
    %279 = arith.truncf %278 : vector<8x8xf32> to vector<8x8xbf16>
    %280 = vector.extract_strided_slice %179 {offsets = [8, 72], sizes = [8, 8], strides = [1, 1]} : vector<16x96xf32> to vector<8x8xf32>
    %281 = arith.truncf %280 : vector<8x8xf32> to vector<8x8xbf16>
    %cst_72 = arith.constant dense<0.000000e+00> : vector<8x8xf32>
    %282 = tpu.matmul %277, %279, %cst_72 {dimension_numbers = #tpu.dot_dimension_numbers<[1], [1], [0], [0], [0, 0, 1, 0], [], []>} : vector<8x8xbf16>, vector<8x8xbf16>, vector<8x8xf32> -> vector<8x8xf32>
    %cst_73 = arith.constant dense<0xFF800000> : vector<8xf32>
    %283 = vector.multi_reduction <maximumf>, %282, %cst_73 [1] : vector<8x8xf32> to vector<8xf32>
    %284 = vector.shape_cast %283 : vector<8xf32> to vector<8x1xf32>
    %285 = vector.broadcast %284 : vector<8x1xf32> to vector<8x8xf32>
    %286 = arith.subf %282, %285 : vector<8x8xf32>
    %287 = math.exp %286 : vector<8x8xf32>
    %cst_74 = arith.constant dense<0.000000e+00> : vector<8xf32>
    %288 = vector.multi_reduction <add>, %287, %cst_74 [1] : vector<8x8xf32> to vector<8xf32>
    %289 = vector.shape_cast %288 : vector<8xf32> to vector<8x1xf32>
    %290 = tpu.reciprocal %289 : vector<8x1xf32> -> vector<8x1xf32>
    %291 = arith.truncf %287 : vector<8x8xf32> to vector<8x8xbf16>
    %cst_75 = arith.constant dense<0.000000e+00> : vector<8x8xf32>
    %292 = tpu.matmul %291, %281, %cst_75 {dimension_numbers = #tpu.dot_dimension_numbers<[1], [0], [0], [1], [0, 0, 1, 1], [], []>} : vector<8x8xbf16>, vector<8x8xbf16>, vector<8x8xf32> -> vector<8x8xf32>
    %293 = vector.broadcast %290 : vector<8x1xf32> to vector<8x8xf32>
    %294 = arith.mulf %292, %293 : vector<8x8xf32>
    %295 = vector.extract_strided_slice %179 {offsets = [8, 16], sizes = [8, 8], strides = [1, 1]} : vector<16x96xf32> to vector<8x8xf32>
    %296 = arith.truncf %295 : vector<8x8xf32> to vector<8x8xbf16>
    %297 = vector.extract_strided_slice %179 {offsets = [8, 48], sizes = [8, 8], strides = [1, 1]} : vector<16x96xf32> to vector<8x8xf32>
    %298 = arith.truncf %297 : vector<8x8xf32> to vector<8x8xbf16>
    %299 = vector.extract_strided_slice %179 {offsets = [8, 80], sizes = [8, 8], strides = [1, 1]} : vector<16x96xf32> to vector<8x8xf32>
    %300 = arith.truncf %299 : vector<8x8xf32> to vector<8x8xbf16>
    %cst_76 = arith.constant dense<0.000000e+00> : vector<8x8xf32>
    %301 = tpu.matmul %296, %298, %cst_76 {dimension_numbers = #tpu.dot_dimension_numbers<[1], [1], [0], [0], [0, 0, 1, 0], [], []>} : vector<8x8xbf16>, vector<8x8xbf16>, vector<8x8xf32> -> vector<8x8xf32>
    %cst_77 = arith.constant dense<0xFF800000> : vector<8xf32>
    %302 = vector.multi_reduction <maximumf>, %301, %cst_77 [1] : vector<8x8xf32> to vector<8xf32>
    %303 = vector.shape_cast %302 : vector<8xf32> to vector<8x1xf32>
    %304 = vector.broadcast %303 : vector<8x1xf32> to vector<8x8xf32>
    %305 = arith.subf %301, %304 : vector<8x8xf32>
    %306 = math.exp %305 : vector<8x8xf32>
    %cst_78 = arith.constant dense<0.000000e+00> : vector<8xf32>
    %307 = vector.multi_reduction <add>, %306, %cst_78 [1] : vector<8x8xf32> to vector<8xf32>
    %308 = vector.shape_cast %307 : vector<8xf32> to vector<8x1xf32>
    %309 = tpu.reciprocal %308 : vector<8x1xf32> -> vector<8x1xf32>
    %310 = arith.truncf %306 : vector<8x8xf32> to vector<8x8xbf16>
    %cst_79 = arith.constant dense<0.000000e+00> : vector<8x8xf32>
    %311 = tpu.matmul %310, %300, %cst_79 {dimension_numbers = #tpu.dot_dimension_numbers<[1], [0], [0], [1], [0, 0, 1, 1], [], []>} : vector<8x8xbf16>, vector<8x8xbf16>, vector<8x8xf32> -> vector<8x8xf32>
    %312 = vector.broadcast %309 : vector<8x1xf32> to vector<8x8xf32>
    %313 = arith.mulf %311, %312 : vector<8x8xf32>
    %314 = vector.extract_strided_slice %179 {offsets = [8, 24], sizes = [8, 8], strides = [1, 1]} : vector<16x96xf32> to vector<8x8xf32>
    %315 = arith.truncf %314 : vector<8x8xf32> to vector<8x8xbf16>
    %316 = vector.extract_strided_slice %179 {offsets = [8, 56], sizes = [8, 8], strides = [1, 1]} : vector<16x96xf32> to vector<8x8xf32>
    %317 = arith.truncf %316 : vector<8x8xf32> to vector<8x8xbf16>
    %318 = vector.extract_strided_slice %179 {offsets = [8, 88], sizes = [8, 8], strides = [1, 1]} : vector<16x96xf32> to vector<8x8xf32>
    %319 = arith.truncf %318 : vector<8x8xf32> to vector<8x8xbf16>
    %cst_80 = arith.constant dense<0.000000e+00> : vector<8x8xf32>
    %320 = tpu.matmul %315, %317, %cst_80 {dimension_numbers = #tpu.dot_dimension_numbers<[1], [1], [0], [0], [0, 0, 1, 0], [], []>} : vector<8x8xbf16>, vector<8x8xbf16>, vector<8x8xf32> -> vector<8x8xf32>
    %cst_81 = arith.constant dense<0xFF800000> : vector<8xf32>
    %321 = vector.multi_reduction <maximumf>, %320, %cst_81 [1] : vector<8x8xf32> to vector<8xf32>
    %322 = vector.shape_cast %321 : vector<8xf32> to vector<8x1xf32>
    %323 = vector.broadcast %322 : vector<8x1xf32> to vector<8x8xf32>
    %324 = arith.subf %320, %323 : vector<8x8xf32>
    %325 = math.exp %324 : vector<8x8xf32>
    %cst_82 = arith.constant dense<0.000000e+00> : vector<8xf32>
    %326 = vector.multi_reduction <add>, %325, %cst_82 [1] : vector<8x8xf32> to vector<8xf32>
    %327 = vector.shape_cast %326 : vector<8xf32> to vector<8x1xf32>
    %328 = tpu.reciprocal %327 : vector<8x1xf32> -> vector<8x1xf32>
    %329 = arith.truncf %325 : vector<8x8xf32> to vector<8x8xbf16>
    %cst_83 = arith.constant dense<0.000000e+00> : vector<8x8xf32>
    %330 = tpu.matmul %329, %319, %cst_83 {dimension_numbers = #tpu.dot_dimension_numbers<[1], [0], [0], [1], [0, 0, 1, 1], [], []>} : vector<8x8xbf16>, vector<8x8xbf16>, vector<8x8xf32> -> vector<8x8xf32>
    %331 = vector.broadcast %328 : vector<8x1xf32> to vector<8x8xf32>
    %332 = arith.mulf %330, %331 : vector<8x8xf32>
    %333 = tpu.concatenate %275, %294, %313, %332 in 1 : vector<8x8xf32>, vector<8x8xf32>, vector<8x8xf32>, vector<8x8xf32> -> vector<8x32xf32>
    %334 = tpu.concatenate %256, %333 in 0 : vector<8x32xf32>, vector<8x32xf32> -> vector<16x32xf32>
    %335 = arith.truncf %334 : vector<16x32xf32> to vector<16x32xbf16>
    %c1_84 = arith.constant 1 : index
    %c0_85 = arith.constant 0 : index
    %c0_86 = arith.constant 0 : index
    %336 = vector.load %arg4[%c1_84, %c0_85, %c0_86] : memref<3x32x32xbf16, #tpu.memory_space<vmem>>, vector<1x32x32xbf16>
    %337 = vector.shape_cast %336 : vector<1x32x32xbf16> to vector<32x32xbf16>
    %cst_87 = arith.constant dense<0.000000e+00> : vector<16x32xf32>
    %338 = tpu.matmul %335, %337, %cst_87 {dimension_numbers = #tpu.dot_dimension_numbers<[1], [0], [0], [1], [0, 0, 1, 1], [], []>} : vector<16x32xbf16>, vector<32x32xbf16>, vector<16x32xf32> -> vector<16x32xf32>
    %c1_88 = arith.constant 1 : index
    %c0_89 = arith.constant 0 : index
    %c0_90 = arith.constant 0 : index
    %339 = vector.load %arg5[%c1_88, %c0_89, %c0_90] : memref<3x1x32xf32, #tpu.memory_space<vmem>>, vector<1x1x32xf32>
    %340 = vector.shape_cast %339 : vector<1x1x32xf32> to vector<1x32xf32>
    %341 = vector.broadcast %340 : vector<1x32xf32> to vector<16x32xf32>
    %342 = arith.addf %338, %341 : vector<16x32xf32>
    %343 = arith.addf %171, %342 : vector<16x32xf32>
    %c0_91 = arith.constant 0 : index
    %c0_92 = arith.constant 0 : index
    %c0_93 = arith.constant 0 : index
    %344 = vector.load %arg10[%c0_91, %c0_92, %c0_93] : memref<2x1x32xf32, #tpu.memory_space<vmem>>, vector<1x1x32xf32>
    %345 = vector.shape_cast %344 : vector<1x1x32xf32> to vector<1x32xf32>
    %c0_94 = arith.constant 0 : index
    %c0_95 = arith.constant 0 : index
    %c0_96 = arith.constant 0 : index
    %346 = vector.load %arg11[%c0_94, %c0_95, %c0_96] : memref<2x1x32xf32, #tpu.memory_space<vmem>>, vector<1x1x32xf32>
    %347 = vector.shape_cast %346 : vector<1x1x32xf32> to vector<1x32xf32>
    %cst_97 = arith.constant dense<0.000000e+00> : vector<16xf32>
    %348 = vector.multi_reduction <add>, %343, %cst_97 [1] : vector<16x32xf32> to vector<16xf32>
    %349 = vector.shape_cast %348 : vector<16xf32> to vector<16x1xf32>
    %cst_98 = arith.constant 3.200000e+01 : f32
    %350 = vector.broadcast %cst_98 : f32 to vector<16x1xf32>
    %351 = arith.divf %349, %350 : vector<16x1xf32>
    %352 = vector.broadcast %351 : vector<16x1xf32> to vector<16x32xf32>
    %353 = arith.subf %343, %352 : vector<16x32xf32>
    %354 = arith.mulf %353, %353 : vector<16x32xf32>
    %cst_99 = arith.constant dense<0.000000e+00> : vector<16xf32>
    %355 = vector.multi_reduction <add>, %354, %cst_99 [1] : vector<16x32xf32> to vector<16xf32>
    %356 = vector.shape_cast %355 : vector<16xf32> to vector<16x1xf32>
    %cst_100 = arith.constant 3.200000e+01 : f32
    %357 = vector.broadcast %cst_100 : f32 to vector<16x1xf32>
    %358 = arith.divf %356, %357 : vector<16x1xf32>
    %cst_101 = arith.constant 9.99999974E-6 : f32
    %359 = vector.broadcast %cst_101 : f32 to vector<16x1xf32>
    %360 = arith.addf %358, %359 : vector<16x1xf32>
    %361 = math.rsqrt %360 : vector<16x1xf32>
    %362 = vector.broadcast %361 : vector<16x1xf32> to vector<16x32xf32>
    %363 = arith.mulf %353, %362 : vector<16x32xf32>
    %364 = vector.broadcast %345 : vector<1x32xf32> to vector<16x32xf32>
    %365 = arith.mulf %363, %364 : vector<16x32xf32>
    %366 = vector.broadcast %347 : vector<1x32xf32> to vector<16x32xf32>
    %367 = arith.addf %365, %366 : vector<16x32xf32>
    %368 = arith.truncf %367 : vector<16x32xf32> to vector<16x32xbf16>
    %c0_102 = arith.constant 0 : index
    %c0_103 = arith.constant 0 : index
    %c0_104 = arith.constant 0 : index
    %369 = vector.load %arg6[%c0_102, %c0_103, %c0_104] : memref<2x32x64xbf16, #tpu.memory_space<vmem>>, vector<1x32x64xbf16>
    %370 = vector.shape_cast %369 : vector<1x32x64xbf16> to vector<32x64xbf16>
    %cst_105 = arith.constant dense<0.000000e+00> : vector<16x64xf32>
    %371 = tpu.matmul %368, %370, %cst_105 {dimension_numbers = #tpu.dot_dimension_numbers<[1], [0], [0], [1], [0, 0, 1, 1], [], []>} : vector<16x32xbf16>, vector<32x64xbf16>, vector<16x64xf32> -> vector<16x64xf32>
    %c0_106 = arith.constant 0 : index
    %c0_107 = arith.constant 0 : index
    %c0_108 = arith.constant 0 : index
    %372 = vector.load %arg7[%c0_106, %c0_107, %c0_108] : memref<2x1x64xf32, #tpu.memory_space<vmem>>, vector<1x1x64xf32>
    %373 = vector.shape_cast %372 : vector<1x1x64xf32> to vector<1x64xf32>
    %374 = vector.broadcast %373 : vector<1x64xf32> to vector<16x64xf32>
    %375 = arith.addf %371, %374 : vector<16x64xf32>
    %cst_109 = arith.constant 0.000000e+00 : f32
    %376 = vector.broadcast %cst_109 : f32 to vector<16x64xf32>
    %377 = arith.maximumf %375, %376 : vector<16x64xf32>
    %378 = arith.truncf %377 : vector<16x64xf32> to vector<16x64xbf16>
    %c0_110 = arith.constant 0 : index
    %c0_111 = arith.constant 0 : index
    %c0_112 = arith.constant 0 : index
    %379 = vector.load %arg8[%c0_110, %c0_111, %c0_112] : memref<2x64x32xbf16, #tpu.memory_space<vmem>>, vector<1x64x32xbf16>
    %380 = vector.shape_cast %379 : vector<1x64x32xbf16> to vector<64x32xbf16>
    %cst_113 = arith.constant dense<0.000000e+00> : vector<16x32xf32>
    %381 = tpu.matmul %378, %380, %cst_113 {dimension_numbers = #tpu.dot_dimension_numbers<[1], [0], [0], [1], [0, 0, 1, 1], [], []>} : vector<16x64xbf16>, vector<64x32xbf16>, vector<16x32xf32> -> vector<16x32xf32>
    %c0_114 = arith.constant 0 : index
    %c0_115 = arith.constant 0 : index
    %c0_116 = arith.constant 0 : index
    %382 = vector.load %arg9[%c0_114, %c0_115, %c0_116] : memref<2x1x32xf32, #tpu.memory_space<vmem>>, vector<1x1x32xf32>
    %383 = vector.shape_cast %382 : vector<1x1x32xf32> to vector<1x32xf32>
    %384 = vector.broadcast %383 : vector<1x32xf32> to vector<16x32xf32>
    %385 = arith.addf %381, %384 : vector<16x32xf32>
    %386 = arith.addf %367, %385 : vector<16x32xf32>
    %c0_117 = arith.constant 0 : index
    %c0_118 = arith.constant 0 : index
    %c0_119 = arith.constant 0 : index
    %387 = vector.load %arg12[%c0_117, %c0_118, %c0_119] : memref<2x1x32xf32, #tpu.memory_space<vmem>>, vector<1x1x32xf32>
    %388 = vector.shape_cast %387 : vector<1x1x32xf32> to vector<1x32xf32>
    %c0_120 = arith.constant 0 : index
    %c0_121 = arith.constant 0 : index
    %c0_122 = arith.constant 0 : index
    %389 = vector.load %arg13[%c0_120, %c0_121, %c0_122] : memref<2x1x32xf32, #tpu.memory_space<vmem>>, vector<1x1x32xf32>
    %390 = vector.shape_cast %389 : vector<1x1x32xf32> to vector<1x32xf32>
    %cst_123 = arith.constant dense<0.000000e+00> : vector<16xf32>
    %391 = vector.multi_reduction <add>, %386, %cst_123 [1] : vector<16x32xf32> to vector<16xf32>
    %392 = vector.shape_cast %391 : vector<16xf32> to vector<16x1xf32>
    %cst_124 = arith.constant 3.200000e+01 : f32
    %393 = vector.broadcast %cst_124 : f32 to vector<16x1xf32>
    %394 = arith.divf %392, %393 : vector<16x1xf32>
    %395 = vector.broadcast %394 : vector<16x1xf32> to vector<16x32xf32>
    %396 = arith.subf %386, %395 : vector<16x32xf32>
    %397 = arith.mulf %396, %396 : vector<16x32xf32>
    %cst_125 = arith.constant dense<0.000000e+00> : vector<16xf32>
    %398 = vector.multi_reduction <add>, %397, %cst_125 [1] : vector<16x32xf32> to vector<16xf32>
    %399 = vector.shape_cast %398 : vector<16xf32> to vector<16x1xf32>
    %cst_126 = arith.constant 3.200000e+01 : f32
    %400 = vector.broadcast %cst_126 : f32 to vector<16x1xf32>
    %401 = arith.divf %399, %400 : vector<16x1xf32>
    %cst_127 = arith.constant 9.99999974E-6 : f32
    %402 = vector.broadcast %cst_127 : f32 to vector<16x1xf32>
    %403 = arith.addf %401, %402 : vector<16x1xf32>
    %404 = math.rsqrt %403 : vector<16x1xf32>
    %405 = vector.broadcast %404 : vector<16x1xf32> to vector<16x32xf32>
    %406 = arith.mulf %396, %405 : vector<16x32xf32>
    %407 = vector.broadcast %388 : vector<1x32xf32> to vector<16x32xf32>
    %408 = arith.mulf %406, %407 : vector<16x32xf32>
    %409 = vector.broadcast %390 : vector<1x32xf32> to vector<16x32xf32>
    %410 = arith.addf %408, %409 : vector<16x32xf32>
    %411 = arith.truncf %410 : vector<16x32xf32> to vector<16x32xbf16>
    %c2 = arith.constant 2 : index
    %c0_128 = arith.constant 0 : index
    %c0_129 = arith.constant 0 : index
    %412 = vector.load %arg2[%c2, %c0_128, %c0_129] : memref<3x32x96xbf16, #tpu.memory_space<vmem>>, vector<1x32x96xbf16>
    %413 = vector.shape_cast %412 : vector<1x32x96xbf16> to vector<32x96xbf16>
    %cst_130 = arith.constant dense<0.000000e+00> : vector<16x96xf32>
    %414 = tpu.matmul %411, %413, %cst_130 {dimension_numbers = #tpu.dot_dimension_numbers<[1], [0], [0], [1], [0, 0, 1, 1], [], []>} : vector<16x32xbf16>, vector<32x96xbf16>, vector<16x96xf32> -> vector<16x96xf32>
    %c2_131 = arith.constant 2 : index
    %c0_132 = arith.constant 0 : index
    %c0_133 = arith.constant 0 : index
    %415 = vector.load %arg3[%c2_131, %c0_132, %c0_133] : memref<3x1x96xf32, #tpu.memory_space<vmem>>, vector<1x1x96xf32>
    %416 = vector.shape_cast %415 : vector<1x1x96xf32> to vector<1x96xf32>
    %417 = vector.broadcast %416 : vector<1x96xf32> to vector<16x96xf32>
    %418 = arith.addf %414, %417 : vector<16x96xf32>
    %419 = vector.extract_strided_slice %418 {offsets = [0, 0], sizes = [8, 8], strides = [1, 1]} : vector<16x96xf32> to vector<8x8xf32>
    %420 = arith.truncf %419 : vector<8x8xf32> to vector<8x8xbf16>
    %421 = vector.extract_strided_slice %418 {offsets = [0, 32], sizes = [8, 8], strides = [1, 1]} : vector<16x96xf32> to vector<8x8xf32>
    %422 = arith.truncf %421 : vector<8x8xf32> to vector<8x8xbf16>
    %423 = vector.extract_strided_slice %418 {offsets = [0, 64], sizes = [8, 8], strides = [1, 1]} : vector<16x96xf32> to vector<8x8xf32>
    %424 = arith.truncf %423 : vector<8x8xf32> to vector<8x8xbf16>
    %cst_134 = arith.constant dense<0.000000e+00> : vector<8x8xf32>
    %425 = tpu.matmul %420, %422, %cst_134 {dimension_numbers = #tpu.dot_dimension_numbers<[1], [1], [0], [0], [0, 0, 1, 0], [], []>} : vector<8x8xbf16>, vector<8x8xbf16>, vector<8x8xf32> -> vector<8x8xf32>
    %cst_135 = arith.constant dense<0xFF800000> : vector<8xf32>
    %426 = vector.multi_reduction <maximumf>, %425, %cst_135 [1] : vector<8x8xf32> to vector<8xf32>
    %427 = vector.shape_cast %426 : vector<8xf32> to vector<8x1xf32>
    %428 = vector.broadcast %427 : vector<8x1xf32> to vector<8x8xf32>
    %429 = arith.subf %425, %428 : vector<8x8xf32>
    %430 = math.exp %429 : vector<8x8xf32>
    %cst_136 = arith.constant dense<0.000000e+00> : vector<8xf32>
    %431 = vector.multi_reduction <add>, %430, %cst_136 [1] : vector<8x8xf32> to vector<8xf32>
    %432 = vector.shape_cast %431 : vector<8xf32> to vector<8x1xf32>
    %433 = tpu.reciprocal %432 : vector<8x1xf32> -> vector<8x1xf32>
    %434 = arith.truncf %430 : vector<8x8xf32> to vector<8x8xbf16>
    %cst_137 = arith.constant dense<0.000000e+00> : vector<8x8xf32>
    %435 = tpu.matmul %434, %424, %cst_137 {dimension_numbers = #tpu.dot_dimension_numbers<[1], [0], [0], [1], [0, 0, 1, 1], [], []>} : vector<8x8xbf16>, vector<8x8xbf16>, vector<8x8xf32> -> vector<8x8xf32>
    %436 = vector.broadcast %433 : vector<8x1xf32> to vector<8x8xf32>
    %437 = arith.mulf %435, %436 : vector<8x8xf32>
    %438 = vector.extract_strided_slice %418 {offsets = [0, 8], sizes = [8, 8], strides = [1, 1]} : vector<16x96xf32> to vector<8x8xf32>
    %439 = arith.truncf %438 : vector<8x8xf32> to vector<8x8xbf16>
    %440 = vector.extract_strided_slice %418 {offsets = [0, 40], sizes = [8, 8], strides = [1, 1]} : vector<16x96xf32> to vector<8x8xf32>
    %441 = arith.truncf %440 : vector<8x8xf32> to vector<8x8xbf16>
    %442 = vector.extract_strided_slice %418 {offsets = [0, 72], sizes = [8, 8], strides = [1, 1]} : vector<16x96xf32> to vector<8x8xf32>
    %443 = arith.truncf %442 : vector<8x8xf32> to vector<8x8xbf16>
    %cst_138 = arith.constant dense<0.000000e+00> : vector<8x8xf32>
    %444 = tpu.matmul %439, %441, %cst_138 {dimension_numbers = #tpu.dot_dimension_numbers<[1], [1], [0], [0], [0, 0, 1, 0], [], []>} : vector<8x8xbf16>, vector<8x8xbf16>, vector<8x8xf32> -> vector<8x8xf32>
    %cst_139 = arith.constant dense<0xFF800000> : vector<8xf32>
    %445 = vector.multi_reduction <maximumf>, %444, %cst_139 [1] : vector<8x8xf32> to vector<8xf32>
    %446 = vector.shape_cast %445 : vector<8xf32> to vector<8x1xf32>
    %447 = vector.broadcast %446 : vector<8x1xf32> to vector<8x8xf32>
    %448 = arith.subf %444, %447 : vector<8x8xf32>
    %449 = math.exp %448 : vector<8x8xf32>
    %cst_140 = arith.constant dense<0.000000e+00> : vector<8xf32>
    %450 = vector.multi_reduction <add>, %449, %cst_140 [1] : vector<8x8xf32> to vector<8xf32>
    %451 = vector.shape_cast %450 : vector<8xf32> to vector<8x1xf32>
    %452 = tpu.reciprocal %451 : vector<8x1xf32> -> vector<8x1xf32>
    %453 = arith.truncf %449 : vector<8x8xf32> to vector<8x8xbf16>
    %cst_141 = arith.constant dense<0.000000e+00> : vector<8x8xf32>
    %454 = tpu.matmul %453, %443, %cst_141 {dimension_numbers = #tpu.dot_dimension_numbers<[1], [0], [0], [1], [0, 0, 1, 1], [], []>} : vector<8x8xbf16>, vector<8x8xbf16>, vector<8x8xf32> -> vector<8x8xf32>
    %455 = vector.broadcast %452 : vector<8x1xf32> to vector<8x8xf32>
    %456 = arith.mulf %454, %455 : vector<8x8xf32>
    %457 = vector.extract_strided_slice %418 {offsets = [0, 16], sizes = [8, 8], strides = [1, 1]} : vector<16x96xf32> to vector<8x8xf32>
    %458 = arith.truncf %457 : vector<8x8xf32> to vector<8x8xbf16>
    %459 = vector.extract_strided_slice %418 {offsets = [0, 48], sizes = [8, 8], strides = [1, 1]} : vector<16x96xf32> to vector<8x8xf32>
    %460 = arith.truncf %459 : vector<8x8xf32> to vector<8x8xbf16>
    %461 = vector.extract_strided_slice %418 {offsets = [0, 80], sizes = [8, 8], strides = [1, 1]} : vector<16x96xf32> to vector<8x8xf32>
    %462 = arith.truncf %461 : vector<8x8xf32> to vector<8x8xbf16>
    %cst_142 = arith.constant dense<0.000000e+00> : vector<8x8xf32>
    %463 = tpu.matmul %458, %460, %cst_142 {dimension_numbers = #tpu.dot_dimension_numbers<[1], [1], [0], [0], [0, 0, 1, 0], [], []>} : vector<8x8xbf16>, vector<8x8xbf16>, vector<8x8xf32> -> vector<8x8xf32>
    %cst_143 = arith.constant dense<0xFF800000> : vector<8xf32>
    %464 = vector.multi_reduction <maximumf>, %463, %cst_143 [1] : vector<8x8xf32> to vector<8xf32>
    %465 = vector.shape_cast %464 : vector<8xf32> to vector<8x1xf32>
    %466 = vector.broadcast %465 : vector<8x1xf32> to vector<8x8xf32>
    %467 = arith.subf %463, %466 : vector<8x8xf32>
    %468 = math.exp %467 : vector<8x8xf32>
    %cst_144 = arith.constant dense<0.000000e+00> : vector<8xf32>
    %469 = vector.multi_reduction <add>, %468, %cst_144 [1] : vector<8x8xf32> to vector<8xf32>
    %470 = vector.shape_cast %469 : vector<8xf32> to vector<8x1xf32>
    %471 = tpu.reciprocal %470 : vector<8x1xf32> -> vector<8x1xf32>
    %472 = arith.truncf %468 : vector<8x8xf32> to vector<8x8xbf16>
    %cst_145 = arith.constant dense<0.000000e+00> : vector<8x8xf32>
    %473 = tpu.matmul %472, %462, %cst_145 {dimension_numbers = #tpu.dot_dimension_numbers<[1], [0], [0], [1], [0, 0, 1, 1], [], []>} : vector<8x8xbf16>, vector<8x8xbf16>, vector<8x8xf32> -> vector<8x8xf32>
    %474 = vector.broadcast %471 : vector<8x1xf32> to vector<8x8xf32>
    %475 = arith.mulf %473, %474 : vector<8x8xf32>
    %476 = vector.extract_strided_slice %418 {offsets = [0, 24], sizes = [8, 8], strides = [1, 1]} : vector<16x96xf32> to vector<8x8xf32>
    %477 = arith.truncf %476 : vector<8x8xf32> to vector<8x8xbf16>
    %478 = vector.extract_strided_slice %418 {offsets = [0, 56], sizes = [8, 8], strides = [1, 1]} : vector<16x96xf32> to vector<8x8xf32>
    %479 = arith.truncf %478 : vector<8x8xf32> to vector<8x8xbf16>
    %480 = vector.extract_strided_slice %418 {offsets = [0, 88], sizes = [8, 8], strides = [1, 1]} : vector<16x96xf32> to vector<8x8xf32>
    %481 = arith.truncf %480 : vector<8x8xf32> to vector<8x8xbf16>
    %cst_146 = arith.constant dense<0.000000e+00> : vector<8x8xf32>
    %482 = tpu.matmul %477, %479, %cst_146 {dimension_numbers = #tpu.dot_dimension_numbers<[1], [1], [0], [0], [0, 0, 1, 0], [], []>} : vector<8x8xbf16>, vector<8x8xbf16>, vector<8x8xf32> -> vector<8x8xf32>
    %cst_147 = arith.constant dense<0xFF800000> : vector<8xf32>
    %483 = vector.multi_reduction <maximumf>, %482, %cst_147 [1] : vector<8x8xf32> to vector<8xf32>
    %484 = vector.shape_cast %483 : vector<8xf32> to vector<8x1xf32>
    %485 = vector.broadcast %484 : vector<8x1xf32> to vector<8x8xf32>
    %486 = arith.subf %482, %485 : vector<8x8xf32>
    %487 = math.exp %486 : vector<8x8xf32>
    %cst_148 = arith.constant dense<0.000000e+00> : vector<8xf32>
    %488 = vector.multi_reduction <add>, %487, %cst_148 [1] : vector<8x8xf32> to vector<8xf32>
    %489 = vector.shape_cast %488 : vector<8xf32> to vector<8x1xf32>
    %490 = tpu.reciprocal %489 : vector<8x1xf32> -> vector<8x1xf32>
    %491 = arith.truncf %487 : vector<8x8xf32> to vector<8x8xbf16>
    %cst_149 = arith.constant dense<0.000000e+00> : vector<8x8xf32>
    %492 = tpu.matmul %491, %481, %cst_149 {dimension_numbers = #tpu.dot_dimension_numbers<[1], [0], [0], [1], [0, 0, 1, 1], [], []>} : vector<8x8xbf16>, vector<8x8xbf16>, vector<8x8xf32> -> vector<8x8xf32>
    %493 = vector.broadcast %490 : vector<8x1xf32> to vector<8x8xf32>
    %494 = arith.mulf %492, %493 : vector<8x8xf32>
    %495 = tpu.concatenate %437, %456, %475, %494 in 1 : vector<8x8xf32>, vector<8x8xf32>, vector<8x8xf32>, vector<8x8xf32> -> vector<8x32xf32>
    %496 = vector.extract_strided_slice %418 {offsets = [8, 0], sizes = [8, 8], strides = [1, 1]} : vector<16x96xf32> to vector<8x8xf32>
    %497 = arith.truncf %496 : vector<8x8xf32> to vector<8x8xbf16>
    %498 = vector.extract_strided_slice %418 {offsets = [8, 32], sizes = [8, 8], strides = [1, 1]} : vector<16x96xf32> to vector<8x8xf32>
    %499 = arith.truncf %498 : vector<8x8xf32> to vector<8x8xbf16>
    %500 = vector.extract_strided_slice %418 {offsets = [8, 64], sizes = [8, 8], strides = [1, 1]} : vector<16x96xf32> to vector<8x8xf32>
    %501 = arith.truncf %500 : vector<8x8xf32> to vector<8x8xbf16>
    %cst_150 = arith.constant dense<0.000000e+00> : vector<8x8xf32>
    %502 = tpu.matmul %497, %499, %cst_150 {dimension_numbers = #tpu.dot_dimension_numbers<[1], [1], [0], [0], [0, 0, 1, 0], [], []>} : vector<8x8xbf16>, vector<8x8xbf16>, vector<8x8xf32> -> vector<8x8xf32>
    %cst_151 = arith.constant dense<0xFF800000> : vector<8xf32>
    %503 = vector.multi_reduction <maximumf>, %502, %cst_151 [1] : vector<8x8xf32> to vector<8xf32>
    %504 = vector.shape_cast %503 : vector<8xf32> to vector<8x1xf32>
    %505 = vector.broadcast %504 : vector<8x1xf32> to vector<8x8xf32>
    %506 = arith.subf %502, %505 : vector<8x8xf32>
    %507 = math.exp %506 : vector<8x8xf32>
    %cst_152 = arith.constant dense<0.000000e+00> : vector<8xf32>
    %508 = vector.multi_reduction <add>, %507, %cst_152 [1] : vector<8x8xf32> to vector<8xf32>
    %509 = vector.shape_cast %508 : vector<8xf32> to vector<8x1xf32>
    %510 = tpu.reciprocal %509 : vector<8x1xf32> -> vector<8x1xf32>
    %511 = arith.truncf %507 : vector<8x8xf32> to vector<8x8xbf16>
    %cst_153 = arith.constant dense<0.000000e+00> : vector<8x8xf32>
    %512 = tpu.matmul %511, %501, %cst_153 {dimension_numbers = #tpu.dot_dimension_numbers<[1], [0], [0], [1], [0, 0, 1, 1], [], []>} : vector<8x8xbf16>, vector<8x8xbf16>, vector<8x8xf32> -> vector<8x8xf32>
    %513 = vector.broadcast %510 : vector<8x1xf32> to vector<8x8xf32>
    %514 = arith.mulf %512, %513 : vector<8x8xf32>
    %515 = vector.extract_strided_slice %418 {offsets = [8, 8], sizes = [8, 8], strides = [1, 1]} : vector<16x96xf32> to vector<8x8xf32>
    %516 = arith.truncf %515 : vector<8x8xf32> to vector<8x8xbf16>
    %517 = vector.extract_strided_slice %418 {offsets = [8, 40], sizes = [8, 8], strides = [1, 1]} : vector<16x96xf32> to vector<8x8xf32>
    %518 = arith.truncf %517 : vector<8x8xf32> to vector<8x8xbf16>
    %519 = vector.extract_strided_slice %418 {offsets = [8, 72], sizes = [8, 8], strides = [1, 1]} : vector<16x96xf32> to vector<8x8xf32>
    %520 = arith.truncf %519 : vector<8x8xf32> to vector<8x8xbf16>
    %cst_154 = arith.constant dense<0.000000e+00> : vector<8x8xf32>
    %521 = tpu.matmul %516, %518, %cst_154 {dimension_numbers = #tpu.dot_dimension_numbers<[1], [1], [0], [0], [0, 0, 1, 0], [], []>} : vector<8x8xbf16>, vector<8x8xbf16>, vector<8x8xf32> -> vector<8x8xf32>
    %cst_155 = arith.constant dense<0xFF800000> : vector<8xf32>
    %522 = vector.multi_reduction <maximumf>, %521, %cst_155 [1] : vector<8x8xf32> to vector<8xf32>
    %523 = vector.shape_cast %522 : vector<8xf32> to vector<8x1xf32>
    %524 = vector.broadcast %523 : vector<8x1xf32> to vector<8x8xf32>
    %525 = arith.subf %521, %524 : vector<8x8xf32>
    %526 = math.exp %525 : vector<8x8xf32>
    %cst_156 = arith.constant dense<0.000000e+00> : vector<8xf32>
    %527 = vector.multi_reduction <add>, %526, %cst_156 [1] : vector<8x8xf32> to vector<8xf32>
    %528 = vector.shape_cast %527 : vector<8xf32> to vector<8x1xf32>
    %529 = tpu.reciprocal %528 : vector<8x1xf32> -> vector<8x1xf32>
    %530 = arith.truncf %526 : vector<8x8xf32> to vector<8x8xbf16>
    %cst_157 = arith.constant dense<0.000000e+00> : vector<8x8xf32>
    %531 = tpu.matmul %530, %520, %cst_157 {dimension_numbers = #tpu.dot_dimension_numbers<[1], [0], [0], [1], [0, 0, 1, 1], [], []>} : vector<8x8xbf16>, vector<8x8xbf16>, vector<8x8xf32> -> vector<8x8xf32>
    %532 = vector.broadcast %529 : vector<8x1xf32> to vector<8x8xf32>
    %533 = arith.mulf %531, %532 : vector<8x8xf32>
    %534 = vector.extract_strided_slice %418 {offsets = [8, 16], sizes = [8, 8], strides = [1, 1]} : vector<16x96xf32> to vector<8x8xf32>
    %535 = arith.truncf %534 : vector<8x8xf32> to vector<8x8xbf16>
    %536 = vector.extract_strided_slice %418 {offsets = [8, 48], sizes = [8, 8], strides = [1, 1]} : vector<16x96xf32> to vector<8x8xf32>
    %537 = arith.truncf %536 : vector<8x8xf32> to vector<8x8xbf16>
    %538 = vector.extract_strided_slice %418 {offsets = [8, 80], sizes = [8, 8], strides = [1, 1]} : vector<16x96xf32> to vector<8x8xf32>
    %539 = arith.truncf %538 : vector<8x8xf32> to vector<8x8xbf16>
    %cst_158 = arith.constant dense<0.000000e+00> : vector<8x8xf32>
    %540 = tpu.matmul %535, %537, %cst_158 {dimension_numbers = #tpu.dot_dimension_numbers<[1], [1], [0], [0], [0, 0, 1, 0], [], []>} : vector<8x8xbf16>, vector<8x8xbf16>, vector<8x8xf32> -> vector<8x8xf32>
    %cst_159 = arith.constant dense<0xFF800000> : vector<8xf32>
    %541 = vector.multi_reduction <maximumf>, %540, %cst_159 [1] : vector<8x8xf32> to vector<8xf32>
    %542 = vector.shape_cast %541 : vector<8xf32> to vector<8x1xf32>
    %543 = vector.broadcast %542 : vector<8x1xf32> to vector<8x8xf32>
    %544 = arith.subf %540, %543 : vector<8x8xf32>
    %545 = math.exp %544 : vector<8x8xf32>
    %cst_160 = arith.constant dense<0.000000e+00> : vector<8xf32>
    %546 = vector.multi_reduction <add>, %545, %cst_160 [1] : vector<8x8xf32> to vector<8xf32>
    %547 = vector.shape_cast %546 : vector<8xf32> to vector<8x1xf32>
    %548 = tpu.reciprocal %547 : vector<8x1xf32> -> vector<8x1xf32>
    %549 = arith.truncf %545 : vector<8x8xf32> to vector<8x8xbf16>
    %cst_161 = arith.constant dense<0.000000e+00> : vector<8x8xf32>
    %550 = tpu.matmul %549, %539, %cst_161 {dimension_numbers = #tpu.dot_dimension_numbers<[1], [0], [0], [1], [0, 0, 1, 1], [], []>} : vector<8x8xbf16>, vector<8x8xbf16>, vector<8x8xf32> -> vector<8x8xf32>
    %551 = vector.broadcast %548 : vector<8x1xf32> to vector<8x8xf32>
    %552 = arith.mulf %550, %551 : vector<8x8xf32>
    %553 = vector.extract_strided_slice %418 {offsets = [8, 24], sizes = [8, 8], strides = [1, 1]} : vector<16x96xf32> to vector<8x8xf32>
    %554 = arith.truncf %553 : vector<8x8xf32> to vector<8x8xbf16>
    %555 = vector.extract_strided_slice %418 {offsets = [8, 56], sizes = [8, 8], strides = [1, 1]} : vector<16x96xf32> to vector<8x8xf32>
    %556 = arith.truncf %555 : vector<8x8xf32> to vector<8x8xbf16>
    %557 = vector.extract_strided_slice %418 {offsets = [8, 88], sizes = [8, 8], strides = [1, 1]} : vector<16x96xf32> to vector<8x8xf32>
    %558 = arith.truncf %557 : vector<8x8xf32> to vector<8x8xbf16>
    %cst_162 = arith.constant dense<0.000000e+00> : vector<8x8xf32>
    %559 = tpu.matmul %554, %556, %cst_162 {dimension_numbers = #tpu.dot_dimension_numbers<[1], [1], [0], [0], [0, 0, 1, 0], [], []>} : vector<8x8xbf16>, vector<8x8xbf16>, vector<8x8xf32> -> vector<8x8xf32>
    %cst_163 = arith.constant dense<0xFF800000> : vector<8xf32>
    %560 = vector.multi_reduction <maximumf>, %559, %cst_163 [1] : vector<8x8xf32> to vector<8xf32>
    %561 = vector.shape_cast %560 : vector<8xf32> to vector<8x1xf32>
    %562 = vector.broadcast %561 : vector<8x1xf32> to vector<8x8xf32>
    %563 = arith.subf %559, %562 : vector<8x8xf32>
    %564 = math.exp %563 : vector<8x8xf32>
    %cst_164 = arith.constant dense<0.000000e+00> : vector<8xf32>
    %565 = vector.multi_reduction <add>, %564, %cst_164 [1] : vector<8x8xf32> to vector<8xf32>
    %566 = vector.shape_cast %565 : vector<8xf32> to vector<8x1xf32>
    %567 = tpu.reciprocal %566 : vector<8x1xf32> -> vector<8x1xf32>
    %568 = arith.truncf %564 : vector<8x8xf32> to vector<8x8xbf16>
    %cst_165 = arith.constant dense<0.000000e+00> : vector<8x8xf32>
    %569 = tpu.matmul %568, %558, %cst_165 {dimension_numbers = #tpu.dot_dimension_numbers<[1], [0], [0], [1], [0, 0, 1, 1], [], []>} : vector<8x8xbf16>, vector<8x8xbf16>, vector<8x8xf32> -> vector<8x8xf32>
    %570 = vector.broadcast %567 : vector<8x1xf32> to vector<8x8xf32>
    %571 = arith.mulf %569, %570 : vector<8x8xf32>
    %572 = tpu.concatenate %514, %533, %552, %571 in 1 : vector<8x8xf32>, vector<8x8xf32>, vector<8x8xf32>, vector<8x8xf32> -> vector<8x32xf32>
    %573 = tpu.concatenate %495, %572 in 0 : vector<8x32xf32>, vector<8x32xf32> -> vector<16x32xf32>
    %574 = arith.truncf %573 : vector<16x32xf32> to vector<16x32xbf16>
    %c2_166 = arith.constant 2 : index
    %c0_167 = arith.constant 0 : index
    %c0_168 = arith.constant 0 : index
    %575 = vector.load %arg4[%c2_166, %c0_167, %c0_168] : memref<3x32x32xbf16, #tpu.memory_space<vmem>>, vector<1x32x32xbf16>
    %576 = vector.shape_cast %575 : vector<1x32x32xbf16> to vector<32x32xbf16>
    %cst_169 = arith.constant dense<0.000000e+00> : vector<16x32xf32>
    %577 = tpu.matmul %574, %576, %cst_169 {dimension_numbers = #tpu.dot_dimension_numbers<[1], [0], [0], [1], [0, 0, 1, 1], [], []>} : vector<16x32xbf16>, vector<32x32xbf16>, vector<16x32xf32> -> vector<16x32xf32>
    %c2_170 = arith.constant 2 : index
    %c0_171 = arith.constant 0 : index
    %c0_172 = arith.constant 0 : index
    %578 = vector.load %arg5[%c2_170, %c0_171, %c0_172] : memref<3x1x32xf32, #tpu.memory_space<vmem>>, vector<1x1x32xf32>
    %579 = vector.shape_cast %578 : vector<1x1x32xf32> to vector<1x32xf32>
    %580 = vector.broadcast %579 : vector<1x32xf32> to vector<16x32xf32>
    %581 = arith.addf %577, %580 : vector<16x32xf32>
    %582 = arith.addf %410, %581 : vector<16x32xf32>
    %c1_173 = arith.constant 1 : index
    %c0_174 = arith.constant 0 : index
    %c0_175 = arith.constant 0 : index
    %583 = vector.load %arg10[%c1_173, %c0_174, %c0_175] : memref<2x1x32xf32, #tpu.memory_space<vmem>>, vector<1x1x32xf32>
    %584 = vector.shape_cast %583 : vector<1x1x32xf32> to vector<1x32xf32>
    %c1_176 = arith.constant 1 : index
    %c0_177 = arith.constant 0 : index
    %c0_178 = arith.constant 0 : index
    %585 = vector.load %arg11[%c1_176, %c0_177, %c0_178] : memref<2x1x32xf32, #tpu.memory_space<vmem>>, vector<1x1x32xf32>
    %586 = vector.shape_cast %585 : vector<1x1x32xf32> to vector<1x32xf32>
    %cst_179 = arith.constant dense<0.000000e+00> : vector<16xf32>
    %587 = vector.multi_reduction <add>, %582, %cst_179 [1] : vector<16x32xf32> to vector<16xf32>
    %588 = vector.shape_cast %587 : vector<16xf32> to vector<16x1xf32>
    %cst_180 = arith.constant 3.200000e+01 : f32
    %589 = vector.broadcast %cst_180 : f32 to vector<16x1xf32>
    %590 = arith.divf %588, %589 : vector<16x1xf32>
    %591 = vector.broadcast %590 : vector<16x1xf32> to vector<16x32xf32>
    %592 = arith.subf %582, %591 : vector<16x32xf32>
    %593 = arith.mulf %592, %592 : vector<16x32xf32>
    %cst_181 = arith.constant dense<0.000000e+00> : vector<16xf32>
    %594 = vector.multi_reduction <add>, %593, %cst_181 [1] : vector<16x32xf32> to vector<16xf32>
    %595 = vector.shape_cast %594 : vector<16xf32> to vector<16x1xf32>
    %cst_182 = arith.constant 3.200000e+01 : f32
    %596 = vector.broadcast %cst_182 : f32 to vector<16x1xf32>
    %597 = arith.divf %595, %596 : vector<16x1xf32>
    %cst_183 = arith.constant 9.99999974E-6 : f32
    %598 = vector.broadcast %cst_183 : f32 to vector<16x1xf32>
    %599 = arith.addf %597, %598 : vector<16x1xf32>
    %600 = math.rsqrt %599 : vector<16x1xf32>
    %601 = vector.broadcast %600 : vector<16x1xf32> to vector<16x32xf32>
    %602 = arith.mulf %592, %601 : vector<16x32xf32>
    %603 = vector.broadcast %584 : vector<1x32xf32> to vector<16x32xf32>
    %604 = arith.mulf %602, %603 : vector<16x32xf32>
    %605 = vector.broadcast %586 : vector<1x32xf32> to vector<16x32xf32>
    %606 = arith.addf %604, %605 : vector<16x32xf32>
    %607 = arith.truncf %606 : vector<16x32xf32> to vector<16x32xbf16>
    %c1_184 = arith.constant 1 : index
    %c0_185 = arith.constant 0 : index
    %c0_186 = arith.constant 0 : index
    %608 = vector.load %arg6[%c1_184, %c0_185, %c0_186] : memref<2x32x64xbf16, #tpu.memory_space<vmem>>, vector<1x32x64xbf16>
    %609 = vector.shape_cast %608 : vector<1x32x64xbf16> to vector<32x64xbf16>
    %cst_187 = arith.constant dense<0.000000e+00> : vector<16x64xf32>
    %610 = tpu.matmul %607, %609, %cst_187 {dimension_numbers = #tpu.dot_dimension_numbers<[1], [0], [0], [1], [0, 0, 1, 1], [], []>} : vector<16x32xbf16>, vector<32x64xbf16>, vector<16x64xf32> -> vector<16x64xf32>
    %c1_188 = arith.constant 1 : index
    %c0_189 = arith.constant 0 : index
    %c0_190 = arith.constant 0 : index
    %611 = vector.load %arg7[%c1_188, %c0_189, %c0_190] : memref<2x1x64xf32, #tpu.memory_space<vmem>>, vector<1x1x64xf32>
    %612 = vector.shape_cast %611 : vector<1x1x64xf32> to vector<1x64xf32>
    %613 = vector.broadcast %612 : vector<1x64xf32> to vector<16x64xf32>
    %614 = arith.addf %610, %613 : vector<16x64xf32>
    %cst_191 = arith.constant 0.000000e+00 : f32
    %615 = vector.broadcast %cst_191 : f32 to vector<16x64xf32>
    %616 = arith.maximumf %614, %615 : vector<16x64xf32>
    %617 = arith.truncf %616 : vector<16x64xf32> to vector<16x64xbf16>
    %c1_192 = arith.constant 1 : index
    %c0_193 = arith.constant 0 : index
    %c0_194 = arith.constant 0 : index
    %618 = vector.load %arg8[%c1_192, %c0_193, %c0_194] : memref<2x64x32xbf16, #tpu.memory_space<vmem>>, vector<1x64x32xbf16>
    %619 = vector.shape_cast %618 : vector<1x64x32xbf16> to vector<64x32xbf16>
    %cst_195 = arith.constant dense<0.000000e+00> : vector<16x32xf32>
    %620 = tpu.matmul %617, %619, %cst_195 {dimension_numbers = #tpu.dot_dimension_numbers<[1], [0], [0], [1], [0, 0, 1, 1], [], []>} : vector<16x64xbf16>, vector<64x32xbf16>, vector<16x32xf32> -> vector<16x32xf32>
    %c1_196 = arith.constant 1 : index
    %c0_197 = arith.constant 0 : index
    %c0_198 = arith.constant 0 : index
    %621 = vector.load %arg9[%c1_196, %c0_197, %c0_198] : memref<2x1x32xf32, #tpu.memory_space<vmem>>, vector<1x1x32xf32>
    %622 = vector.shape_cast %621 : vector<1x1x32xf32> to vector<1x32xf32>
    %623 = vector.broadcast %622 : vector<1x32xf32> to vector<16x32xf32>
    %624 = arith.addf %620, %623 : vector<16x32xf32>
    %625 = arith.addf %606, %624 : vector<16x32xf32>
    %c1_199 = arith.constant 1 : index
    %c0_200 = arith.constant 0 : index
    %c0_201 = arith.constant 0 : index
    %626 = vector.load %arg12[%c1_199, %c0_200, %c0_201] : memref<2x1x32xf32, #tpu.memory_space<vmem>>, vector<1x1x32xf32>
    %627 = vector.shape_cast %626 : vector<1x1x32xf32> to vector<1x32xf32>
    %c1_202 = arith.constant 1 : index
    %c0_203 = arith.constant 0 : index
    %c0_204 = arith.constant 0 : index
    %628 = vector.load %arg13[%c1_202, %c0_203, %c0_204] : memref<2x1x32xf32, #tpu.memory_space<vmem>>, vector<1x1x32xf32>
    %629 = vector.shape_cast %628 : vector<1x1x32xf32> to vector<1x32xf32>
    %cst_205 = arith.constant dense<0.000000e+00> : vector<16xf32>
    %630 = vector.multi_reduction <add>, %625, %cst_205 [1] : vector<16x32xf32> to vector<16xf32>
    %631 = vector.shape_cast %630 : vector<16xf32> to vector<16x1xf32>
    %cst_206 = arith.constant 3.200000e+01 : f32
    %632 = vector.broadcast %cst_206 : f32 to vector<16x1xf32>
    %633 = arith.divf %631, %632 : vector<16x1xf32>
    %634 = vector.broadcast %633 : vector<16x1xf32> to vector<16x32xf32>
    %635 = arith.subf %625, %634 : vector<16x32xf32>
    %636 = arith.mulf %635, %635 : vector<16x32xf32>
    %cst_207 = arith.constant dense<0.000000e+00> : vector<16xf32>
    %637 = vector.multi_reduction <add>, %636, %cst_207 [1] : vector<16x32xf32> to vector<16xf32>
    %638 = vector.shape_cast %637 : vector<16xf32> to vector<16x1xf32>
    %cst_208 = arith.constant 3.200000e+01 : f32
    %639 = vector.broadcast %cst_208 : f32 to vector<16x1xf32>
    %640 = arith.divf %638, %639 : vector<16x1xf32>
    %cst_209 = arith.constant 9.99999974E-6 : f32
    %641 = vector.broadcast %cst_209 : f32 to vector<16x1xf32>
    %642 = arith.addf %640, %641 : vector<16x1xf32>
    %643 = math.rsqrt %642 : vector<16x1xf32>
    %644 = vector.broadcast %643 : vector<16x1xf32> to vector<16x32xf32>
    %645 = arith.mulf %635, %644 : vector<16x32xf32>
    %646 = vector.broadcast %627 : vector<1x32xf32> to vector<16x32xf32>
    %647 = arith.mulf %645, %646 : vector<16x32xf32>
    %648 = vector.broadcast %629 : vector<1x32xf32> to vector<16x32xf32>
    %649 = arith.addf %647, %648 : vector<16x32xf32>
    %650 = vector.extract_strided_slice %649 {offsets = [7, 0], sizes = [1, 32], strides = [1, 1]} : vector<16x32xf32> to vector<1x32xf32>
    %651 = vector.extract_strided_slice %649 {offsets = [15, 0], sizes = [1, 32], strides = [1, 1]} : vector<16x32xf32> to vector<1x32xf32>
    %652 = tpu.concatenate %650, %651 in 0 : vector<1x32xf32>, vector<1x32xf32> -> vector<2x32xf32>
    %653 = arith.truncf %652 : vector<2x32xf32> to vector<2x32xbf16>
    %c0_210 = arith.constant 0 : index
    %c0_211 = arith.constant 0 : index
    %654 = vector.load %arg14[%c0_210, %c0_211] : memref<32x64xbf16, #tpu.memory_space<vmem>>, vector<32x64xbf16>
    %cst_212 = arith.constant dense<0.000000e+00> : vector<2x64xf32>
    %655 = tpu.matmul %653, %654, %cst_212 {dimension_numbers = #tpu.dot_dimension_numbers<[1], [0], [0], [1], [0, 0, 1, 1], [], []>} : vector<2x32xbf16>, vector<32x64xbf16>, vector<2x64xf32> -> vector<2x64xf32>
    %c0_213 = arith.constant 0 : index
    %c0_214 = arith.constant 0 : index
    %656 = vector.load %arg15[%c0_213, %c0_214] : memref<1x64xf32, #tpu.memory_space<vmem>>, vector<1x64xf32>
    %657 = vector.broadcast %656 : vector<1x64xf32> to vector<2x64xf32>
    %658 = arith.addf %655, %657 : vector<2x64xf32>
    %cst_215 = arith.constant 0.000000e+00 : f32
    %659 = vector.broadcast %cst_215 : f32 to vector<2x64xf32>
    %660 = arith.maximumf %658, %659 : vector<2x64xf32>
    %661 = arith.truncf %660 : vector<2x64xf32> to vector<2x64xbf16>
    %c0_216 = arith.constant 0 : index
    %c0_217 = arith.constant 0 : index
    %662 = vector.load %arg16[%c0_216, %c0_217] : memref<64x128xbf16, #tpu.memory_space<vmem>>, vector<64x128xbf16>
    %cst_218 = arith.constant dense<0.000000e+00> : vector<2x128xf32>
    %663 = tpu.matmul %661, %662, %cst_218 {dimension_numbers = #tpu.dot_dimension_numbers<[1], [0], [0], [1], [0, 0, 1, 1], [], []>} : vector<2x64xbf16>, vector<64x128xbf16>, vector<2x128xf32> -> vector<2x128xf32>
    %c0_219 = arith.constant 0 : index
    %c0_220 = arith.constant 0 : index
    %664 = vector.load %arg17[%c0_219, %c0_220] : memref<1x128xf32, #tpu.memory_space<vmem>>, vector<1x128xf32>
    %665 = vector.broadcast %664 : vector<1x128xf32> to vector<2x128xf32>
    %666 = arith.addf %663, %665 : vector<2x128xf32>
    %667 = vector.shape_cast %666 : vector<2x128xf32> to vector<2x1x128xf32>
    %c0_221 = arith.constant 0 : index
    %c0_222 = arith.constant 0 : index
    %c0_223 = arith.constant 0 : index
    %668 = vector.load %arg18[%c0_221, %c0_222, %c0_223] : memref<2x1x128xf32, #tpu.memory_space<vmem>>, vector<2x1x128xf32>
    tpu.vector_store %arg18[%c0_221, %c0_222, %c0_223], %667 {strides = array<i32>} : memref<2x1x128xf32, #tpu.memory_space<vmem>>, vector<2x1x128xf32>,
    return
  }
  func.func @transform_0(%arg0: i32) -> (i32, i32) {
    %c0_i32 = arith.constant 0 : i32
    %c0_i32_0 = arith.constant 0 : i32
    return %arg0, %c0_i32 : i32, i32
  }
  func.func @transform_1(%arg0: i32) -> (i32, i32, i32) {
    %c0_i32 = arith.constant 0 : i32
    %c0_i32_0 = arith.constant 0 : i32
    %c0_i32_1 = arith.constant 0 : i32
    %c0_i32_2 = arith.constant 0 : i32
    return %c0_i32, %c0_i32_0, %c0_i32_1 : i32, i32, i32
  }
  func.func @transform_2(%arg0: i32) -> (i32, i32, i32) {
    %c0_i32 = arith.constant 0 : i32
    %c0_i32_0 = arith.constant 0 : i32
    %c0_i32_1 = arith.constant 0 : i32
    %c0_i32_2 = arith.constant 0 : i32
    return %c0_i32, %c0_i32_0, %c0_i32_1 : i32, i32, i32
  }
  func.func @transform_3(%arg0: i32) -> (i32, i32, i32) {
    %c0_i32 = arith.constant 0 : i32
    %c0_i32_0 = arith.constant 0 : i32
    %c0_i32_1 = arith.constant 0 : i32
    %c0_i32_2 = arith.constant 0 : i32
    return %c0_i32, %c0_i32_0, %c0_i32_1 : i32, i32, i32
  }
  func.func @transform_4(%arg0: i32) -> (i32, i32, i32) {
    %c0_i32 = arith.constant 0 : i32
    %c0_i32_0 = arith.constant 0 : i32
    %c0_i32_1 = arith.constant 0 : i32
    %c0_i32_2 = arith.constant 0 : i32
    return %c0_i32, %c0_i32_0, %c0_i32_1 : i32, i32, i32
  }
  func.func @transform_5(%arg0: i32) -> (i32, i32, i32) {
    %c0_i32 = arith.constant 0 : i32
    %c0_i32_0 = arith.constant 0 : i32
    %c0_i32_1 = arith.constant 0 : i32
    %c0_i32_2 = arith.constant 0 : i32
    return %c0_i32, %c0_i32_0, %c0_i32_1 : i32, i32, i32
  }
  func.func @transform_6(%arg0: i32) -> (i32, i32, i32) {
    %c0_i32 = arith.constant 0 : i32
    %c0_i32_0 = arith.constant 0 : i32
    %c0_i32_1 = arith.constant 0 : i32
    %c0_i32_2 = arith.constant 0 : i32
    return %c0_i32, %c0_i32_0, %c0_i32_1 : i32, i32, i32
  }
  func.func @transform_7(%arg0: i32) -> (i32, i32, i32) {
    %c0_i32 = arith.constant 0 : i32
    %c0_i32_0 = arith.constant 0 : i32
    %c0_i32_1 = arith.constant 0 : i32
    %c0_i32_2 = arith.constant 0 : i32
    return %c0_i32, %c0_i32_0, %c0_i32_1 : i32, i32, i32
  }
  func.func @transform_8(%arg0: i32) -> (i32, i32, i32) {
    %c0_i32 = arith.constant 0 : i32
    %c0_i32_0 = arith.constant 0 : i32
    %c0_i32_1 = arith.constant 0 : i32
    %c0_i32_2 = arith.constant 0 : i32
    return %c0_i32, %c0_i32_0, %c0_i32_1 : i32, i32, i32
  }
  func.func @transform_9(%arg0: i32) -> (i32, i32, i32) {
    %c0_i32 = arith.constant 0 : i32
    %c0_i32_0 = arith.constant 0 : i32
    %c0_i32_1 = arith.constant 0 : i32
    %c0_i32_2 = arith.constant 0 : i32
    return %c0_i32, %c0_i32_0, %c0_i32_1 : i32, i32, i32
  }
  func.func @transform_10(%arg0: i32) -> (i32, i32, i32) {
    %c0_i32 = arith.constant 0 : i32
    %c0_i32_0 = arith.constant 0 : i32
    %c0_i32_1 = arith.constant 0 : i32
    %c0_i32_2 = arith.constant 0 : i32
    return %c0_i32, %c0_i32_0, %c0_i32_1 : i32, i32, i32
  }
  func.func @transform_11(%arg0: i32) -> (i32, i32, i32) {
    %c0_i32 = arith.constant 0 : i32
    %c0_i32_0 = arith.constant 0 : i32
    %c0_i32_1 = arith.constant 0 : i32
    %c0_i32_2 = arith.constant 0 : i32
    return %c0_i32, %c0_i32_0, %c0_i32_1 : i32, i32, i32
  }
  func.func @transform_12(%arg0: i32) -> (i32, i32, i32) {
    %c0_i32 = arith.constant 0 : i32
    %c0_i32_0 = arith.constant 0 : i32
    %c0_i32_1 = arith.constant 0 : i32
    %c0_i32_2 = arith.constant 0 : i32
    return %c0_i32, %c0_i32_0, %c0_i32_1 : i32, i32, i32
  }
  func.func @transform_13(%arg0: i32) -> (i32, i32) {
    %c0_i32 = arith.constant 0 : i32
    %c0_i32_0 = arith.constant 0 : i32
    %c0_i32_1 = arith.constant 0 : i32
    return %c0_i32, %c0_i32_0 : i32, i32
  }
  func.func @transform_14(%arg0: i32) -> (i32, i32) {
    %c0_i32 = arith.constant 0 : i32
    %c0_i32_0 = arith.constant 0 : i32
    %c0_i32_1 = arith.constant 0 : i32
    return %c0_i32, %c0_i32_0 : i32, i32
  }
  func.func @transform_15(%arg0: i32) -> (i32, i32) {
    %c0_i32 = arith.constant 0 : i32
    %c0_i32_0 = arith.constant 0 : i32
    %c0_i32_1 = arith.constant 0 : i32
    return %c0_i32, %c0_i32_0 : i32, i32
  }
  func.func @transform_16(%arg0: i32) -> (i32, i32) {
    %c0_i32 = arith.constant 0 : i32
    %c0_i32_0 = arith.constant 0 : i32
    %c0_i32_1 = arith.constant 0 : i32
    return %c0_i32, %c0_i32_0 : i32, i32
  }
  func.func @transform_17(%arg0: i32) -> (i32, i32, i32) {
    %c0_i32 = arith.constant 0 : i32
    %c0_i32_0 = arith.constant 0 : i32
    %c0_i32_1 = arith.constant 0 : i32
    return %arg0, %c0_i32, %c0_i32_0 : i32, i32, i32
  }
}

</mosaic_0001>

<llo_original>
// kernel: transformer_forward.1
$region0: #{transformer_forward.1}
  #allocation0 [shape = 'u32[]', space=smem, size = 0x4, offset = 0x4, fixed_abs, tag = 'smem constant byte address 0x4 - core index']
  #allocation1 [shape = 'u32[72,128]{1,0:T(1,128)}', space=vmem, size = 0x9000, scoped, tag = 'internal scratch']
  %s0 = inlined_call_operand.hbm [shape: f32[16,32], index: 0, kind: input, shape index: {}]
  %s1 = inlined_call_operand.vmem [shape: bf16[3,32,96], index: 1, kind: input, shape index: {}]
  %s2 = inlined_call_operand.hbm [shape: f32[3,1,96], index: 2, kind: input, shape index: {}]
  %s3 = inlined_call_operand.vmem [shape: bf16[3,32,32], index: 3, kind: input, shape index: {}]
  %s4 = inlined_call_operand.hbm [shape: f32[3,1,32], index: 4, kind: input, shape index: {}]
  %s5 = inlined_call_operand.hbm [shape: bf16[2,32,64], index: 5, kind: input, shape index: {}]
  %s6 = inlined_call_operand.vmem [shape: f32[2,1,64], index: 6, kind: input, shape index: {}]
  %s7 = inlined_call_operand.vmem [shape: bf16[2,64,32], index: 7, kind: input, shape index: {}]
  %s8 = inlined_call_operand.vmem [shape: f32[2,1,32], index: 8, kind: input, shape index: {}]
  %s9 = inlined_call_operand.vmem [shape: f32[2,1,32], index: 9, kind: input, shape index: {}]
  %s10 = inlined_call_operand.vmem [shape: f32[2,1,32], index: 10, kind: input, shape index: {}]
  %s11 = inlined_call_operand.vmem [shape: f32[2,1,32], index: 11, kind: input, shape index: {}]
  %s12 = inlined_call_operand.vmem [shape: f32[2,1,32], index: 12, kind: input, shape index: {}]
  %s13 = inlined_call_operand.hbm [shape: bf16[32,64], index: 13, kind: input, shape index: {}]
  %s14 = inlined_call_operand.vmem [shape: f32[1,64], index: 14, kind: input, shape index: {}]
  %s15 = inlined_call_operand.hbm [shape: bf16[64,128], index: 15, kind: input, shape index: {}]
  %s16 = inlined_call_operand.hbm [shape: f32[1,128], index: 16, kind: input, shape index: {}]
  %s17 = inlined_call_operand.hbm [shape: f32[2,1,128], index: 17, kind: output, shape index: {}]
  %s18 = sld [smem:[#allocation0]]
  $region106: #{transformer_forward.1} parent=0
    _
  %s20 = ssub.s32 1, %s18
  %s21 = scalar_select 0, %s20, %s18
  $region1: #{transformer_forward.1} parent=0
    #allocation2 [shape = 'u8[8192]{0}', space=vmem, size = 0x2000, scoped, tag = 'input window, operand 0, single buffered']
    #allocation3 [shape = 's32[1]{0}', space=sflag, size = 0x4, scoped, tag = 'scoped memory for transformer_forward.1']
    #allocation4 [shape = 's32[1]{0}', space=sflag, size = 0x4, scoped, tag = 'scoped memory for transformer_forward.1']
    #allocation5 [shape = 'u8[1536]{0}', space=vmem, size = 0x800, scoped, tag = 'input window, operand 2, single buffered']
    #allocation6 [shape = 's32[1]{0}', space=sflag, size = 0x4, scoped, tag = 'scoped memory for transformer_forward.1']
    #allocation7 [shape = 'u8[1536]{0}', space=vmem, size = 0x800, scoped, tag = 'input window, operand 4, single buffered']
    #allocation8 [shape = 'u8[16384]{0}', space=vmem, size = 0x4000, scoped, tag = 'input window, operand 5, single buffered']
    #allocation9 [shape = 's32[1]{0}', space=sflag, size = 0x4, scoped, tag = 'scoped memory for transformer_forward.1']
    #allocation10 [shape = 'u8[8192]{0}', space=vmem, size = 0x2000, scoped, tag = 'input window, operand 13, single buffered']
    #allocation11 [shape = 'u8[16384]{0}', space=vmem, size = 0x4000, scoped, tag = 'input window, operand 15, single buffered']
    #allocation12 [shape = 's32[1]{0}', space=sflag, size = 0x4, scoped, tag = 'scoped memory for transformer_forward.1']
    #allocation13 [shape = 'u8[512]{0}', space=vmem, size = 0x400, scoped, tag = 'input window, operand 16, single buffered']
    #allocation14 [shape = 'u8[1024]{0}', space=vmem, size = 0x400, scoped, tag = 'output window, operand 0, single buffered']
    %22 = vsyncpa [#allocation3], 0
    %23 = vsyncpa [#allocation6], 0
    %24 = vsyncpa [#allocation9], 0
    %25 = vsyncpa [#allocation12], 0
    %26 = vsyncpa [#allocation4], 0
    // Predicated region
    $region2: #{transformer_forward.1} parent=1 // pred_check
      _
    $region3: #{transformer_forward.1} parent=1 // pred_check_branch
      %28 = sbr.rel (0) target = $region5
    $region4: #{transformer_forward.1} parent=1 // pred_region
      %30 = vsyncadd [#allocation3], 0
      %s31 = sshll.u32 %s0, 4
      %s32 = int_to_ptr.hbm [resolvable:$true] %s31
      %s33 = sshll.u32 [#allocation2], 4
      %s34 = int_to_ptr.vmem [resolvable:$true] %s33
      %39 = dma.hbm_to_vmem [thread:$0]  %s32, 256, %s34, [#allocation3], 128, 128, 8
    $region5: #{transformer_forward.1} parent=1 // pred_fallthru
      _
    // Predicated region
    $region6: #{transformer_forward.1} parent=1 // pred_check
      _
    $region7: #{transformer_forward.1} parent=1 // pred_check_branch
      %41 = sbr.rel (0) target = $region9
    $region8: #{transformer_forward.1} parent=1 // pred_region
      _
    $region9: #{transformer_forward.1} parent=1 // pred_fallthru
      _
    // Predicated region
    $region10: #{transformer_forward.1} parent=1 // pred_check
      _
    $region11: #{transformer_forward.1} parent=1 // pred_check_branch
      %43 = sbr.rel (0) target = $region13
    $region12: #{transformer_forward.1} parent=1 // pred_region
      %45 = vsyncadd [#allocation6], 0
      %s46 = sshll.u32 %s2, 4
      %s47 = int_to_ptr.hbm [resolvable:$true] %s46
      %s48 = sshll.u32 [#allocation5], 4
      %s49 = int_to_ptr.vmem [resolvable:$true] %s48
      %54 = dma.hbm_to_vmem [thread:$0]  %s47, 48, %s49, [#allocation6], 16, 16, 1
    $region13: #{transformer_forward.1} parent=1 // pred_fallthru
      _
    // Predicated region
    $region14: #{transformer_forward.1} parent=1 // pred_check
      _
    $region15: #{transformer_forward.1} parent=1 // pred_check_branch
      %56 = sbr.rel (0) target = $region17
    $region16: #{transformer_forward.1} parent=1 // pred_region
      _
    $region17: #{transformer_forward.1} parent=1 // pred_fallthru
      _
    // Predicated region
    $region18: #{transformer_forward.1} parent=1 // pred_check
      _
    $region19: #{transformer_forward.1} parent=1 // pred_check_branch
      %58 = sbr.rel (0) target = $region21
    $region20: #{transformer_forward.1} parent=1 // pred_region
      %60 = vsyncadd [#allocation6], 0
      %s61 = sshll.u32 %s4, 4
      %s62 = int_to_ptr.hbm [resolvable:$true] %s61
      %s63 = sshll.u32 [#allocation7], 4
      %s64 = int_to_ptr.vmem [resolvable:$true] %s63
      %69 = dma.hbm_to_vmem [thread:$0]  %s62, 48, %s64, [#allocation6], 16, 16, 1
    $region21: #{transformer_forward.1} parent=1 // pred_fallthru
      _
    // Predicated region
    $region22: #{transformer_forward.1} parent=1 // pred_check
      _
    $region23: #{transformer_forward.1} parent=1 // pred_check_branch
      %71 = sbr.rel (0) target = $region25
    $region24: #{transformer_forward.1} parent=1 // pred_region
      %73 = vsyncadd [#allocation9], 0
      %s74 = sshll.u32 %s5, 4
      %s75 = int_to_ptr.hbm [resolvable:$true] %s74
      %s76 = sshll.u32 [#allocation8], 4
      %s77 = int_to_ptr.vmem [resolvable:$true] %s76
      %82 = dma.hbm_to_vmem [thread:$0]  %s75, 512, %s77, [#allocation9], 64, 64, 4
    $region25: #{transformer_forward.1} parent=1 // pred_fallthru
      _
    // Predicated region
    $region26: #{transformer_forward.1} parent=1 // pred_check
      _
    $region27: #{transformer_forward.1} parent=1 // pred_check_branch
      %84 = sbr.rel (0) target = $region29
    $region28: #{transformer_forward.1} parent=1 // pred_region
      _
    $region29: #{transformer_forward.1} parent=1 // pred_fallthru
      _
    // Predicated region
    $region30: #{transformer_forward.1} parent=1 // pred_check
      _
    $region31: #{transformer_forward.1} parent=1 // pred_check_branch
      %86 = sbr.rel (0) target = $region33
    $region32: #{transformer_forward.1} parent=1 // pred_region
      _
    $region33: #{transformer_forward.1} parent=1 // pred_fallthru
      _
    // Predicated region
    $region34: #{transformer_forward.1} parent=1 // pred_check
      _
    $region35: #{transformer_forward.1} parent=1 // pred_check_branch
      %88 = sbr.rel (0) target = $region37
    $region36: #{transformer_forward.1} parent=1 // pred_region
      _
    $region37: #{transformer_forward.1} parent=1 // pred_fallthru
      _
    // Predicated region
    $region38: #{transformer_forward.1} parent=1 // pred_check
      _
    $region39: #{transformer_forward.1} parent=1 // pred_check_branch
      %90 = sbr.rel (0) target = $region41
    $region40: #{transformer_forward.1} parent=1 // pred_region
      _
    $region41: #{transformer_forward.1} parent=1 // pred_fallthru
      _
    // Predicated region
    $region42: #{transformer_forward.1} parent=1 // pred_check
      _
    $region43: #{transformer_forward.1} parent=1 // pred_check_branch
      %92 = sbr.rel (0) target = $region45
    $region44: #{transformer_forward.1} parent=1 // pred_region
      _
    $region45: #{transformer_forward.1} parent=1 // pred_fallthru
      _
    // Predicated region
    $region46: #{transformer_forward.1} parent=1 // pred_check
      _
    $region47: #{transformer_forward.1} parent=1 // pred_check_branch
      %94 = sbr.rel (0) target = $region49
    $region48: #{transformer_forward.1} parent=1 // pred_region
      _
    $region49: #{transformer_forward.1} parent=1 // pred_fallthru
      _
    // Predicated region
    $region50: #{transformer_forward.1} parent=1 // pred_check
      _
    $region51: #{transformer_forward.1} parent=1 // pred_check_branch
      %96 = sbr.rel (0) target = $region53
    $region52: #{transformer_forward.1} parent=1 // pred_region
      _
    $region53: #{transformer_forward.1} parent=1 // pred_fallthru
      _
    // Predicated region
    $region54: #{transformer_forward.1} parent=1 // pred_check
      _
    $region55: #{transformer_forward.1} parent=1 // pred_check_branch
      %98 = sbr.rel (0) target = $region57
    $region56: #{transformer_forward.1} parent=1 // pred_region
      %100 = vsyncadd [#allocation9], 0
      %s101 = sshll.u32 %s13, 4
      %s102 = int_to_ptr.hbm [resolvable:$true] %s101
      %s103 = sshll.u32 [#allocation10], 4
      %s104 = int_to_ptr.vmem [resolvable:$true] %s103
      %109 = dma.hbm_to_vmem [thread:$0]  %s102, 256, %s104, [#allocation9], 64, 64, 4
    $region57: #{transformer_forward.1} parent=1 // pred_fallthru
      _
    // Predicated region
    $region58: #{transformer_forward.1} parent=1 // pred_check
      _
    $region59: #{transformer_forward.1} parent=1 // pred_check_branch
      %111 = sbr.rel (0) target = $region61
    $region60: #{transformer_forward.1} parent=1 // pred_region
      _
    $region61: #{transformer_forward.1} parent=1 // pred_fallthru
      _
    // Predicated region
    $region62: #{transformer_forward.1} parent=1 // pred_check
      _
    $region63: #{transformer_forward.1} parent=1 // pred_check_branch
      %113 = sbr.rel (0) target = $region65
    $region64: #{transformer_forward.1} parent=1 // pred_region
      %115 = vsyncadd [#allocation12], 0
      %s116 = sshll.u32 %s15, 4
      %s117 = int_to_ptr.hbm [resolvable:$true] %s116
      %s118 = sshll.u32 [#allocation11], 4
      %s119 = int_to_ptr.vmem [resolvable:$true] %s118
      %124 = dma.hbm_to_vmem [thread:$0]  %s117, 512, %s119, [#allocation12], 64, 64, 4
    $region65: #{transformer_forward.1} parent=1 // pred_fallthru
      _
    // Predicated region
    $region66: #{transformer_forward.1} parent=1 // pred_check
      _
    $region67: #{transformer_forward.1} parent=1 // pred_check_branch
      %126 = sbr.rel (0) target = $region69
    $region68: #{transformer_forward.1} parent=1 // pred_region
      %128 = vsyncadd [#allocation12], 0
      %s130 = sshll.u32 %s16, 4
      %s131 = int_to_ptr.hbm [resolvable:$true] %s130
      %s132 = sshll.u32 [#allocation13], 4
      %s133 = int_to_ptr.vmem [resolvable:$true] %s132
      %135 = dma.hbm_to_vmem [thread:$0]  %s131, 16, %s133, [#allocation12]
    $region69: #{transformer_forward.1} parent=1 // pred_fallthru
      _
    // Predicated region
    $region70: #{transformer_forward.1} parent=1 // pred_check
      _
    $region71: #{transformer_forward.1} parent=1 // pred_check_branch
      %137 = sbr.rel (0) target = $region73
    $region72: #{transformer_forward.1} parent=1 // pred_region
      %139 = dma.done [#allocation3], 256
    $region73: #{transformer_forward.1} parent=1 // pred_fallthru
      _
    // Predicated region
    $region74: #{transformer_forward.1} parent=1 // pred_check
      _
    $region75: #{transformer_forward.1} parent=1 // pred_check_branch
      %141 = sbr.rel (0) target = $region77
    $region76: #{transformer_forward.1} parent=1 // pred_region
      %143 = dma.done [#allocation6], 48
    $region77: #{transformer_forward.1} parent=1 // pred_fallthru
      _
    // Predicated region
    $region78: #{transformer_forward.1} parent=1 // pred_check
      _
    $region79: #{transformer_forward.1} parent=1 // pred_check_branch
      %145 = sbr.rel (0) target = $region81
    $region80: #{transformer_forward.1} parent=1 // pred_region
      %147 = dma.done [#allocation6], 48
    $region81: #{transformer_forward.1} parent=1 // pred_fallthru
      _
    // Predicated region
    $region82: #{transformer_forward.1} parent=1 // pred_check
      _
    $region83: #{transformer_forward.1} parent=1 // pred_check_branch
      %149 = sbr.rel (0) target = $region85
    $region84: #{transformer_forward.1} parent=1 // pred_region
      %151 = dma.done [#allocation9], 512
    $region85: #{transformer_forward.1} parent=1 // pred_fallthru
      _
    // Predicated region
    $region86: #{transformer_forward.1} parent=1 // pred_check
      _
    $region87: #{transformer_forward.1} parent=1 // pred_check_branch
      %153 = sbr.rel (0) target = $region89
    $region88: #{transformer_forward.1} parent=1 // pred_region
      %155 = dma.done [#allocation9], 256
    $region89: #{transformer_forward.1} parent=1 // pred_fallthru
      _
    // Predicated region
    $region90: #{transformer_forward.1} parent=1 // pred_check
      _
    $region91: #{transformer_forward.1} parent=1 // pred_check_branch
      %157 = sbr.rel (0) target = $region93
    $region92: #{transformer_forward.1} parent=1 // pred_region
      %159 = dma.done [#allocation12], 512
    $region93: #{transformer_forward.1} parent=1 // pred_fallthru
      _
    // Predicated region
    $region94: #{transformer_forward.1} parent=1 // pred_check
      _
    $region95: #{transformer_forward.1} parent=1 // pred_check_branch
      %161 = sbr.rel (0) target = $region97
    $region96: #{transformer_forward.1} parent=1 // pred_region
      %163 = dma.done [#allocation12], 16
    $region97: #{transformer_forward.1} parent=1 // pred_fallthru
      _
    %v165 = vld [vmem:[#allocation2] sm:$0xff]
    %v166 = vld [vmem:[#allocation2 + $0x8] sm:$0xff]
    %v167 = vpack.c.bf16 %v166, %v165
    %v168 = vld [vmem:[%s1] sm:$0xf]
    %v169 = vld [vmem:[%s1 + $0x4] sm:$0xf]
    %v170 = vld [vmem:[%s1 + $0x8] sm:$0xf]
    %v171 = vld [vmem:[%s1 + $0xc] sm:$0xf]
    %v172 = vld [vmem:[#allocation5] sm:$0x1]
    %v174 = vperm.slane %v172, 0
    %v180 = vunpack.c.l.b16 %v168
    %v181 = vunpack.c.l.b16 %v169
    %v182 = vunpack.c.l.b16 %v170
    %v183 = vunpack.c.l.b16 %v171
    %v184 = vpack.c.b16 %v181, %v180
    %v185 = vpack.c.b16 %v183, %v182
    %vm188 = vcmask 261120
    %v190 = vsel %vm188, %v167, 0
    %192 = vmatpush.bf16.msra.mxu0 0
    %193 = vmatpush.bf16.msra.mxu0 0
    %194 = vmatpush.bf16.msra.mxu0 0
    %195 = vmatpush.bf16.msra.mxu0 0
    %196 = vmatpush.bf16.msra.mxu0 0
    %197 = vmatpush.bf16.msra.mxu0 0
    %198 = vmatpush.bf16.msra.mxu0 %v185
    %199 = vmatpush.bf16.msra.mxu0 %v184
    %200 = vmatmul.bf16.gmra.mxu0 %v190
    %v201 = vpop.f32.mrf.mxu0
    %v202 = vadd.f32 %v174, %v201
    %v203 = vpop.f32.mrf.mxu0
    %v204 = vadd.f32 %v174, %v203
    %205 = vdwg.mxu0
    %v206 = vpack.c.bf16 %v202, %v202
    %208 = vrot.lane.b32.xlu0 %v206, 96
    %v209 = vpop.permute.xlu0 %208
    %vm210 = vcmask 64512
    %v212 = vsel %vm210, %v206, 0
    %v215 = vsel %vm210, %v209, 0
    %217 = vmatpush.bf16.xpose.msra.mxu0 0
    %218 = vmatpush.bf16.xpose.msra.mxu0 0
    %219 = vmatpush.bf16.xpose.msra.mxu0 0
    %220 = vmatpush.bf16.xpose.msra.mxu0 0
    %221 = vmatpush.bf16.xpose.msra.mxu0 0
    %222 = vmatpush.bf16.xpose.msra.mxu0 0
    %223 = vmatpush.bf16.xpose.msra.mxu0 0
    %224 = vmatpush.bf16.xpose.msra.mxu0 %v215
    %225 = vmatmul.bf16.gmra.mxu0 %v212
    %v226 = vpop.f32.mrf.mxu0
    %v227 = vadd.f32 0.0, %v226
    %v228 = vpop.f32.mrf.mxu0
    %229 = vdwg.mxu0
    %v230 = vsel %vm210, %v227, -inf
    %231 = vmax.xlane.f32.xlu0 %v230
    %v232 = vpop.xlane.xlu0 %231
    %v233 = vsub.f32 %v227, %v232
    %v234 = vmul.f32 %v233, 1.442695
    %v235 = vpow.pop %v234
    %v236 = vsel %vm210, %v235, 0.0
    %237 = vadd.xlane.f32.xlu0 %v236
    %v238 = vpop.xlane.xlu0 %237
    %v239 = vrcp.pop %v238
    %v240 = vmul.f32 %v238, %v239
    %v241 = vsub.f32 1.0, %v240
    %v242 = vmul.f32 %v239, %v241
    %v243 = vadd.f32 %v239, %v242
    %vm244 = vweird.f32 %v238
    %vm245 = vweird.f32 %v239
    %vm246 = vmor %vm244, %vm245
    %v247 = vsel %vm246, %v239, %v243
    %v248 = vand.u32 2147483647, %v238
    %vm249 = vcmp.eq.f32.partialorder %v248, 8.507059e+37
    %v250 = vand.u32 %v238, 2147483648
    %v251 = vor.u32 1.1754944e-38, %v250
    %v252 = vsel %vm249, %v251, %v247
    %v253 = vpack.c.bf16 %v235, %v235
    %254 = vrot.lane.b32.xlu0 %v206, 64
    %v255 = vpop.permute.xlu0 %254
    %v257 = vsel %vm210, %v253, 0
    %vm259 = vcmask 1043456
    %v261 = vsel %vm259, %v255, 0
    %263 = vmatpush.bf16.msra.mxu0 0
    %264 = vmatpush.bf16.msra.mxu0 0
    %265 = vmatpush.bf16.msra.mxu0 0
    %266 = vmatpush.bf16.msra.mxu0 0
    %267 = vmatpush.bf16.msra.mxu0 0
    %268 = vmatpush.bf16.msra.mxu0 0
    %269 = vmatpush.bf16.msra.mxu0 0
    %270 = vmatpush.bf16.msra.mxu0 %v261
    %271 = vmatmul.bf16.gmra.mxu0 %v257
    %v272 = vpop.f32.mrf.mxu0
    %v273 = vadd.f32 0.0, %v272
    %v274 = vpop.f32.mrf.mxu0
    %275 = vdwg.mxu0
    %v276 = vmul.f32 %v273, %v252
    %277 = vrot.lane.b32.xlu0 %v206, 120
    %v278 = vpop.permute.xlu0 %277
    %279 = vrot.lane.b32.xlu0 %v206, 88
    %v280 = vpop.permute.xlu0 %279
    %v282 = vsel %vm210, %v278, 0
    %v285 = vsel %vm210, %v280, 0
    %287 = vmatpush.bf16.xpose.msra.mxu0 0
    %288 = vmatpush.bf16.xpose.msra.mxu0 0
    %289 = vmatpush.bf16.xpose.msra.mxu0 0
    %290 = vmatpush.bf16.xpose.msra.mxu0 0
    %291 = vmatpush.bf16.xpose.msra.mxu0 0
    %292 = vmatpush.bf16.xpose.msra.mxu0 0
    %293 = vmatpush.bf16.xpose.msra.mxu0 0
    %294 = vmatpush.bf16.xpose.msra.mxu0 %v285
    %295 = vmatmul.bf16.gmra.mxu0 %v282
    %v296 = vpop.f32.mrf.mxu0
    %v297 = vadd.f32 0.0, %v296
    %v298 = vpop.f32.mrf.mxu0
    %299 = vdwg.mxu0
    %v300 = vsel %vm210, %v297, -inf
    %301 = vmax.xlane.f32.xlu0 %v300
    %v302 = vpop.xlane.xlu0 %301
    %v303 = vsub.f32 %v297, %v302
    %v304 = vmul.f32 %v303, 1.442695
    %v305 = vpow.pop %v304
    %v306 = vsel %vm210, %v305, 0.0
    %307 = vadd.xlane.f32.xlu0 %v306
    %v308 = vpop.xlane.xlu0 %307
    %v309 = vrcp.pop %v308
    %v310 = vmul.f32 %v308, %v309
    %v311 = vsub.f32 1.0, %v310
    %v312 = vmul.f32 %v309, %v311
    %v313 = vadd.f32 %v309, %v312
    %vm314 = vweird.f32 %v308
    %vm315 = vweird.f32 %v309
    %vm316 = vmor %vm314, %vm315
    %v317 = vsel %vm316, %v309, %v313
    %v318 = vand.u32 2147483647, %v308
    %vm319 = vcmp.eq.f32.partialorder %v318, 8.507059e+37
    %v320 = vand.u32 %v308, 2147483648
    %v321 = vor.u32 1.1754944e-38, %v320
    %v322 = vsel %vm319, %v321, %v317
    %v323 = vpack.c.bf16 %v305, %v305
    %324 = vrot.lane.b32.xlu0 %v206, 56
    %v325 = vpop.permute.xlu0 %324
    %v327 = vsel %vm210, %v323, 0
    %v330 = vsel %vm259, %v325, 0
    %332 = vmatpush.bf16.msra.mxu0 0
    %333 = vmatpush.bf16.msra.mxu0 0
    %334 = vmatpush.bf16.msra.mxu0 0
    %335 = vmatpush.bf16.msra.mxu0 0
    %336 = vmatpush.bf16.msra.mxu0 0
    %337 = vmatpush.bf16.msra.mxu0 0
    %338 = vmatpush.bf16.msra.mxu0 0
    %339 = vmatpush.bf16.msra.mxu0 %v330
    %340 = vmatmul.bf16.gmra.mxu0 %v327
    %v341 = vpop.f32.mrf.mxu0
    %v342 = vadd.f32 0.0, %v341
    %v343 = vpop.f32.mrf.mxu0
    %344 = vdwg.mxu0
    %v345 = vmul.f32 %v342, %v322
    %346 = vrot.lane.b32.xlu0 %v206, 112
    %v347 = vpop.permute.xlu0 %346
    %348 = vrot.lane.b32.xlu0 %v206, 80
    %v349 = vpop.permute.xlu0 %348
    %v351 = vsel %vm210, %v347, 0
    %v354 = vsel %vm210, %v349, 0
    %356 = vmatpush.bf16.xpose.msra.mxu0 0
    %357 = vmatpush.bf16.xpose.msra.mxu0 0
    %358 = vmatpush.bf16.xpose.msra.mxu0 0
    %359 = vmatpush.bf16.xpose.msra.mxu0 0
    %360 = vmatpush.bf16.xpose.msra.mxu0 0
    %361 = vmatpush.bf16.xpose.msra.mxu0 0
    %362 = vmatpush.bf16.xpose.msra.mxu0 0
    %363 = vmatpush.bf16.xpose.msra.mxu0 %v354
    %364 = vmatmul.bf16.gmra.mxu0 %v351
    %v365 = vpop.f32.mrf.mxu0
    %v366 = vadd.f32 0.0, %v365
    %v367 = vpop.f32.mrf.mxu0
    %368 = vdwg.mxu0
    %v369 = vsel %vm210, %v366, -inf
    %370 = vmax.xlane.f32.xlu0 %v369
    %v371 = vpop.xlane.xlu0 %370
    %v372 = vsub.f32 %v366, %v371
    %v373 = vmul.f32 %v372, 1.442695
    %v374 = vpow.pop %v373
    %v375 = vsel %vm210, %v374, 0.0
    %376 = vadd.xlane.f32.xlu0 %v375
    %v377 = vpop.xlane.xlu0 %376
    %v378 = vrcp.pop %v377
    %v379 = vmul.f32 %v377, %v378
    %v380 = vsub.f32 1.0, %v379
    %v381 = vmul.f32 %v378, %v380
    %v382 = vadd.f32 %v378, %v381
    %vm383 = vweird.f32 %v377
    %vm384 = vweird.f32 %v378
    %vm385 = vmor %vm383, %vm384
    %v386 = vsel %vm385, %v378, %v382
    %v387 = vand.u32 2147483647, %v377
    %vm388 = vcmp.eq.f32.partialorder %v387, 8.507059e+37
    %v389 = vand.u32 %v377, 2147483648
    %v390 = vor.u32 1.1754944e-38, %v389
    %v391 = vsel %vm388, %v390, %v386
    %v392 = vpack.c.bf16 %v374, %v374
    %393 = vrot.lane.b32.xlu0 %v206, 48
    %v394 = vpop.permute.xlu0 %393
    %v396 = vsel %vm210, %v392, 0
    %v399 = vsel %vm259, %v394, 0
    %401 = vmatpush.bf16.msra.mxu0 0
    %402 = vmatpush.bf16.msra.mxu0 0
    %403 = vmatpush.bf16.msra.mxu0 0
    %404 = vmatpush.bf16.msra.mxu0 0
    %405 = vmatpush.bf16.msra.mxu0 0
    %406 = vmatpush.bf16.msra.mxu0 0
    %407 = vmatpush.bf16.msra.mxu0 0
    %408 = vmatpush.bf16.msra.mxu0 %v399
    %409 = vmatmul.bf16.gmra.mxu0 %v396
    %v410 = vpop.f32.mrf.mxu0
    %v411 = vadd.f32 0.0, %v410
    %v412 = vpop.f32.mrf.mxu0
    %413 = vdwg.mxu0
    %v414 = vmul.f32 %v411, %v391
    %415 = vrot.lane.b32.xlu0 %v206, 104
    %v416 = vpop.permute.xlu0 %415
    %417 = vrot.lane.b32.xlu0 %v206, 72
    %v418 = vpop.permute.xlu0 %417
    %v420 = vsel %vm210, %v416, 0
    %v423 = vsel %vm210, %v418, 0
    %425 = vmatpush.bf16.xpose.msra.mxu0 0
    %426 = vmatpush.bf16.xpose.msra.mxu0 0
    %427 = vmatpush.bf16.xpose.msra.mxu0 0
    %428 = vmatpush.bf16.xpose.msra.mxu0 0
    %429 = vmatpush.bf16.xpose.msra.mxu0 0
    %430 = vmatpush.bf16.xpose.msra.mxu0 0
    %431 = vmatpush.bf16.xpose.msra.mxu0 0
    %432 = vmatpush.bf16.xpose.msra.mxu0 %v423
    %433 = vmatmul.bf16.gmra.mxu0 %v420
    %v434 = vpop.f32.mrf.mxu0
    %v435 = vadd.f32 0.0, %v434
    %v436 = vpop.f32.mrf.mxu0
    %437 = vdwg.mxu0
    %v438 = vsel %vm210, %v435, -inf
    %439 = vmax.xlane.f32.xlu0 %v438
    %v440 = vpop.xlane.xlu0 %439
    %v441 = vsub.f32 %v435, %v440
    %v442 = vmul.f32 %v441, 1.442695
    %v443 = vpow.pop %v442
    %v444 = vsel %vm210, %v443, 0.0
    %445 = vadd.xlane.f32.xlu0 %v444
    %v446 = vpop.xlane.xlu0 %445
    %v447 = vrcp.pop %v446
    %v448 = vmul.f32 %v446, %v447
    %v449 = vsub.f32 1.0, %v448
    %v450 = vmul.f32 %v447, %v449
    %v451 = vadd.f32 %v447, %v450
    %vm452 = vweird.f32 %v446
    %vm453 = vweird.f32 %v447
    %vm454 = vmor %vm452, %vm453
    %v455 = vsel %vm454, %v447, %v451
    %v456 = vand.u32 2147483647, %v446
    %vm457 = vcmp.eq.f32.partialorder %v456, 8.507059e+37
    %v458 = vand.u32 %v446, 2147483648
    %v459 = vor.u32 1.1754944e-38, %v458
    %v460 = vsel %vm457, %v459, %v455
    %v461 = vpack.c.bf16 %v443, %v443
    %462 = vrot.lane.b32.xlu0 %v206, 40
    %v463 = vpop.permute.xlu0 %462
    %v465 = vsel %vm210, %v461, 0
    %v468 = vsel %vm259, %v463, 0
    %470 = vmatpush.bf16.msra.mxu0 0
    %471 = vmatpush.bf16.msra.mxu0 0
    %472 = vmatpush.bf16.msra.mxu0 0
    %473 = vmatpush.bf16.msra.mxu0 0
    %474 = vmatpush.bf16.msra.mxu0 0
    %475 = vmatpush.bf16.msra.mxu0 0
    %476 = vmatpush.bf16.msra.mxu0 0
    %477 = vmatpush.bf16.msra.mxu0 %v468
    %478 = vmatmul.bf16.gmra.mxu0 %v465
    %v479 = vpop.f32.mrf.mxu0
    %v480 = vadd.f32 0.0, %v479
    %v481 = vpop.f32.mrf.mxu0
    %482 = vdwg.mxu0
    %v483 = vmul.f32 %v480, %v460
    %485 = vrot.lane.b32.xlu0 %v345, 8
    %v486 = vpop.permute.xlu0 %485
    %489 = vrot.lane.b32.xlu0 %v414, 16
    %v490 = vpop.permute.xlu0 %489
    %493 = vrot.lane.b32.xlu0 %v483, 24
    %v494 = vpop.permute.xlu0 %493
    %v496 = vsel %vm210, %v276, %v486
    %vm497 = vcmask 130048
    %v498 = vsel %vm497, %v496, %v490
    %vm499 = vcmask 195584
    %v500 = vsel %vm499, %v498, %v494
    %v501 = vpack.c.bf16 %v204, %v204
    %503 = vrot.lane.b32.xlu0 %v501, 96
    %v504 = vpop.permute.xlu0 %503
    %v506 = vsel %vm210, %v501, 0
    %v509 = vsel %vm210, %v504, 0
    %511 = vmatpush.bf16.xpose.msra.mxu0 0
    %512 = vmatpush.bf16.xpose.msra.mxu0 0
    %513 = vmatpush.bf16.xpose.msra.mxu0 0
    %514 = vmatpush.bf16.xpose.msra.mxu0 0
    %515 = vmatpush.bf16.xpose.msra.mxu0 0
    %516 = vmatpush.bf16.xpose.msra.mxu0 0
    %517 = vmatpush.bf16.xpose.msra.mxu0 0
    %518 = vmatpush.bf16.xpose.msra.mxu0 %v509
    %519 = vmatmul.bf16.gmra.mxu0 %v506
    %v520 = vpop.f32.mrf.mxu0
    %v521 = vadd.f32 0.0, %v520
    %v522 = vpop.f32.mrf.mxu0
    %523 = vdwg.mxu0
    %v524 = vsel %vm210, %v521, -inf
    %525 = vmax.xlane.f32.xlu0 %v524
    %v526 = vpop.xlane.xlu0 %525
    %v527 = vsub.f32 %v521, %v526
    %v528 = vmul.f32 %v527, 1.442695
    %v529 = vpow.pop %v528
    %v530 = vsel %vm210, %v529, 0.0
    %531 = vadd.xlane.f32.xlu0 %v530
    %v532 = vpop.xlane.xlu0 %531
    %v533 = vrcp.pop %v532
    %v534 = vmul.f32 %v532, %v533
    %v535 = vsub.f32 1.0, %v534
    %v536 = vmul.f32 %v533, %v535
    %v537 = vadd.f32 %v533, %v536
    %vm538 = vweird.f32 %v532
    %vm539 = vweird.f32 %v533
    %vm540 = vmor %vm538, %vm539
    %v541 = vsel %vm540, %v533, %v537
    %v542 = vand.u32 2147483647, %v532
    %vm543 = vcmp.eq.f32.partialorder %v542, 8.507059e+37
    %v544 = vand.u32 %v532, 2147483648
    %v545 = vor.u32 1.1754944e-38, %v544
    %v546 = vsel %vm543, %v545, %v541
    %v547 = vpack.c.bf16 %v529, %v529
    %548 = vrot.lane.b32.xlu0 %v501, 64
    %v549 = vpop.permute.xlu0 %548
    %v551 = vsel %vm210, %v547, 0
    %v554 = vsel %vm259, %v549, 0
    %556 = vmatpush.bf16.msra.mxu0 0
    %557 = vmatpush.bf16.msra.mxu0 0
    %558 = vmatpush.bf16.msra.mxu0 0
    %559 = vmatpush.bf16.msra.mxu0 0
    %560 = vmatpush.bf16.msra.mxu0 0
    %561 = vmatpush.bf16.msra.mxu0 0
    %562 = vmatpush.bf16.msra.mxu0 0
    %563 = vmatpush.bf16.msra.mxu0 %v554
    %564 = vmatmul.bf16.gmra.mxu0 %v551
    %v565 = vpop.f32.mrf.mxu0
    %v566 = vadd.f32 0.0, %v565
    %v567 = vpop.f32.mrf.mxu0
    %568 = vdwg.mxu0
    %v569 = vmul.f32 %v566, %v546
    %570 = vrot.lane.b32.xlu0 %v501, 120
    %v571 = vpop.permute.xlu0 %570
    %572 = vrot.lane.b32.xlu0 %v501, 88
    %v573 = vpop.permute.xlu0 %572
    %v575 = vsel %vm210, %v571, 0
    %v578 = vsel %vm210, %v573, 0
    %580 = vmatpush.bf16.xpose.msra.mxu0 0
    %581 = vmatpush.bf16.xpose.msra.mxu0 0
    %582 = vmatpush.bf16.xpose.msra.mxu0 0
    %583 = vmatpush.bf16.xpose.msra.mxu0 0
    %584 = vmatpush.bf16.xpose.msra.mxu0 0
    %585 = vmatpush.bf16.xpose.msra.mxu0 0
    %586 = vmatpush.bf16.xpose.msra.mxu0 0
    %587 = vmatpush.bf16.xpose.msra.mxu0 %v578
    %588 = vmatmul.bf16.gmra.mxu0 %v575
    %v589 = vpop.f32.mrf.mxu0
    %v590 = vadd.f32 0.0, %v589
    %v591 = vpop.f32.mrf.mxu0
    %592 = vdwg.mxu0
    %v593 = vsel %vm210, %v590, -inf
    %594 = vmax.xlane.f32.xlu0 %v593
    %v595 = vpop.xlane.xlu0 %594
    %v596 = vsub.f32 %v590, %v595
    %v597 = vmul.f32 %v596, 1.442695
    %v598 = vpow.pop %v597
    %v599 = vsel %vm210, %v598, 0.0
    %600 = vadd.xlane.f32.xlu0 %v599
    %v601 = vpop.xlane.xlu0 %600
    %v602 = vrcp.pop %v601
    %v603 = vmul.f32 %v601, %v602
    %v604 = vsub.f32 1.0, %v603
    %v605 = vmul.f32 %v602, %v604
    %v606 = vadd.f32 %v602, %v605
    %vm607 = vweird.f32 %v601
    %vm608 = vweird.f32 %v602
    %vm609 = vmor %vm607, %vm608
    %v610 = vsel %vm609, %v602, %v606
    %v611 = vand.u32 2147483647, %v601
    %vm612 = vcmp.eq.f32.partialorder %v611, 8.507059e+37
    %v613 = vand.u32 %v601, 2147483648
    %v614 = vor.u32 1.1754944e-38, %v613
    %v615 = vsel %vm612, %v614, %v610
    %v616 = vpack.c.bf16 %v598, %v598
    %617 = vrot.lane.b32.xlu0 %v501, 56
    %v618 = vpop.permute.xlu0 %617
    %v620 = vsel %vm210, %v616, 0
    %v623 = vsel %vm259, %v618, 0
    %625 = vmatpush.bf16.msra.mxu0 0
    %626 = vmatpush.bf16.msra.mxu0 0
    %627 = vmatpush.bf16.msra.mxu0 0
    %628 = vmatpush.bf16.msra.mxu0 0
    %629 = vmatpush.bf16.msra.mxu0 0
    %630 = vmatpush.bf16.msra.mxu0 0
    %631 = vmatpush.bf16.msra.mxu0 0
    %632 = vmatpush.bf16.msra.mxu0 %v623
    %633 = vmatmul.bf16.gmra.mxu0 %v620
    %v634 = vpop.f32.mrf.mxu0
    %v635 = vadd.f32 0.0, %v634
    %v636 = vpop.f32.mrf.mxu0
    %637 = vdwg.mxu0
    %v638 = vmul.f32 %v635, %v615
    %639 = vrot.lane.b32.xlu0 %v501, 112
    %v640 = vpop.permute.xlu0 %639
    %641 = vrot.lane.b32.xlu0 %v501, 80
    %v642 = vpop.permute.xlu0 %641
    %v644 = vsel %vm210, %v640, 0
    %v647 = vsel %vm210, %v642, 0
    %649 = vmatpush.bf16.xpose.msra.mxu0 0
    %650 = vmatpush.bf16.xpose.msra.mxu0 0
    %651 = vmatpush.bf16.xpose.msra.mxu0 0
    %652 = vmatpush.bf16.xpose.msra.mxu0 0
    %653 = vmatpush.bf16.xpose.msra.mxu0 0
    %654 = vmatpush.bf16.xpose.msra.mxu0 0
    %655 = vmatpush.bf16.xpose.msra.mxu0 0
    %656 = vmatpush.bf16.xpose.msra.mxu0 %v647
    %657 = vmatmul.bf16.gmra.mxu0 %v644
    %v658 = vpop.f32.mrf.mxu0
    %v659 = vadd.f32 0.0, %v658
    %v660 = vpop.f32.mrf.mxu0
    %661 = vdwg.mxu0
    %v662 = vsel %vm210, %v659, -inf
    %663 = vmax.xlane.f32.xlu0 %v662
    %v664 = vpop.xlane.xlu0 %663
    %v665 = vsub.f32 %v659, %v664
    %v666 = vmul.f32 %v665, 1.442695
    %v667 = vpow.pop %v666
    %v668 = vsel %vm210, %v667, 0.0
    %669 = vadd.xlane.f32.xlu0 %v668
    %v670 = vpop.xlane.xlu0 %669
    %v671 = vrcp.pop %v670
    %v672 = vmul.f32 %v670, %v671
    %v673 = vsub.f32 1.0, %v672
    %v674 = vmul.f32 %v671, %v673
    %v675 = vadd.f32 %v671, %v674
    %vm676 = vweird.f32 %v670
    %vm677 = vweird.f32 %v671
    %vm678 = vmor %vm676, %vm677
    %v679 = vsel %vm678, %v671, %v675
    %v680 = vand.u32 2147483647, %v670
    %vm681 = vcmp.eq.f32.partialorder %v680, 8.507059e+37
    %v682 = vand.u32 %v670, 2147483648
    %v683 = vor.u32 1.1754944e-38, %v682
    %v684 = vsel %vm681, %v683, %v679
    %v685 = vpack.c.bf16 %v667, %v667
    %686 = vrot.lane.b32.xlu0 %v501, 48
    %v687 = vpop.permute.xlu0 %686
    %v689 = vsel %vm210, %v685, 0
    %v692 = vsel %vm259, %v687, 0
    %694 = vmatpush.bf16.msra.mxu0 0
    %695 = vmatpush.bf16.msra.mxu0 0
    %696 = vmatpush.bf16.msra.mxu0 0
    %697 = vmatpush.bf16.msra.mxu0 0
    %698 = vmatpush.bf16.msra.mxu0 0
    %699 = vmatpush.bf16.msra.mxu0 0
    %700 = vmatpush.bf16.msra.mxu0 0
    %701 = vmatpush.bf16.msra.mxu0 %v692
    %702 = vmatmul.bf16.gmra.mxu0 %v689
    %v703 = vpop.f32.mrf.mxu0
    %v704 = vadd.f32 0.0, %v703
    %v705 = vpop.f32.mrf.mxu0
    %706 = vdwg.mxu0
    %v707 = vmul.f32 %v704, %v684
    %708 = vrot.lane.b32.xlu0 %v501, 104
    %v709 = vpop.permute.xlu0 %708
    %710 = vrot.lane.b32.xlu0 %v501, 72
    %v711 = vpop.permute.xlu0 %710
    %v713 = vsel %vm210, %v709, 0
    %v716 = vsel %vm210, %v711, 0
    %718 = vmatpush.bf16.xpose.msra.mxu0 0
    %719 = vmatpush.bf16.xpose.msra.mxu0 0
    %720 = vmatpush.bf16.xpose.msra.mxu0 0
    %721 = vmatpush.bf16.xpose.msra.mxu0 0
    %722 = vmatpush.bf16.xpose.msra.mxu0 0
    %723 = vmatpush.bf16.xpose.msra.mxu0 0
    %724 = vmatpush.bf16.xpose.msra.mxu0 0
    %725 = vmatpush.bf16.xpose.msra.mxu0 %v716
    %726 = vmatmul.bf16.gmra.mxu0 %v713
    %v727 = vpop.f32.mrf.mxu0
    %v728 = vadd.f32 0.0, %v727
    %v729 = vpop.f32.mrf.mxu0
    %730 = vdwg.mxu0
    %v731 = vsel %vm210, %v728, -inf
    %732 = vmax.xlane.f32.xlu0 %v731
    %v733 = vpop.xlane.xlu0 %732
    %v734 = vsub.f32 %v728, %v733
    %v735 = vmul.f32 %v734, 1.442695
    %v736 = vpow.pop %v735
    %v737 = vsel %vm210, %v736, 0.0
    %738 = vadd.xlane.f32.xlu0 %v737
    %v739 = vpop.xlane.xlu0 %738
    %v740 = vrcp.pop %v739
    %v741 = vmul.f32 %v739, %v740
    %v742 = vsub.f32 1.0, %v741
    %v743 = vmul.f32 %v740, %v742
    %v744 = vadd.f32 %v740, %v743
    %vm745 = vweird.f32 %v739
    %vm746 = vweird.f32 %v740
    %vm747 = vmor %vm745, %vm746
    %v748 = vsel %vm747, %v740, %v744
    %v749 = vand.u32 2147483647, %v739
    %vm750 = vcmp.eq.f32.partialorder %v749, 8.507059e+37
    %v751 = vand.u32 %v739, 2147483648
    %v752 = vor.u32 1.1754944e-38, %v751
    %v753 = vsel %vm750, %v752, %v748
    %v754 = vpack.c.bf16 %v736, %v736
    %755 = vrot.lane.b32.xlu0 %v501, 40
    %v756 = vpop.permute.xlu0 %755
    %v758 = vsel %vm210, %v754, 0
    %v761 = vsel %vm259, %v756, 0
    %763 = vmatpush.bf16.msra.mxu0 0
    %764 = vmatpush.bf16.msra.mxu0 0
    %765 = vmatpush.bf16.msra.mxu0 0
    %766 = vmatpush.bf16.msra.mxu0 0
    %767 = vmatpush.bf16.msra.mxu0 0
    %768 = vmatpush.bf16.msra.mxu0 0
    %769 = vmatpush.bf16.msra.mxu0 0
    %770 = vmatpush.bf16.msra.mxu0 %v761
    %771 = vmatmul.bf16.gmra.mxu0 %v758
    %v772 = vpop.f32.mrf.mxu0
    %v773 = vadd.f32 0.0, %v772
    %v774 = vpop.f32.mrf.mxu0
    %775 = vdwg.mxu0
    %v776 = vmul.f32 %v773, %v753
    %778 = vrot.lane.b32.xlu0 %v638, 8
    %v779 = vpop.permute.xlu0 %778
    %782 = vrot.lane.b32.xlu0 %v707, 16
    %v783 = vpop.permute.xlu0 %782
    %786 = vrot.lane.b32.xlu0 %v776, 24
    %v787 = vpop.permute.xlu0 %786
    %v789 = vsel %vm210, %v569, %v779
    %v790 = vsel %vm497, %v789, %v783
    %v791 = vsel %vm499, %v790, %v787
    %v792 = vpack.c.bf16 %v791, %v500
    %v793 = vld [vmem:[%s3] sm:$0xf]
    %v794 = vld [vmem:[%s3 + $0x4] sm:$0xf]
    %v795 = vld [vmem:[%s3 + $0x8] sm:$0xf]
    %v796 = vld [vmem:[%s3 + $0xc] sm:$0xf]
    %v797 = vld [vmem:[#allocation7] sm:$0x1]
    %v799 = vperm.slane %v797, 0
    %v805 = vunpack.c.l.b16 %v793
    %v806 = vunpack.c.l.b16 %v794
    %v807 = vunpack.c.l.b16 %v795
    %v808 = vunpack.c.l.b16 %v796
    %v809 = vpack.c.b16 %v806, %v805
    %v810 = vpack.c.b16 %v808, %v807
    %v814 = vsel %vm188, %v792, 0
    %816 = vmatpush.bf16.msra.mxu0 0
    %817 = vmatpush.bf16.msra.mxu0 0
    %818 = vmatpush.bf16.msra.mxu0 0
    %819 = vmatpush.bf16.msra.mxu0 0
    %820 = vmatpush.bf16.msra.mxu0 0
    %821 = vmatpush.bf16.msra.mxu0 0
    %822 = vmatpush.bf16.msra.mxu0 %v810
    %823 = vmatpush.bf16.msra.mxu0 %v809
    %824 = vmatmul.bf16.gmra.mxu0 %v814
    %v825 = vpop.f32.mrf.mxu0
    %v826 = vadd.f32 %v799, %v825
    %v827 = vpop.f32.mrf.mxu0
    %v828 = vadd.f32 %v799, %v827
    %829 = vdwg.mxu0
    %v830 = vpack.c.bf16 %v828, %v826
    %s831 = scalar_lea.vmem %s1, 16
    %v832 = vld [vmem:[%s831] sm:$0xf]
    %v833 = vld [vmem:[%s831 + $0x4] sm:$0xf]
    %v834 = vld [vmem:[%s831 + $0x8] sm:$0xf]
    %v835 = vld [vmem:[%s831 + $0xc] sm:$0xf]
    %s836 = scalar_lea.vmem [#allocation5], 1
    %v837 = vld [vmem:[%s836] sm:$0x1]
    %v839 = vperm.slane %v837, 0
    %v845 = vunpack.c.l.b16 %v832
    %v846 = vunpack.c.l.b16 %v833
    %v847 = vunpack.c.l.b16 %v834
    %v848 = vunpack.c.l.b16 %v835
    %v849 = vpack.c.b16 %v846, %v845
    %v850 = vpack.c.b16 %v848, %v847
    %v854 = vsel %vm188, %v830, 0
    %856 = vmatpush.bf16.msra.mxu0 0
    %857 = vmatpush.bf16.msra.mxu0 0
    %858 = vmatpush.bf16.msra.mxu0 0
    %859 = vmatpush.bf16.msra.mxu0 0
    %860 = vmatpush.bf16.msra.mxu0 0
    %861 = vmatpush.bf16.msra.mxu0 0
    %862 = vmatpush.bf16.msra.mxu0 %v850
    %863 = vmatpush.bf16.msra.mxu0 %v849
    %864 = vmatmul.bf16.gmra.mxu0 %v854
    %v865 = vpop.f32.mrf.mxu0
    %v866 = vadd.f32 %v839, %v865
    %v867 = vpop.f32.mrf.mxu0
    %v868 = vadd.f32 %v839, %v867
    %869 = vdwg.mxu0
    %v870 = vpack.c.bf16 %v866, %v866
    %872 = vrot.lane.b32.xlu0 %v870, 96
    %v873 = vpop.permute.xlu0 %872
    %v875 = vsel %vm210, %v870, 0
    %v878 = vsel %vm210, %v873, 0
    %880 = vmatpush.bf16.xpose.msra.mxu0 0
    %881 = vmatpush.bf16.xpose.msra.mxu0 0
    %882 = vmatpush.bf16.xpose.msra.mxu0 0
    %883 = vmatpush.bf16.xpose.msra.mxu0 0
    %884 = vmatpush.bf16.xpose.msra.mxu0 0
    %885 = vmatpush.bf16.xpose.msra.mxu0 0
    %886 = vmatpush.bf16.xpose.msra.mxu0 0
    %887 = vmatpush.bf16.xpose.msra.mxu0 %v878
    %888 = vmatmul.bf16.gmra.mxu0 %v875
    %v889 = vpop.f32.mrf.mxu0
    %v890 = vadd.f32 0.0, %v889
    %v891 = vpop.f32.mrf.mxu0
    %892 = vdwg.mxu0
    %v893 = vsel %vm210, %v890, -inf
    %894 = vmax.xlane.f32.xlu0 %v893
    %v895 = vpop.xlane.xlu0 %894
    %v896 = vsub.f32 %v890, %v895
    %v897 = vmul.f32 %v896, 1.442695
    %v898 = vpow.pop %v897
    %v899 = vsel %vm210, %v898, 0.0
    %900 = vadd.xlane.f32.xlu0 %v899
    %v901 = vpop.xlane.xlu0 %900
    %v902 = vrcp.pop %v901
    %v903 = vmul.f32 %v901, %v902
    %v904 = vsub.f32 1.0, %v903
    %v905 = vmul.f32 %v902, %v904
    %v906 = vadd.f32 %v902, %v905
    %vm907 = vweird.f32 %v901
    %vm908 = vweird.f32 %v902
    %vm909 = vmor %vm907, %vm908
    %v910 = vsel %vm909, %v902, %v906
    %v911 = vand.u32 2147483647, %v901
    %vm912 = vcmp.eq.f32.partialorder %v911, 8.507059e+37
    %v913 = vand.u32 %v901, 2147483648
    %v914 = vor.u32 1.1754944e-38, %v913
    %v915 = vsel %vm912, %v914, %v910
    %v916 = vpack.c.bf16 %v898, %v898
    %917 = vrot.lane.b32.xlu0 %v870, 64
    %v918 = vpop.permute.xlu0 %917
    %v920 = vsel %vm210, %v916, 0
    %v923 = vsel %vm259, %v918, 0
    %925 = vmatpush.bf16.msra.mxu0 0
    %926 = vmatpush.bf16.msra.mxu0 0
    %927 = vmatpush.bf16.msra.mxu0 0
    %928 = vmatpush.bf16.msra.mxu0 0
    %929 = vmatpush.bf16.msra.mxu0 0
    %930 = vmatpush.bf16.msra.mxu0 0
    %931 = vmatpush.bf16.msra.mxu0 0
    %932 = vmatpush.bf16.msra.mxu0 %v923
    %933 = vmatmul.bf16.gmra.mxu0 %v920
    %v934 = vpop.f32.mrf.mxu0
    %v935 = vadd.f32 0.0, %v934
    %v936 = vpop.f32.mrf.mxu0
    %937 = vdwg.mxu0
    %v938 = vmul.f32 %v935, %v915
    %939 = vrot.lane.b32.xlu0 %v870, 120
    %v940 = vpop.permute.xlu0 %939
    %941 = vrot.lane.b32.xlu0 %v870, 88
    %v942 = vpop.permute.xlu0 %941
    %v944 = vsel %vm210, %v940, 0
    %v947 = vsel %vm210, %v942, 0
    %949 = vmatpush.bf16.xpose.msra.mxu0 0
    %950 = vmatpush.bf16.xpose.msra.mxu0 0
    %951 = vmatpush.bf16.xpose.msra.mxu0 0
    %952 = vmatpush.bf16.xpose.msra.mxu0 0
    %953 = vmatpush.bf16.xpose.msra.mxu0 0
    %954 = vmatpush.bf16.xpose.msra.mxu0 0
    %955 = vmatpush.bf16.xpose.msra.mxu0 0
    %956 = vmatpush.bf16.xpose.msra.mxu0 %v947
    %957 = vmatmul.bf16.gmra.mxu0 %v944
    %v958 = vpop.f32.mrf.mxu0
    %v959 = vadd.f32 0.0, %v958
    %v960 = vpop.f32.mrf.mxu0
    %961 = vdwg.mxu0
    %v962 = vsel %vm210, %v959, -inf
    %963 = vmax.xlane.f32.xlu0 %v962
    %v964 = vpop.xlane.xlu0 %963
    %v965 = vsub.f32 %v959, %v964
    %v966 = vmul.f32 %v965, 1.442695
    %v967 = vpow.pop %v966
    %v968 = vsel %vm210, %v967, 0.0
    %969 = vadd.xlane.f32.xlu0 %v968
    %v970 = vpop.xlane.xlu0 %969
    %v971 = vrcp.pop %v970
    %v972 = vmul.f32 %v970, %v971
    %v973 = vsub.f32 1.0, %v972
    %v974 = vmul.f32 %v971, %v973
    %v975 = vadd.f32 %v971, %v974
    %vm976 = vweird.f32 %v970
    %vm977 = vweird.f32 %v971
    %vm978 = vmor %vm976, %vm977
    %v979 = vsel %vm978, %v971, %v975
    %v980 = vand.u32 2147483647, %v970
    %vm981 = vcmp.eq.f32.partialorder %v980, 8.507059e+37
    %v982 = vand.u32 %v970, 2147483648
    %v983 = vor.u32 1.1754944e-38, %v982
    %v984 = vsel %vm981, %v983, %v979
    %v985 = vpack.c.bf16 %v967, %v967
    %986 = vrot.lane.b32.xlu0 %v870, 56
    %v987 = vpop.permute.xlu0 %986
    %v989 = vsel %vm210, %v985, 0
    %v992 = vsel %vm259, %v987, 0
    %994 = vmatpush.bf16.msra.mxu0 0
    %995 = vmatpush.bf16.msra.mxu0 0
    %996 = vmatpush.bf16.msra.mxu0 0
    %997 = vmatpush.bf16.msra.mxu0 0
    %998 = vmatpush.bf16.msra.mxu0 0
    %999 = vmatpush.bf16.msra.mxu0 0
    %1000 = vmatpush.bf16.msra.mxu0 0
    %1001 = vmatpush.bf16.msra.mxu0 %v992
    %1002 = vmatmul.bf16.gmra.mxu0 %v989
    %v1003 = vpop.f32.mrf.mxu0
    %v1004 = vadd.f32 0.0, %v1003
    %v1005 = vpop.f32.mrf.mxu0
    %1006 = vdwg.mxu0
    %v1007 = vmul.f32 %v1004, %v984
    %1008 = vrot.lane.b32.xlu0 %v870, 112
    %v1009 = vpop.permute.xlu0 %1008
    %1010 = vrot.lane.b32.xlu0 %v870, 80
    %v1011 = vpop.permute.xlu0 %1010
    %v1013 = vsel %vm210, %v1009, 0
    %v1016 = vsel %vm210, %v1011, 0
    %1018 = vmatpush.bf16.xpose.msra.mxu0 0
    %1019 = vmatpush.bf16.xpose.msra.mxu0 0
    %1020 = vmatpush.bf16.xpose.msra.mxu0 0
    %1021 = vmatpush.bf16.xpose.msra.mxu0 0
    %1022 = vmatpush.bf16.xpose.msra.mxu0 0
    %1023 = vmatpush.bf16.xpose.msra.mxu0 0
    %1024 = vmatpush.bf16.xpose.msra.mxu0 0
    %1025 = vmatpush.bf16.xpose.msra.mxu0 %v1016
    %1026 = vmatmul.bf16.gmra.mxu0 %v1013
    %v1027 = vpop.f32.mrf.mxu0
    %v1028 = vadd.f32 0.0, %v1027
    %v1029 = vpop.f32.mrf.mxu0
    %1030 = vdwg.mxu0
    %v1031 = vsel %vm210, %v1028, -inf
    %1032 = vmax.xlane.f32.xlu0 %v1031
    %v1033 = vpop.xlane.xlu0 %1032
    %v1034 = vsub.f32 %v1028, %v1033
    %v1035 = vmul.f32 %v1034, 1.442695
    %v1036 = vpow.pop %v1035
    %v1037 = vsel %vm210, %v1036, 0.0
    %1038 = vadd.xlane.f32.xlu0 %v1037
    %v1039 = vpop.xlane.xlu0 %1038
    %v1040 = vrcp.pop %v1039
    %v1041 = vmul.f32 %v1039, %v1040
    %v1042 = vsub.f32 1.0, %v1041
    %v1043 = vmul.f32 %v1040, %v1042
    %v1044 = vadd.f32 %v1040, %v1043
    %vm1045 = vweird.f32 %v1039
    %vm1046 = vweird.f32 %v1040
    %vm1047 = vmor %vm1045, %vm1046
    %v1048 = vsel %vm1047, %v1040, %v1044
    %v1049 = vand.u32 2147483647, %v1039
    %vm1050 = vcmp.eq.f32.partialorder %v1049, 8.507059e+37
    %v1051 = vand.u32 %v1039, 2147483648
    %v1052 = vor.u32 1.1754944e-38, %v1051
    %v1053 = vsel %vm1050, %v1052, %v1048
    %v1054 = vpack.c.bf16 %v1036, %v1036
    %1055 = vrot.lane.b32.xlu0 %v870, 48
    %v1056 = vpop.permute.xlu0 %1055
    %v1058 = vsel %vm210, %v1054, 0
    %v1061 = vsel %vm259, %v1056, 0
    %1063 = vmatpush.bf16.msra.mxu0 0
    %1064 = vmatpush.bf16.msra.mxu0 0
    %1065 = vmatpush.bf16.msra.mxu0 0
    %1066 = vmatpush.bf16.msra.mxu0 0
    %1067 = vmatpush.bf16.msra.mxu0 0
    %1068 = vmatpush.bf16.msra.mxu0 0
    %1069 = vmatpush.bf16.msra.mxu0 0
    %1070 = vmatpush.bf16.msra.mxu0 %v1061
    %1071 = vmatmul.bf16.gmra.mxu0 %v1058
    %v1072 = vpop.f32.mrf.mxu0
    %v1073 = vadd.f32 0.0, %v1072
    %v1074 = vpop.f32.mrf.mxu0
    %1075 = vdwg.mxu0
    %v1076 = vmul.f32 %v1073, %v1053
    %1077 = vrot.lane.b32.xlu0 %v870, 104
    %v1078 = vpop.permute.xlu0 %1077
    %1079 = vrot.lane.b32.xlu0 %v870, 72
    %v1080 = vpop.permute.xlu0 %1079
    %v1082 = vsel %vm210, %v1078, 0
    %v1085 = vsel %vm210, %v1080, 0
    %1087 = vmatpush.bf16.xpose.msra.mxu0 0
    %1088 = vmatpush.bf16.xpose.msra.mxu0 0
    %1089 = vmatpush.bf16.xpose.msra.mxu0 0
    %1090 = vmatpush.bf16.xpose.msra.mxu0 0
    %1091 = vmatpush.bf16.xpose.msra.mxu0 0
    %1092 = vmatpush.bf16.xpose.msra.mxu0 0
    %1093 = vmatpush.bf16.xpose.msra.mxu0 0
    %1094 = vmatpush.bf16.xpose.msra.mxu0 %v1085
    %1095 = vmatmul.bf16.gmra.mxu0 %v1082
    %v1096 = vpop.f32.mrf.mxu0
    %v1097 = vadd.f32 0.0, %v1096
    %v1098 = vpop.f32.mrf.mxu0
    %1099 = vdwg.mxu0
    %v1100 = vsel %vm210, %v1097, -inf
    %1101 = vmax.xlane.f32.xlu0 %v1100
    %v1102 = vpop.xlane.xlu0 %1101
    %v1103 = vsub.f32 %v1097, %v1102
    %v1104 = vmul.f32 %v1103, 1.442695
    %v1105 = vpow.pop %v1104
    %v1106 = vsel %vm210, %v1105, 0.0
    %1107 = vadd.xlane.f32.xlu0 %v1106
    %v1108 = vpop.xlane.xlu0 %1107
    %v1109 = vrcp.pop %v1108
    %v1110 = vmul.f32 %v1108, %v1109
    %v1111 = vsub.f32 1.0, %v1110
    %v1112 = vmul.f32 %v1109, %v1111
    %v1113 = vadd.f32 %v1109, %v1112
    %vm1114 = vweird.f32 %v1108
    %vm1115 = vweird.f32 %v1109
    %vm1116 = vmor %vm1114, %vm1115
    %v1117 = vsel %vm1116, %v1109, %v1113
    %v1118 = vand.u32 2147483647, %v1108
    %vm1119 = vcmp.eq.f32.partialorder %v1118, 8.507059e+37
    %v1120 = vand.u32 %v1108, 2147483648
    %v1121 = vor.u32 1.1754944e-38, %v1120
    %v1122 = vsel %vm1119, %v1121, %v1117
    %v1123 = vpack.c.bf16 %v1105, %v1105
    %1124 = vrot.lane.b32.xlu0 %v870, 40
    %v1125 = vpop.permute.xlu0 %1124
    %v1127 = vsel %vm210, %v1123, 0
    %v1130 = vsel %vm259, %v1125, 0
    %1132 = vmatpush.bf16.msra.mxu0 0
    %1133 = vmatpush.bf16.msra.mxu0 0
    %1134 = vmatpush.bf16.msra.mxu0 0
    %1135 = vmatpush.bf16.msra.mxu0 0
    %1136 = vmatpush.bf16.msra.mxu0 0
    %1137 = vmatpush.bf16.msra.mxu0 0
    %1138 = vmatpush.bf16.msra.mxu0 0
    %1139 = vmatpush.bf16.msra.mxu0 %v1130
    %1140 = vmatmul.bf16.gmra.mxu0 %v1127
    %v1141 = vpop.f32.mrf.mxu0
    %v1142 = vadd.f32 0.0, %v1141
    %v1143 = vpop.f32.mrf.mxu0
    %1144 = vdwg.mxu0
    %v1145 = vmul.f32 %v1142, %v1122
    %1147 = vrot.lane.b32.xlu0 %v1007, 8
    %v1148 = vpop.permute.xlu0 %1147
    %1151 = vrot.lane.b32.xlu0 %v1076, 16
    %v1152 = vpop.permute.xlu0 %1151
    %1155 = vrot.lane.b32.xlu0 %v1145, 24
    %v1156 = vpop.permute.xlu0 %1155
    %v1158 = vsel %vm210, %v938, %v1148
    %v1159 = vsel %vm497, %v1158, %v1152
    %v1160 = vsel %vm499, %v1159, %v1156
    %v1161 = vpack.c.bf16 %v868, %v868
    %1163 = vrot.lane.b32.xlu0 %v1161, 96
    %v1164 = vpop.permute.xlu0 %1163
    %v1166 = vsel %vm210, %v1161, 0
    %v1169 = vsel %vm210, %v1164, 0
    %1171 = vmatpush.bf16.xpose.msra.mxu0 0
    %1172 = vmatpush.bf16.xpose.msra.mxu0 0
    %1173 = vmatpush.bf16.xpose.msra.mxu0 0
    %1174 = vmatpush.bf16.xpose.msra.mxu0 0
    %1175 = vmatpush.bf16.xpose.msra.mxu0 0
    %1176 = vmatpush.bf16.xpose.msra.mxu0 0
    %1177 = vmatpush.bf16.xpose.msra.mxu0 0
    %1178 = vmatpush.bf16.xpose.msra.mxu0 %v1169
    %1179 = vmatmul.bf16.gmra.mxu0 %v1166
    %v1180 = vpop.f32.mrf.mxu0
    %v1181 = vadd.f32 0.0, %v1180
    %v1182 = vpop.f32.mrf.mxu0
    %1183 = vdwg.mxu0
    %v1184 = vsel %vm210, %v1181, -inf
    %1185 = vmax.xlane.f32.xlu0 %v1184
    %v1186 = vpop.xlane.xlu0 %1185
    %v1187 = vsub.f32 %v1181, %v1186
    %v1188 = vmul.f32 %v1187, 1.442695
    %v1189 = vpow.pop %v1188
    %v1190 = vsel %vm210, %v1189, 0.0
    %1191 = vadd.xlane.f32.xlu0 %v1190
    %v1192 = vpop.xlane.xlu0 %1191
    %v1193 = vrcp.pop %v1192
    %v1194 = vmul.f32 %v1192, %v1193
    %v1195 = vsub.f32 1.0, %v1194
    %v1196 = vmul.f32 %v1193, %v1195
    %v1197 = vadd.f32 %v1193, %v1196
    %vm1198 = vweird.f32 %v1192
    %vm1199 = vweird.f32 %v1193
    %vm1200 = vmor %vm1198, %vm1199
    %v1201 = vsel %vm1200, %v1193, %v1197
    %v1202 = vand.u32 2147483647, %v1192
    %vm1203 = vcmp.eq.f32.partialorder %v1202, 8.507059e+37
    %v1204 = vand.u32 %v1192, 2147483648
    %v1205 = vor.u32 1.1754944e-38, %v1204
    %v1206 = vsel %vm1203, %v1205, %v1201
    %v1207 = vpack.c.bf16 %v1189, %v1189
    %1208 = vrot.lane.b32.xlu0 %v1161, 64
    %v1209 = vpop.permute.xlu0 %1208
    %v1211 = vsel %vm210, %v1207, 0
    %v1214 = vsel %vm259, %v1209, 0
    %1216 = vmatpush.bf16.msra.mxu0 0
    %1217 = vmatpush.bf16.msra.mxu0 0
    %1218 = vmatpush.bf16.msra.mxu0 0
    %1219 = vmatpush.bf16.msra.mxu0 0
    %1220 = vmatpush.bf16.msra.mxu0 0
    %1221 = vmatpush.bf16.msra.mxu0 0
    %1222 = vmatpush.bf16.msra.mxu0 0
    %1223 = vmatpush.bf16.msra.mxu0 %v1214
    %1224 = vmatmul.bf16.gmra.mxu0 %v1211
    %v1225 = vpop.f32.mrf.mxu0
    %v1226 = vadd.f32 0.0, %v1225
    %v1227 = vpop.f32.mrf.mxu0
    %1228 = vdwg.mxu0
    %v1229 = vmul.f32 %v1226, %v1206
    %1230 = vrot.lane.b32.xlu0 %v1161, 120
    %v1231 = vpop.permute.xlu0 %1230
    %1232 = vrot.lane.b32.xlu0 %v1161, 88
    %v1233 = vpop.permute.xlu0 %1232
    %v1235 = vsel %vm210, %v1231, 0
    %v1238 = vsel %vm210, %v1233, 0
    %1240 = vmatpush.bf16.xpose.msra.mxu0 0
    %1241 = vmatpush.bf16.xpose.msra.mxu0 0
    %1242 = vmatpush.bf16.xpose.msra.mxu0 0
    %1243 = vmatpush.bf16.xpose.msra.mxu0 0
    %1244 = vmatpush.bf16.xpose.msra.mxu0 0
    %1245 = vmatpush.bf16.xpose.msra.mxu0 0
    %1246 = vmatpush.bf16.xpose.msra.mxu0 0
    %1247 = vmatpush.bf16.xpose.msra.mxu0 %v1238
    %1248 = vmatmul.bf16.gmra.mxu0 %v1235
    %v1249 = vpop.f32.mrf.mxu0
    %v1250 = vadd.f32 0.0, %v1249
    %v1251 = vpop.f32.mrf.mxu0
    %1252 = vdwg.mxu0
    %v1253 = vsel %vm210, %v1250, -inf
    %1254 = vmax.xlane.f32.xlu0 %v1253
    %v1255 = vpop.xlane.xlu0 %1254
    %v1256 = vsub.f32 %v1250, %v1255
    %v1257 = vmul.f32 %v1256, 1.442695
    %v1258 = vpow.pop %v1257
    %v1259 = vsel %vm210, %v1258, 0.0
    %1260 = vadd.xlane.f32.xlu0 %v1259
    %v1261 = vpop.xlane.xlu0 %1260
    %v1262 = vrcp.pop %v1261
    %v1263 = vmul.f32 %v1261, %v1262
    %v1264 = vsub.f32 1.0, %v1263
    %v1265 = vmul.f32 %v1262, %v1264
    %v1266 = vadd.f32 %v1262, %v1265
    %vm1267 = vweird.f32 %v1261
    %vm1268 = vweird.f32 %v1262
    %vm1269 = vmor %vm1267, %vm1268
    %v1270 = vsel %vm1269, %v1262, %v1266
    %v1271 = vand.u32 2147483647, %v1261
    %vm1272 = vcmp.eq.f32.partialorder %v1271, 8.507059e+37
    %v1273 = vand.u32 %v1261, 2147483648
    %v1274 = vor.u32 1.1754944e-38, %v1273
    %v1275 = vsel %vm1272, %v1274, %v1270
    %v1276 = vpack.c.bf16 %v1258, %v1258
    %1277 = vrot.lane.b32.xlu0 %v1161, 56
    %v1278 = vpop.permute.xlu0 %1277
    %v1280 = vsel %vm210, %v1276, 0
    %v1283 = vsel %vm259, %v1278, 0
    %1285 = vmatpush.bf16.msra.mxu0 0
    %1286 = vmatpush.bf16.msra.mxu0 0
    %1287 = vmatpush.bf16.msra.mxu0 0
    %1288 = vmatpush.bf16.msra.mxu0 0
    %1289 = vmatpush.bf16.msra.mxu0 0
    %1290 = vmatpush.bf16.msra.mxu0 0
    %1291 = vmatpush.bf16.msra.mxu0 0
    %1292 = vmatpush.bf16.msra.mxu0 %v1283
    %1293 = vmatmul.bf16.gmra.mxu0 %v1280
    %v1294 = vpop.f32.mrf.mxu0
    %v1295 = vadd.f32 0.0, %v1294
    %v1296 = vpop.f32.mrf.mxu0
    %1297 = vdwg.mxu0
    %v1298 = vmul.f32 %v1295, %v1275
    %1299 = vrot.lane.b32.xlu0 %v1161, 112
    %v1300 = vpop.permute.xlu0 %1299
    %1301 = vrot.lane.b32.xlu0 %v1161, 80
    %v1302 = vpop.permute.xlu0 %1301
    %v1304 = vsel %vm210, %v1300, 0
    %v1307 = vsel %vm210, %v1302, 0
    %1309 = vmatpush.bf16.xpose.msra.mxu0 0
    %1310 = vmatpush.bf16.xpose.msra.mxu0 0
    %1311 = vmatpush.bf16.xpose.msra.mxu0 0
    %1312 = vmatpush.bf16.xpose.msra.mxu0 0
    %1313 = vmatpush.bf16.xpose.msra.mxu0 0
    %1314 = vmatpush.bf16.xpose.msra.mxu0 0
    %1315 = vmatpush.bf16.xpose.msra.mxu0 0
    %1316 = vmatpush.bf16.xpose.msra.mxu0 %v1307
    %1317 = vmatmul.bf16.gmra.mxu0 %v1304
    %v1318 = vpop.f32.mrf.mxu0
    %v1319 = vadd.f32 0.0, %v1318
    %v1320 = vpop.f32.mrf.mxu0
    %1321 = vdwg.mxu0
    %v1322 = vsel %vm210, %v1319, -inf
    %1323 = vmax.xlane.f32.xlu0 %v1322
    %v1324 = vpop.xlane.xlu0 %1323
    %v1325 = vsub.f32 %v1319, %v1324
    %v1326 = vmul.f32 %v1325, 1.442695
    %v1327 = vpow.pop %v1326
    %v1328 = vsel %vm210, %v1327, 0.0
    %1329 = vadd.xlane.f32.xlu0 %v1328
    %v1330 = vpop.xlane.xlu0 %1329
    %v1331 = vrcp.pop %v1330
    %v1332 = vmul.f32 %v1330, %v1331
    %v1333 = vsub.f32 1.0, %v1332
    %v1334 = vmul.f32 %v1331, %v1333
    %v1335 = vadd.f32 %v1331, %v1334
    %vm1336 = vweird.f32 %v1330
    %vm1337 = vweird.f32 %v1331
    %vm1338 = vmor %vm1336, %vm1337
    %v1339 = vsel %vm1338, %v1331, %v1335
    %v1340 = vand.u32 2147483647, %v1330
    %vm1341 = vcmp.eq.f32.partialorder %v1340, 8.507059e+37
    %v1342 = vand.u32 %v1330, 2147483648
    %v1343 = vor.u32 1.1754944e-38, %v1342
    %v1344 = vsel %vm1341, %v1343, %v1339
    %v1345 = vpack.c.bf16 %v1327, %v1327
    %1346 = vrot.lane.b32.xlu0 %v1161, 48
    %v1347 = vpop.permute.xlu0 %1346
    %v1349 = vsel %vm210, %v1345, 0
    %v1352 = vsel %vm259, %v1347, 0
    %1354 = vmatpush.bf16.msra.mxu0 0
    %1355 = vmatpush.bf16.msra.mxu0 0
    %1356 = vmatpush.bf16.msra.mxu0 0
    %1357 = vmatpush.bf16.msra.mxu0 0
    %1358 = vmatpush.bf16.msra.mxu0 0
    %1359 = vmatpush.bf16.msra.mxu0 0
    %1360 = vmatpush.bf16.msra.mxu0 0
    %1361 = vmatpush.bf16.msra.mxu0 %v1352
    %1362 = vmatmul.bf16.gmra.mxu0 %v1349
    %v1363 = vpop.f32.mrf.mxu0
    %v1364 = vadd.f32 0.0, %v1363
    %v1365 = vpop.f32.mrf.mxu0
    %1366 = vdwg.mxu0
    %v1367 = vmul.f32 %v1364, %v1344
    %1368 = vrot.lane.b32.xlu0 %v1161, 104
    %v1369 = vpop.permute.xlu0 %1368
    %1370 = vrot.lane.b32.xlu0 %v1161, 72
    %v1371 = vpop.permute.xlu0 %1370
    %v1373 = vsel %vm210, %v1369, 0
    %v1376 = vsel %vm210, %v1371, 0
    %1378 = vmatpush.bf16.xpose.msra.mxu0 0
    %1379 = vmatpush.bf16.xpose.msra.mxu0 0
    %1380 = vmatpush.bf16.xpose.msra.mxu0 0
    %1381 = vmatpush.bf16.xpose.msra.mxu0 0
    %1382 = vmatpush.bf16.xpose.msra.mxu0 0
    %1383 = vmatpush.bf16.xpose.msra.mxu0 0
    %1384 = vmatpush.bf16.xpose.msra.mxu0 0
    %1385 = vmatpush.bf16.xpose.msra.mxu0 %v1376
    %1386 = vmatmul.bf16.gmra.mxu0 %v1373
    %v1387 = vpop.f32.mrf.mxu0
    %v1388 = vadd.f32 0.0, %v1387
    %v1389 = vpop.f32.mrf.mxu0
    %1390 = vdwg.mxu0
    %v1391 = vsel %vm210, %v1388, -inf
    %1392 = vmax.xlane.f32.xlu0 %v1391
    %v1393 = vpop.xlane.xlu0 %1392
    %v1394 = vsub.f32 %v1388, %v1393
    %v1395 = vmul.f32 %v1394, 1.442695
    %v1396 = vpow.pop %v1395
    %v1397 = vsel %vm210, %v1396, 0.0
    %1398 = vadd.xlane.f32.xlu0 %v1397
    %v1399 = vpop.xlane.xlu0 %1398
    %v1400 = vrcp.pop %v1399
    %v1401 = vmul.f32 %v1399, %v1400
    %v1402 = vsub.f32 1.0, %v1401
    %v1403 = vmul.f32 %v1400, %v1402
    %v1404 = vadd.f32 %v1400, %v1403
    %vm1405 = vweird.f32 %v1399
    %vm1406 = vweird.f32 %v1400
    %vm1407 = vmor %vm1405, %vm1406
    %v1408 = vsel %vm1407, %v1400, %v1404
    %v1409 = vand.u32 2147483647, %v1399
    %vm1410 = vcmp.eq.f32.partialorder %v1409, 8.507059e+37
    %v1411 = vand.u32 %v1399, 2147483648
    %v1412 = vor.u32 1.1754944e-38, %v1411
    %v1413 = vsel %vm1410, %v1412, %v1408
    %v1414 = vpack.c.bf16 %v1396, %v1396
    %1415 = vrot.lane.b32.xlu0 %v1161, 40
    %v1416 = vpop.permute.xlu0 %1415
    %v1418 = vsel %vm210, %v1414, 0
    %v1421 = vsel %vm259, %v1416, 0
    %1423 = vmatpush.bf16.msra.mxu0 0
    %1424 = vmatpush.bf16.msra.mxu0 0
    %1425 = vmatpush.bf16.msra.mxu0 0
    %1426 = vmatpush.bf16.msra.mxu0 0
    %1427 = vmatpush.bf16.msra.mxu0 0
    %1428 = vmatpush.bf16.msra.mxu0 0
    %1429 = vmatpush.bf16.msra.mxu0 0
    %1430 = vmatpush.bf16.msra.mxu0 %v1421
    %1431 = vmatmul.bf16.gmra.mxu0 %v1418
    %v1432 = vpop.f32.mrf.mxu0
    %v1433 = vadd.f32 0.0, %v1432
    %v1434 = vpop.f32.mrf.mxu0
    %1435 = vdwg.mxu0
    %v1436 = vmul.f32 %v1433, %v1413
    %1438 = vrot.lane.b32.xlu0 %v1298, 8
    %v1439 = vpop.permute.xlu0 %1438
    %1442 = vrot.lane.b32.xlu0 %v1367, 16
    %v1443 = vpop.permute.xlu0 %1442
    %1446 = vrot.lane.b32.xlu0 %v1436, 24
    %v1447 = vpop.permute.xlu0 %1446
    %v1449 = vsel %vm210, %v1229, %v1439
    %v1450 = vsel %vm497, %v1449, %v1443
    %v1451 = vsel %vm499, %v1450, %v1447
    %v1452 = vpack.c.bf16 %v1451, %v1160
    %s1453 = scalar_lea.vmem %s3, 16
    %v1454 = vld [vmem:[%s1453] sm:$0xf]
    %v1455 = vld [vmem:[%s1453 + $0x4] sm:$0xf]
    %v1456 = vld [vmem:[%s1453 + $0x8] sm:$0xf]
    %v1457 = vld [vmem:[%s1453 + $0xc] sm:$0xf]
    %s1458 = scalar_lea.vmem [#allocation7], 1
    %v1459 = vld [vmem:[%s1458] sm:$0x1]
    %v1461 = vperm.slane %v1459, 0
    %v1467 = vunpack.c.l.b16 %v1454
    %v1468 = vunpack.c.l.b16 %v1455
    %v1469 = vunpack.c.l.b16 %v1456
    %v1470 = vunpack.c.l.b16 %v1457
    %v1471 = vpack.c.b16 %v1468, %v1467
    %v1472 = vpack.c.b16 %v1470, %v1469
    %v1476 = vsel %vm188, %v1452, 0
    %1478 = vmatpush.bf16.msra.mxu0 0
    %1479 = vmatpush.bf16.msra.mxu0 0
    %1480 = vmatpush.bf16.msra.mxu0 0
    %1481 = vmatpush.bf16.msra.mxu0 0
    %1482 = vmatpush.bf16.msra.mxu0 0
    %1483 = vmatpush.bf16.msra.mxu0 0
    %1484 = vmatpush.bf16.msra.mxu0 %v1472
    %1485 = vmatpush.bf16.msra.mxu0 %v1471
    %1486 = vmatmul.bf16.gmra.mxu0 %v1476
    %v1487 = vpop.f32.mrf.mxu0
    %v1488 = vadd.f32 %v1461, %v1487
    %v1489 = vpop.f32.mrf.mxu0
    %v1490 = vadd.f32 %v1461, %v1489
    %1491 = vdwg.mxu0
    %v1492 = vadd.f32 %v826, %v1488
    %v1493 = vadd.f32 %v828, %v1490
    %v1494 = vld [vmem:[%s9] sm:$0x1]
    %v1495 = vld [vmem:[%s10] sm:$0x1]
    %v1496 = vsel %vm188, %v1492, 0.0
    %1497 = vadd.xlane.f32.xlu0 %v1496
    %v1498 = vpop.xlane.xlu0 %1497
    %v1499 = vsel %vm188, %v1493, 0.0
    %1500 = vadd.xlane.f32.xlu0 %v1499
    %v1501 = vpop.xlane.xlu0 %1500
    %v1502 = vrcp.pop 32.0
    %v1503 = vmul.f32 32.0, %v1502
    %v1504 = vsub.f32 1.0, %v1503
    %v1505 = vmul.f32 %v1502, %v1504
    %v1506 = vadd.f32 %v1502, %v1505
    %vm1507 = vweird.f32 %v1502
    %v1508 = vsel %vm1507, %v1502, %v1506
    %v1509 = vmul.f32 %v1498, %v1508
    %v1510 = vmul.f32 %v1501, %v1508
    %v1511 = vsub.f32 %v1492, %v1509
    %v1512 = vsub.f32 %v1493, %v1510
    %v1513 = vmul.f32 %v1511, %v1511
    %v1514 = vmul.f32 %v1512, %v1512
    %v1515 = vsel %vm188, %v1513, 0.0
    %1516 = vadd.xlane.f32.xlu0 %v1515
    %v1517 = vpop.xlane.xlu0 %1516
    %v1518 = vsel %vm188, %v1514, 0.0
    %1519 = vadd.xlane.f32.xlu0 %v1518
    %v1520 = vpop.xlane.xlu0 %1519
    %v1521 = vmul.f32 %v1517, %v1508
    %v1522 = vmul.f32 %v1520, %v1508
    %v1523 = vadd.f32 %v1521, 1e-05
    %v1524 = vadd.f32 %v1522, 1e-05
    %v1525 = vrsqrt.pop %v1523
    %v1526 = vmul.f32 %v1525, %v1523
    %v1527 = vmul.f32 %v1526, %v1525
    %v1528 = vmul.f32 0.5, %v1527
    %v1529 = vsub.f32 1.5, %v1528
    %v1530 = vmul.f32 %v1525, %v1529
    %vm1531 = vweird.f32 %v1523
    %vm1532 = vweird.f32 %v1525
    %vm1533 = vmor %vm1531, %vm1532
    %v1534 = vsel %vm1533, %v1525, %v1530
    %v1535 = vrsqrt.pop %v1524
    %v1536 = vmul.f32 %v1535, %v1524
    %v1537 = vmul.f32 %v1536, %v1535
    %v1538 = vmul.f32 0.5, %v1537
    %v1539 = vsub.f32 1.5, %v1538
    %v1540 = vmul.f32 %v1535, %v1539
    %vm1541 = vweird.f32 %v1524
    %vm1542 = vweird.f32 %v1535
    %vm1543 = vmor %vm1541, %vm1542
    %v1544 = vsel %vm1543, %v1535, %v1540
    %v1545 = vmul.f32 %v1511, %v1534
    %v1546 = vmul.f32 %v1512, %v1544
    %v1548 = vperm.slane %v1494, 0
    %v1550 = vmul.f32 %v1545, %v1548
    %v1551 = vmul.f32 %v1546, %v1548
    %v1553 = vperm.slane %v1495, 0
    %v1555 = vadd.f32 %v1550, %v1553
    %v1556 = vadd.f32 %v1551, %v1553
    %v1557 = vpack.c.bf16 %v1556, %v1555
    %v1558 = vld [vmem:[#allocation8] sm:$0xf]
    %v1559 = vld [vmem:[#allocation8 + $0x4] sm:$0xf]
    %v1560 = vld [vmem:[#allocation8 + $0x8] sm:$0xf]
    %v1561 = vld [vmem:[#allocation8 + $0xc] sm:$0xf]
    %v1562 = vld [vmem:[%s6] sm:$0x1]
    %v1564 = vperm.slane %v1562, 0
    %v1570 = vunpack.c.l.b16 %v1558
    %v1571 = vunpack.c.l.b16 %v1559
    %v1572 = vunpack.c.l.b16 %v1560
    %v1573 = vunpack.c.l.b16 %v1561
    %v1574 = vpack.c.b16 %v1571, %v1570
    %v1575 = vpack.c.b16 %v1573, %v1572
    %v1579 = vsel %vm188, %v1557, 0
    %1581 = vmatpush.bf16.msra.mxu0 0
    %1582 = vmatpush.bf16.msra.mxu0 0
    %1583 = vmatpush.bf16.msra.mxu0 0
    %1584 = vmatpush.bf16.msra.mxu0 0
    %1585 = vmatpush.bf16.msra.mxu0 0
    %1586 = vmatpush.bf16.msra.mxu0 0
    %1587 = vmatpush.bf16.msra.mxu0 %v1575
    %1588 = vmatpush.bf16.msra.mxu0 %v1574
    %1589 = vmatmul.bf16.gmra.mxu0 %v1579
    %v1590 = vpop.f32.mrf.mxu0
    %v1591 = vadd.f32 %v1564, %v1590
    %v1592 = vpop.f32.mrf.mxu0
    %v1593 = vadd.f32 %v1564, %v1592
    %1594 = vdwg.mxu0
    %v1595 = vmax.f32 %v1591, 0.0
    %v1596 = vmax.f32 %v1593, 0.0
    %v1597 = vpack.c.bf16 %v1596, %v1595
    %v1598 = vld [vmem:[%s7] sm:$0xf]
    %v1599 = vld [vmem:[%s7 + $0x4] sm:$0xf]
    %v1600 = vld [vmem:[%s7 + $0x8] sm:$0xf]
    %v1601 = vld [vmem:[%s7 + $0xc] sm:$0xf]
    %v1602 = vld [vmem:[%s7 + $0x10] sm:$0xf]
    %v1603 = vld [vmem:[%s7 + $0x14] sm:$0xf]
    %v1604 = vld [vmem:[%s7 + $0x18] sm:$0xf]
    %v1605 = vld [vmem:[%s7 + $0x1c] sm:$0xf]
    %v1606 = vld [vmem:[%s8] sm:$0x1]
    %v1608 = vperm.slane %v1606, 0
    %v1618 = vunpack.c.l.b16 %v1598
    %v1619 = vunpack.c.l.b16 %v1599
    %v1620 = vunpack.c.l.b16 %v1600
    %v1621 = vunpack.c.l.b16 %v1601
    %v1622 = vunpack.c.l.b16 %v1602
    %v1623 = vunpack.c.l.b16 %v1603
    %v1624 = vunpack.c.l.b16 %v1604
    %v1625 = vunpack.c.l.b16 %v1605
    %v1626 = vpack.c.b16 %v1619, %v1618
    %v1627 = vpack.c.b16 %v1621, %v1620
    %v1628 = vpack.c.b16 %v1623, %v1622
    %v1629 = vpack.c.b16 %v1625, %v1624
    %vm1634 = vcmask 523264
    %v1636 = vsel %vm1634, %v1597, 0
    %1638 = vmatpush.bf16.msra.mxu0 0
    %1639 = vmatpush.bf16.msra.mxu0 0
    %1640 = vmatpush.bf16.msra.mxu0 0
    %1641 = vmatpush.bf16.msra.mxu0 0
    %1642 = vmatpush.bf16.msra.mxu0 %v1629
    %1643 = vmatpush.bf16.msra.mxu0 %v1628
    %1644 = vmatpush.bf16.msra.mxu0 %v1627
    %1645 = vmatpush.bf16.msra.mxu0 %v1626
    %1646 = vmatmul.bf16.gmra.mxu0 %v1636
    %v1647 = vpop.f32.mrf.mxu0
    %v1648 = vadd.f32 %v1608, %v1647
    %v1649 = vpop.f32.mrf.mxu0
    %v1650 = vadd.f32 %v1608, %v1649
    %1651 = vdwg.mxu0
    %v1652 = vadd.f32 %v1555, %v1648
    %v1653 = vadd.f32 %v1556, %v1650
    %v1654 = vld [vmem:[%s11] sm:$0x1]
    %v1655 = vld [vmem:[%s12] sm:$0x1]
    %v1656 = vsel %vm188, %v1652, 0.0
    %1657 = vadd.xlane.f32.xlu0 %v1656
    %v1658 = vpop.xlane.xlu0 %1657
    %v1659 = vsel %vm188, %v1653, 0.0
    %1660 = vadd.xlane.f32.xlu0 %v1659
    %v1661 = vpop.xlane.xlu0 %1660
    %v1662 = vmul.f32 %v1658, %v1508
    %v1663 = vmul.f32 %v1661, %v1508
    %v1664 = vsub.f32 %v1652, %v1662
    %v1665 = vsub.f32 %v1653, %v1663
    %v1666 = vmul.f32 %v1664, %v1664
    %v1667 = vmul.f32 %v1665, %v1665
    %v1668 = vsel %vm188, %v1666, 0.0
    %1669 = vadd.xlane.f32.xlu0 %v1668
    %v1670 = vpop.xlane.xlu0 %1669
    %v1671 = vsel %vm188, %v1667, 0.0
    %1672 = vadd.xlane.f32.xlu0 %v1671
    %v1673 = vpop.xlane.xlu0 %1672
    %v1674 = vmul.f32 %v1670, %v1508
    %v1675 = vmul.f32 %v1673, %v1508
    %v1676 = vadd.f32 %v1674, 1e-05
    %v1677 = vadd.f32 %v1675, 1e-05
    %v1678 = vrsqrt.pop %v1676
    %v1679 = vmul.f32 %v1678, %v1676
    %v1680 = vmul.f32 %v1679, %v1678
    %v1681 = vmul.f32 0.5, %v1680
    %v1682 = vsub.f32 1.5, %v1681
    %v1683 = vmul.f32 %v1678, %v1682
    %vm1684 = vweird.f32 %v1676
    %vm1685 = vweird.f32 %v1678
    %vm1686 = vmor %vm1684, %vm1685
    %v1687 = vsel %vm1686, %v1678, %v1683
    %v1688 = vrsqrt.pop %v1677
    %v1689 = vmul.f32 %v1688, %v1677
    %v1690 = vmul.f32 %v1689, %v1688
    %v1691 = vmul.f32 0.5, %v1690
    %v1692 = vsub.f32 1.5, %v1691
    %v1693 = vmul.f32 %v1688, %v1692
    %vm1694 = vweird.f32 %v1677
    %vm1695 = vweird.f32 %v1688
    %vm1696 = vmor %vm1694, %vm1695
    %v1697 = vsel %vm1696, %v1688, %v1693
    %v1698 = vmul.f32 %v1664, %v1687
    %v1699 = vmul.f32 %v1665, %v1697
    %v1701 = vperm.slane %v1654, 0
    %v1703 = vmul.f32 %v1698, %v1701
    %v1704 = vmul.f32 %v1699, %v1701
    %v1706 = vperm.slane %v1655, 0
    %v1708 = vadd.f32 %v1703, %v1706
    %v1709 = vadd.f32 %v1704, %v1706
    %v1710 = vpack.c.bf16 %v1709, %v1708
    %s1711 = scalar_lea.vmem %s1, 32
    %v1712 = vld [vmem:[%s1711] sm:$0xf]
    %v1713 = vld [vmem:[%s1711 + $0x4] sm:$0xf]
    %v1714 = vld [vmem:[%s1711 + $0x8] sm:$0xf]
    %v1715 = vld [vmem:[%s1711 + $0xc] sm:$0xf]
    %s1716 = scalar_lea.vmem [#allocation5], 2
    %v1717 = vld [vmem:[%s1716] sm:$0x1]
    %v1719 = vperm.slane %v1717, 0
    %v1725 = vunpack.c.l.b16 %v1712
    %v1726 = vunpack.c.l.b16 %v1713
    %v1727 = vunpack.c.l.b16 %v1714
    %v1728 = vunpack.c.l.b16 %v1715
    %v1729 = vpack.c.b16 %v1726, %v1725
    %v1730 = vpack.c.b16 %v1728, %v1727
    %v1734 = vsel %vm188, %v1710, 0
    %1736 = vmatpush.bf16.msra.mxu0 0
    %1737 = vmatpush.bf16.msra.mxu0 0
    %1738 = vmatpush.bf16.msra.mxu0 0
    %1739 = vmatpush.bf16.msra.mxu0 0
    %1740 = vmatpush.bf16.msra.mxu0 0
    %1741 = vmatpush.bf16.msra.mxu0 0
    %1742 = vmatpush.bf16.msra.mxu0 %v1730
    %1743 = vmatpush.bf16.msra.mxu0 %v1729
    %1744 = vmatmul.bf16.gmra.mxu0 %v1734
    %v1745 = vpop.f32.mrf.mxu0
    %v1746 = vadd.f32 %v1719, %v1745
    %v1747 = vpop.f32.mrf.mxu0
    %v1748 = vadd.f32 %v1719, %v1747
    %1749 = vdwg.mxu0
    %v1750 = vpack.c.bf16 %v1746, %v1746
    %1752 = vrot.lane.b32.xlu0 %v1750, 96
    %v1753 = vpop.permute.xlu0 %1752
    %v1755 = vsel %vm210, %v1750, 0
    %v1758 = vsel %vm210, %v1753, 0
    %1760 = vmatpush.bf16.xpose.msra.mxu0 0
    %1761 = vmatpush.bf16.xpose.msra.mxu0 0
    %1762 = vmatpush.bf16.xpose.msra.mxu0 0
    %1763 = vmatpush.bf16.xpose.msra.mxu0 0
    %1764 = vmatpush.bf16.xpose.msra.mxu0 0
    %1765 = vmatpush.bf16.xpose.msra.mxu0 0
    %1766 = vmatpush.bf16.xpose.msra.mxu0 0
    %1767 = vmatpush.bf16.xpose.msra.mxu0 %v1758
    %1768 = vmatmul.bf16.gmra.mxu0 %v1755
    %v1769 = vpop.f32.mrf.mxu0
    %v1770 = vadd.f32 0.0, %v1769
    %v1771 = vpop.f32.mrf.mxu0
    %1772 = vdwg.mxu0
    %v1773 = vsel %vm210, %v1770, -inf
    %1774 = vmax.xlane.f32.xlu0 %v1773
    %v1775 = vpop.xlane.xlu0 %1774
    %v1776 = vsub.f32 %v1770, %v1775
    %v1777 = vmul.f32 %v1776, 1.442695
    %v1778 = vpow.pop %v1777
    %v1779 = vsel %vm210, %v1778, 0.0
    %1780 = vadd.xlane.f32.xlu0 %v1779
    %v1781 = vpop.xlane.xlu0 %1780
    %v1782 = vrcp.pop %v1781
    %v1783 = vmul.f32 %v1781, %v1782
    %v1784 = vsub.f32 1.0, %v1783
    %v1785 = vmul.f32 %v1782, %v1784
    %v1786 = vadd.f32 %v1782, %v1785
    %vm1787 = vweird.f32 %v1781
    %vm1788 = vweird.f32 %v1782
    %vm1789 = vmor %vm1787, %vm1788
    %v1790 = vsel %vm1789, %v1782, %v1786
    %v1791 = vand.u32 2147483647, %v1781
    %vm1792 = vcmp.eq.f32.partialorder %v1791, 8.507059e+37
    %v1793 = vand.u32 %v1781, 2147483648
    %v1794 = vor.u32 1.1754944e-38, %v1793
    %v1795 = vsel %vm1792, %v1794, %v1790
    %v1796 = vpack.c.bf16 %v1778, %v1778
    %1797 = vrot.lane.b32.xlu0 %v1750, 64
    %v1798 = vpop.permute.xlu0 %1797
    %v1800 = vsel %vm210, %v1796, 0
    %v1803 = vsel %vm259, %v1798, 0
    %1805 = vmatpush.bf16.msra.mxu0 0
    %1806 = vmatpush.bf16.msra.mxu0 0
    %1807 = vmatpush.bf16.msra.mxu0 0
    %1808 = vmatpush.bf16.msra.mxu0 0
    %1809 = vmatpush.bf16.msra.mxu0 0
    %1810 = vmatpush.bf16.msra.mxu0 0
    %1811 = vmatpush.bf16.msra.mxu0 0
    %1812 = vmatpush.bf16.msra.mxu0 %v1803
    %1813 = vmatmul.bf16.gmra.mxu0 %v1800
    %v1814 = vpop.f32.mrf.mxu0
    %v1815 = vadd.f32 0.0, %v1814
    %v1816 = vpop.f32.mrf.mxu0
    %1817 = vdwg.mxu0
    %v1818 = vmul.f32 %v1815, %v1795
    %1819 = vrot.lane.b32.xlu0 %v1750, 120
    %v1820 = vpop.permute.xlu0 %1819
    %1821 = vrot.lane.b32.xlu0 %v1750, 88
    %v1822 = vpop.permute.xlu0 %1821
    %v1824 = vsel %vm210, %v1820, 0
    %v1827 = vsel %vm210, %v1822, 0
    %1829 = vmatpush.bf16.xpose.msra.mxu0 0
    %1830 = vmatpush.bf16.xpose.msra.mxu0 0
    %1831 = vmatpush.bf16.xpose.msra.mxu0 0
    %1832 = vmatpush.bf16.xpose.msra.mxu0 0
    %1833 = vmatpush.bf16.xpose.msra.mxu0 0
    %1834 = vmatpush.bf16.xpose.msra.mxu0 0
    %1835 = vmatpush.bf16.xpose.msra.mxu0 0
    %1836 = vmatpush.bf16.xpose.msra.mxu0 %v1827
    %1837 = vmatmul.bf16.gmra.mxu0 %v1824
    %v1838 = vpop.f32.mrf.mxu0
    %v1839 = vadd.f32 0.0, %v1838
    %v1840 = vpop.f32.mrf.mxu0
    %1841 = vdwg.mxu0
    %v1842 = vsel %vm210, %v1839, -inf
    %1843 = vmax.xlane.f32.xlu0 %v1842
    %v1844 = vpop.xlane.xlu0 %1843
    %v1845 = vsub.f32 %v1839, %v1844
    %v1846 = vmul.f32 %v1845, 1.442695
    %v1847 = vpow.pop %v1846
    %v1848 = vsel %vm210, %v1847, 0.0
    %1849 = vadd.xlane.f32.xlu0 %v1848
    %v1850 = vpop.xlane.xlu0 %1849
    %v1851 = vrcp.pop %v1850
    %v1852 = vmul.f32 %v1850, %v1851
    %v1853 = vsub.f32 1.0, %v1852
    %v1854 = vmul.f32 %v1851, %v1853
    %v1855 = vadd.f32 %v1851, %v1854
    %vm1856 = vweird.f32 %v1850
    %vm1857 = vweird.f32 %v1851
    %vm1858 = vmor %vm1856, %vm1857
    %v1859 = vsel %vm1858, %v1851, %v1855
    %v1860 = vand.u32 2147483647, %v1850
    %vm1861 = vcmp.eq.f32.partialorder %v1860, 8.507059e+37
    %v1862 = vand.u32 %v1850, 2147483648
    %v1863 = vor.u32 1.1754944e-38, %v1862
    %v1864 = vsel %vm1861, %v1863, %v1859
    %v1865 = vpack.c.bf16 %v1847, %v1847
    %1866 = vrot.lane.b32.xlu0 %v1750, 56
    %v1867 = vpop.permute.xlu0 %1866
    %v1869 = vsel %vm210, %v1865, 0
    %v1872 = vsel %vm259, %v1867, 0
    %1874 = vmatpush.bf16.msra.mxu0 0
    %1875 = vmatpush.bf16.msra.mxu0 0
    %1876 = vmatpush.bf16.msra.mxu0 0
    %1877 = vmatpush.bf16.msra.mxu0 0
    %1878 = vmatpush.bf16.msra.mxu0 0
    %1879 = vmatpush.bf16.msra.mxu0 0
    %1880 = vmatpush.bf16.msra.mxu0 0
    %1881 = vmatpush.bf16.msra.mxu0 %v1872
    %1882 = vmatmul.bf16.gmra.mxu0 %v1869
    %v1883 = vpop.f32.mrf.mxu0
    %v1884 = vadd.f32 0.0, %v1883
    %v1885 = vpop.f32.mrf.mxu0
    %1886 = vdwg.mxu0
    %v1887 = vmul.f32 %v1884, %v1864
    %1888 = vrot.lane.b32.xlu0 %v1750, 112
    %v1889 = vpop.permute.xlu0 %1888
    %1890 = vrot.lane.b32.xlu0 %v1750, 80
    %v1891 = vpop.permute.xlu0 %1890
    %v1893 = vsel %vm210, %v1889, 0
    %v1896 = vsel %vm210, %v1891, 0
    %1898 = vmatpush.bf16.xpose.msra.mxu0 0
    %1899 = vmatpush.bf16.xpose.msra.mxu0 0
    %1900 = vmatpush.bf16.xpose.msra.mxu0 0
    %1901 = vmatpush.bf16.xpose.msra.mxu0 0
    %1902 = vmatpush.bf16.xpose.msra.mxu0 0
    %1903 = vmatpush.bf16.xpose.msra.mxu0 0
    %1904 = vmatpush.bf16.xpose.msra.mxu0 0
    %1905 = vmatpush.bf16.xpose.msra.mxu0 %v1896
    %1906 = vmatmul.bf16.gmra.mxu0 %v1893
    %v1907 = vpop.f32.mrf.mxu0
    %v1908 = vadd.f32 0.0, %v1907
    %v1909 = vpop.f32.mrf.mxu0
    %1910 = vdwg.mxu0
    %v1911 = vsel %vm210, %v1908, -inf
    %1912 = vmax.xlane.f32.xlu0 %v1911
    %v1913 = vpop.xlane.xlu0 %1912
    %v1914 = vsub.f32 %v1908, %v1913
    %v1915 = vmul.f32 %v1914, 1.442695
    %v1916 = vpow.pop %v1915
    %v1917 = vsel %vm210, %v1916, 0.0
    %1918 = vadd.xlane.f32.xlu0 %v1917
    %v1919 = vpop.xlane.xlu0 %1918
    %v1920 = vrcp.pop %v1919
    %v1921 = vmul.f32 %v1919, %v1920
    %v1922 = vsub.f32 1.0, %v1921
    %v1923 = vmul.f32 %v1920, %v1922
    %v1924 = vadd.f32 %v1920, %v1923
    %vm1925 = vweird.f32 %v1919
    %vm1926 = vweird.f32 %v1920
    %vm1927 = vmor %vm1925, %vm1926
    %v1928 = vsel %vm1927, %v1920, %v1924
    %v1929 = vand.u32 2147483647, %v1919
    %vm1930 = vcmp.eq.f32.partialorder %v1929, 8.507059e+37
    %v1931 = vand.u32 %v1919, 2147483648
    %v1932 = vor.u32 1.1754944e-38, %v1931
    %v1933 = vsel %vm1930, %v1932, %v1928
    %v1934 = vpack.c.bf16 %v1916, %v1916
    %1935 = vrot.lane.b32.xlu0 %v1750, 48
    %v1936 = vpop.permute.xlu0 %1935
    %v1938 = vsel %vm210, %v1934, 0
    %v1941 = vsel %vm259, %v1936, 0
    %1943 = vmatpush.bf16.msra.mxu0 0
    %1944 = vmatpush.bf16.msra.mxu0 0
    %1945 = vmatpush.bf16.msra.mxu0 0
    %1946 = vmatpush.bf16.msra.mxu0 0
    %1947 = vmatpush.bf16.msra.mxu0 0
    %1948 = vmatpush.bf16.msra.mxu0 0
    %1949 = vmatpush.bf16.msra.mxu0 0
    %1950 = vmatpush.bf16.msra.mxu0 %v1941
    %1951 = vmatmul.bf16.gmra.mxu0 %v1938
    %v1952 = vpop.f32.mrf.mxu0
    %v1953 = vadd.f32 0.0, %v1952
    %v1954 = vpop.f32.mrf.mxu0
    %1955 = vdwg.mxu0
    %v1956 = vmul.f32 %v1953, %v1933
    %1957 = vrot.lane.b32.xlu0 %v1750, 104
    %v1958 = vpop.permute.xlu0 %1957
    %1959 = vrot.lane.b32.xlu0 %v1750, 72
    %v1960 = vpop.permute.xlu0 %1959
    %v1962 = vsel %vm210, %v1958, 0
    %v1965 = vsel %vm210, %v1960, 0
    %1967 = vmatpush.bf16.xpose.msra.mxu0 0
    %1968 = vmatpush.bf16.xpose.msra.mxu0 0
    %1969 = vmatpush.bf16.xpose.msra.mxu0 0
    %1970 = vmatpush.bf16.xpose.msra.mxu0 0
    %1971 = vmatpush.bf16.xpose.msra.mxu0 0
    %1972 = vmatpush.bf16.xpose.msra.mxu0 0
    %1973 = vmatpush.bf16.xpose.msra.mxu0 0
    %1974 = vmatpush.bf16.xpose.msra.mxu0 %v1965
    %1975 = vmatmul.bf16.gmra.mxu0 %v1962
    %v1976 = vpop.f32.mrf.mxu0
    %v1977 = vadd.f32 0.0, %v1976
    %v1978 = vpop.f32.mrf.mxu0
    %1979 = vdwg.mxu0
    %v1980 = vsel %vm210, %v1977, -inf
    %1981 = vmax.xlane.f32.xlu0 %v1980
    %v1982 = vpop.xlane.xlu0 %1981
    %v1983 = vsub.f32 %v1977, %v1982
    %v1984 = vmul.f32 %v1983, 1.442695
    %v1985 = vpow.pop %v1984
    %v1986 = vsel %vm210, %v1985, 0.0
    %1987 = vadd.xlane.f32.xlu0 %v1986
    %v1988 = vpop.xlane.xlu0 %1987
    %v1989 = vrcp.pop %v1988
    %v1990 = vmul.f32 %v1988, %v1989
    %v1991 = vsub.f32 1.0, %v1990
    %v1992 = vmul.f32 %v1989, %v1991
    %v1993 = vadd.f32 %v1989, %v1992
    %vm1994 = vweird.f32 %v1988
    %vm1995 = vweird.f32 %v1989
    %vm1996 = vmor %vm1994, %vm1995
    %v1997 = vsel %vm1996, %v1989, %v1993
    %v1998 = vand.u32 2147483647, %v1988
    %vm1999 = vcmp.eq.f32.partialorder %v1998, 8.507059e+37
    %v2000 = vand.u32 %v1988, 2147483648
    %v2001 = vor.u32 1.1754944e-38, %v2000
    %v2002 = vsel %vm1999, %v2001, %v1997
    %v2003 = vpack.c.bf16 %v1985, %v1985
    %2004 = vrot.lane.b32.xlu0 %v1750, 40
    %v2005 = vpop.permute.xlu0 %2004
    %v2007 = vsel %vm210, %v2003, 0
    %v2010 = vsel %vm259, %v2005, 0
    %2012 = vmatpush.bf16.msra.mxu0 0
    %2013 = vmatpush.bf16.msra.mxu0 0
    %2014 = vmatpush.bf16.msra.mxu0 0
    %2015 = vmatpush.bf16.msra.mxu0 0
    %2016 = vmatpush.bf16.msra.mxu0 0
    %2017 = vmatpush.bf16.msra.mxu0 0
    %2018 = vmatpush.bf16.msra.mxu0 0
    %2019 = vmatpush.bf16.msra.mxu0 %v2010
    %2020 = vmatmul.bf16.gmra.mxu0 %v2007
    %v2021 = vpop.f32.mrf.mxu0
    %v2022 = vadd.f32 0.0, %v2021
    %v2023 = vpop.f32.mrf.mxu0
    %2024 = vdwg.mxu0
    %v2025 = vmul.f32 %v2022, %v2002
    %2027 = vrot.lane.b32.xlu0 %v1887, 8
    %v2028 = vpop.permute.xlu0 %2027
    %2031 = vrot.lane.b32.xlu0 %v1956, 16
    %v2032 = vpop.permute.xlu0 %2031
    %2035 = vrot.lane.b32.xlu0 %v2025, 24
    %v2036 = vpop.permute.xlu0 %2035
    %v2038 = vsel %vm210, %v1818, %v2028
    %v2039 = vsel %vm497, %v2038, %v2032
    %v2040 = vsel %vm499, %v2039, %v2036
    %v2041 = vpack.c.bf16 %v1748, %v1748
    %2043 = vrot.lane.b32.xlu0 %v2041, 96
    %v2044 = vpop.permute.xlu0 %2043
    %v2046 = vsel %vm210, %v2041, 0
    %v2049 = vsel %vm210, %v2044, 0
    %2051 = vmatpush.bf16.xpose.msra.mxu0 0
    %2052 = vmatpush.bf16.xpose.msra.mxu0 0
    %2053 = vmatpush.bf16.xpose.msra.mxu0 0
    %2054 = vmatpush.bf16.xpose.msra.mxu0 0
    %2055 = vmatpush.bf16.xpose.msra.mxu0 0
    %2056 = vmatpush.bf16.xpose.msra.mxu0 0
    %2057 = vmatpush.bf16.xpose.msra.mxu0 0
    %2058 = vmatpush.bf16.xpose.msra.mxu0 %v2049
    %2059 = vmatmul.bf16.gmra.mxu0 %v2046
    %v2060 = vpop.f32.mrf.mxu0
    %v2061 = vadd.f32 0.0, %v2060
    %v2062 = vpop.f32.mrf.mxu0
    %2063 = vdwg.mxu0
    %v2064 = vsel %vm210, %v2061, -inf
    %2065 = vmax.xlane.f32.xlu0 %v2064
    %v2066 = vpop.xlane.xlu0 %2065
    %v2067 = vsub.f32 %v2061, %v2066
    %v2068 = vmul.f32 %v2067, 1.442695
    %v2069 = vpow.pop %v2068
    %v2070 = vsel %vm210, %v2069, 0.0
    %2071 = vadd.xlane.f32.xlu0 %v2070
    %v2072 = vpop.xlane.xlu0 %2071
    %v2073 = vrcp.pop %v2072
    %v2074 = vmul.f32 %v2072, %v2073
    %v2075 = vsub.f32 1.0, %v2074
    %v2076 = vmul.f32 %v2073, %v2075
    %v2077 = vadd.f32 %v2073, %v2076
    %vm2078 = vweird.f32 %v2072
    %vm2079 = vweird.f32 %v2073
    %vm2080 = vmor %vm2078, %vm2079
    %v2081 = vsel %vm2080, %v2073, %v2077
    %v2082 = vand.u32 2147483647, %v2072
    %vm2083 = vcmp.eq.f32.partialorder %v2082, 8.507059e+37
    %v2084 = vand.u32 %v2072, 2147483648
    %v2085 = vor.u32 1.1754944e-38, %v2084
    %v2086 = vsel %vm2083, %v2085, %v2081
    %v2087 = vpack.c.bf16 %v2069, %v2069
    %2088 = vrot.lane.b32.xlu0 %v2041, 64
    %v2089 = vpop.permute.xlu0 %2088
    %v2091 = vsel %vm210, %v2087, 0
    %v2094 = vsel %vm259, %v2089, 0
    %2096 = vmatpush.bf16.msra.mxu0 0
    %2097 = vmatpush.bf16.msra.mxu0 0
    %2098 = vmatpush.bf16.msra.mxu0 0
    %2099 = vmatpush.bf16.msra.mxu0 0
    %2100 = vmatpush.bf16.msra.mxu0 0
    %2101 = vmatpush.bf16.msra.mxu0 0
    %2102 = vmatpush.bf16.msra.mxu0 0
    %2103 = vmatpush.bf16.msra.mxu0 %v2094
    %2104 = vmatmul.bf16.gmra.mxu0 %v2091
    %v2105 = vpop.f32.mrf.mxu0
    %v2106 = vadd.f32 0.0, %v2105
    %v2107 = vpop.f32.mrf.mxu0
    %2108 = vdwg.mxu0
    %v2109 = vmul.f32 %v2106, %v2086
    %2110 = vrot.lane.b32.xlu0 %v2041, 120
    %v2111 = vpop.permute.xlu0 %2110
    %2112 = vrot.lane.b32.xlu0 %v2041, 88
    %v2113 = vpop.permute.xlu0 %2112
    %v2115 = vsel %vm210, %v2111, 0
    %v2118 = vsel %vm210, %v2113, 0
    %2120 = vmatpush.bf16.xpose.msra.mxu0 0
    %2121 = vmatpush.bf16.xpose.msra.mxu0 0
    %2122 = vmatpush.bf16.xpose.msra.mxu0 0
    %2123 = vmatpush.bf16.xpose.msra.mxu0 0
    %2124 = vmatpush.bf16.xpose.msra.mxu0 0
    %2125 = vmatpush.bf16.xpose.msra.mxu0 0
    %2126 = vmatpush.bf16.xpose.msra.mxu0 0
    %2127 = vmatpush.bf16.xpose.msra.mxu0 %v2118
    %2128 = vmatmul.bf16.gmra.mxu0 %v2115
    %v2129 = vpop.f32.mrf.mxu0
    %v2130 = vadd.f32 0.0, %v2129
    %v2131 = vpop.f32.mrf.mxu0
    %2132 = vdwg.mxu0
    %v2133 = vsel %vm210, %v2130, -inf
    %2134 = vmax.xlane.f32.xlu0 %v2133
    %v2135 = vpop.xlane.xlu0 %2134
    %v2136 = vsub.f32 %v2130, %v2135
    %v2137 = vmul.f32 %v2136, 1.442695
    %v2138 = vpow.pop %v2137
    %v2139 = vsel %vm210, %v2138, 0.0
    %2140 = vadd.xlane.f32.xlu0 %v2139
    %v2141 = vpop.xlane.xlu0 %2140
    %v2142 = vrcp.pop %v2141
    %v2143 = vmul.f32 %v2141, %v2142
    %v2144 = vsub.f32 1.0, %v2143
    %v2145 = vmul.f32 %v2142, %v2144
    %v2146 = vadd.f32 %v2142, %v2145
    %vm2147 = vweird.f32 %v2141
    %vm2148 = vweird.f32 %v2142
    %vm2149 = vmor %vm2147, %vm2148
    %v2150 = vsel %vm2149, %v2142, %v2146
    %v2151 = vand.u32 2147483647, %v2141
    %vm2152 = vcmp.eq.f32.partialorder %v2151, 8.507059e+37
    %v2153 = vand.u32 %v2141, 2147483648
    %v2154 = vor.u32 1.1754944e-38, %v2153
    %v2155 = vsel %vm2152, %v2154, %v2150
    %v2156 = vpack.c.bf16 %v2138, %v2138
    %2157 = vrot.lane.b32.xlu0 %v2041, 56
    %v2158 = vpop.permute.xlu0 %2157
    %v2160 = vsel %vm210, %v2156, 0
    %v2163 = vsel %vm259, %v2158, 0
    %2165 = vmatpush.bf16.msra.mxu0 0
    %2166 = vmatpush.bf16.msra.mxu0 0
    %2167 = vmatpush.bf16.msra.mxu0 0
    %2168 = vmatpush.bf16.msra.mxu0 0
    %2169 = vmatpush.bf16.msra.mxu0 0
    %2170 = vmatpush.bf16.msra.mxu0 0
    %2171 = vmatpush.bf16.msra.mxu0 0
    %2172 = vmatpush.bf16.msra.mxu0 %v2163
    %2173 = vmatmul.bf16.gmra.mxu0 %v2160
    %v2174 = vpop.f32.mrf.mxu0
    %v2175 = vadd.f32 0.0, %v2174
    %v2176 = vpop.f32.mrf.mxu0
    %2177 = vdwg.mxu0
    %v2178 = vmul.f32 %v2175, %v2155
    %2179 = vrot.lane.b32.xlu0 %v2041, 112
    %v2180 = vpop.permute.xlu0 %2179
    %2181 = vrot.lane.b32.xlu0 %v2041, 80
    %v2182 = vpop.permute.xlu0 %2181
    %v2184 = vsel %vm210, %v2180, 0
    %v2187 = vsel %vm210, %v2182, 0
    %2189 = vmatpush.bf16.xpose.msra.mxu0 0
    %2190 = vmatpush.bf16.xpose.msra.mxu0 0
    %2191 = vmatpush.bf16.xpose.msra.mxu0 0
    %2192 = vmatpush.bf16.xpose.msra.mxu0 0
    %2193 = vmatpush.bf16.xpose.msra.mxu0 0
    %2194 = vmatpush.bf16.xpose.msra.mxu0 0
    %2195 = vmatpush.bf16.xpose.msra.mxu0 0
    %2196 = vmatpush.bf16.xpose.msra.mxu0 %v2187
    %2197 = vmatmul.bf16.gmra.mxu0 %v2184
    %v2198 = vpop.f32.mrf.mxu0
    %v2199 = vadd.f32 0.0, %v2198
    %v2200 = vpop.f32.mrf.mxu0
    %2201 = vdwg.mxu0
    %v2202 = vsel %vm210, %v2199, -inf
    %2203 = vmax.xlane.f32.xlu0 %v2202
    %v2204 = vpop.xlane.xlu0 %2203
    %v2205 = vsub.f32 %v2199, %v2204
    %v2206 = vmul.f32 %v2205, 1.442695
    %v2207 = vpow.pop %v2206
    %v2208 = vsel %vm210, %v2207, 0.0
    %2209 = vadd.xlane.f32.xlu0 %v2208
    %v2210 = vpop.xlane.xlu0 %2209
    %v2211 = vrcp.pop %v2210
    %v2212 = vmul.f32 %v2210, %v2211
    %v2213 = vsub.f32 1.0, %v2212
    %v2214 = vmul.f32 %v2211, %v2213
    %v2215 = vadd.f32 %v2211, %v2214
    %vm2216 = vweird.f32 %v2210
    %vm2217 = vweird.f32 %v2211
    %vm2218 = vmor %vm2216, %vm2217
    %v2219 = vsel %vm2218, %v2211, %v2215
    %v2220 = vand.u32 2147483647, %v2210
    %vm2221 = vcmp.eq.f32.partialorder %v2220, 8.507059e+37
    %v2222 = vand.u32 %v2210, 2147483648
    %v2223 = vor.u32 1.1754944e-38, %v2222
    %v2224 = vsel %vm2221, %v2223, %v2219
    %v2225 = vpack.c.bf16 %v2207, %v2207
    %2226 = vrot.lane.b32.xlu0 %v2041, 48
    %v2227 = vpop.permute.xlu0 %2226
    %v2229 = vsel %vm210, %v2225, 0
    %v2232 = vsel %vm259, %v2227, 0
    %2234 = vmatpush.bf16.msra.mxu0 0
    %2235 = vmatpush.bf16.msra.mxu0 0
    %2236 = vmatpush.bf16.msra.mxu0 0
    %2237 = vmatpush.bf16.msra.mxu0 0
    %2238 = vmatpush.bf16.msra.mxu0 0
    %2239 = vmatpush.bf16.msra.mxu0 0
    %2240 = vmatpush.bf16.msra.mxu0 0
    %2241 = vmatpush.bf16.msra.mxu0 %v2232
    %2242 = vmatmul.bf16.gmra.mxu0 %v2229
    %v2243 = vpop.f32.mrf.mxu0
    %v2244 = vadd.f32 0.0, %v2243
    %v2245 = vpop.f32.mrf.mxu0
    %2246 = vdwg.mxu0
    %v2247 = vmul.f32 %v2244, %v2224
    %2248 = vrot.lane.b32.xlu0 %v2041, 104
    %v2249 = vpop.permute.xlu0 %2248
    %2250 = vrot.lane.b32.xlu0 %v2041, 72
    %v2251 = vpop.permute.xlu0 %2250
    %v2253 = vsel %vm210, %v2249, 0
    %v2256 = vsel %vm210, %v2251, 0
    %2258 = vmatpush.bf16.xpose.msra.mxu0 0
    %2259 = vmatpush.bf16.xpose.msra.mxu0 0
    %2260 = vmatpush.bf16.xpose.msra.mxu0 0
    %2261 = vmatpush.bf16.xpose.msra.mxu0 0
    %2262 = vmatpush.bf16.xpose.msra.mxu0 0
    %2263 = vmatpush.bf16.xpose.msra.mxu0 0
    %2264 = vmatpush.bf16.xpose.msra.mxu0 0
    %2265 = vmatpush.bf16.xpose.msra.mxu0 %v2256
    %2266 = vmatmul.bf16.gmra.mxu0 %v2253
    %v2267 = vpop.f32.mrf.mxu0
    %v2268 = vadd.f32 0.0, %v2267
    %v2269 = vpop.f32.mrf.mxu0
    %2270 = vdwg.mxu0
    %v2271 = vsel %vm210, %v2268, -inf
    %2272 = vmax.xlane.f32.xlu0 %v2271
    %v2273 = vpop.xlane.xlu0 %2272
    %v2274 = vsub.f32 %v2268, %v2273
    %v2275 = vmul.f32 %v2274, 1.442695
    %v2276 = vpow.pop %v2275
    %v2277 = vsel %vm210, %v2276, 0.0
    %2278 = vadd.xlane.f32.xlu0 %v2277
    %v2279 = vpop.xlane.xlu0 %2278
    %v2280 = vrcp.pop %v2279
    %v2281 = vmul.f32 %v2279, %v2280
    %v2282 = vsub.f32 1.0, %v2281
    %v2283 = vmul.f32 %v2280, %v2282
    %v2284 = vadd.f32 %v2280, %v2283
    %vm2285 = vweird.f32 %v2279
    %vm2286 = vweird.f32 %v2280
    %vm2287 = vmor %vm2285, %vm2286
    %v2288 = vsel %vm2287, %v2280, %v2284
    %v2289 = vand.u32 2147483647, %v2279
    %vm2290 = vcmp.eq.f32.partialorder %v2289, 8.507059e+37
    %v2291 = vand.u32 %v2279, 2147483648
    %v2292 = vor.u32 1.1754944e-38, %v2291
    %v2293 = vsel %vm2290, %v2292, %v2288
    %v2294 = vpack.c.bf16 %v2276, %v2276
    %2295 = vrot.lane.b32.xlu0 %v2041, 40
    %v2296 = vpop.permute.xlu0 %2295
    %v2298 = vsel %vm210, %v2294, 0
    %v2301 = vsel %vm259, %v2296, 0
    %2303 = vmatpush.bf16.msra.mxu0 0
    %2304 = vmatpush.bf16.msra.mxu0 0
    %2305 = vmatpush.bf16.msra.mxu0 0
    %2306 = vmatpush.bf16.msra.mxu0 0
    %2307 = vmatpush.bf16.msra.mxu0 0
    %2308 = vmatpush.bf16.msra.mxu0 0
    %2309 = vmatpush.bf16.msra.mxu0 0
    %2310 = vmatpush.bf16.msra.mxu0 %v2301
    %2311 = vmatmul.bf16.gmra.mxu0 %v2298
    %v2312 = vpop.f32.mrf.mxu0
    %v2313 = vadd.f32 0.0, %v2312
    %v2314 = vpop.f32.mrf.mxu0
    %2315 = vdwg.mxu0
    %v2316 = vmul.f32 %v2313, %v2293
    %2318 = vrot.lane.b32.xlu0 %v2178, 8
    %v2319 = vpop.permute.xlu0 %2318
    %2322 = vrot.lane.b32.xlu0 %v2247, 16
    %v2323 = vpop.permute.xlu0 %2322
    %2326 = vrot.lane.b32.xlu0 %v2316, 24
    %v2327 = vpop.permute.xlu0 %2326
    %v2329 = vsel %vm210, %v2109, %v2319
    %v2330 = vsel %vm497, %v2329, %v2323
    %v2331 = vsel %vm499, %v2330, %v2327
    %v2332 = vpack.c.bf16 %v2331, %v2040
    %s2333 = scalar_lea.vmem %s3, 32
    %v2334 = vld [vmem:[%s2333] sm:$0xf]
    %v2335 = vld [vmem:[%s2333 + $0x4] sm:$0xf]
    %v2336 = vld [vmem:[%s2333 + $0x8] sm:$0xf]
    %v2337 = vld [vmem:[%s2333 + $0xc] sm:$0xf]
    %s2338 = scalar_lea.vmem [#allocation7], 2
    %v2339 = vld [vmem:[%s2338] sm:$0x1]
    %v2341 = vperm.slane %v2339, 0
    %v2347 = vunpack.c.l.b16 %v2334
    %v2348 = vunpack.c.l.b16 %v2335
    %v2349 = vunpack.c.l.b16 %v2336
    %v2350 = vunpack.c.l.b16 %v2337
    %v2351 = vpack.c.b16 %v2348, %v2347
    %v2352 = vpack.c.b16 %v2350, %v2349
    %v2356 = vsel %vm188, %v2332, 0
    %2358 = vmatpush.bf16.msra.mxu0 0
    %2359 = vmatpush.bf16.msra.mxu0 0
    %2360 = vmatpush.bf16.msra.mxu0 0
    %2361 = vmatpush.bf16.msra.mxu0 0
    %2362 = vmatpush.bf16.msra.mxu0 0
    %2363 = vmatpush.bf16.msra.mxu0 0
    %2364 = vmatpush.bf16.msra.mxu0 %v2352
    %2365 = vmatpush.bf16.msra.mxu0 %v2351
    %2366 = vmatmul.bf16.gmra.mxu0 %v2356
    %v2367 = vpop.f32.mrf.mxu0
    %v2368 = vadd.f32 %v2341, %v2367
    %v2369 = vpop.f32.mrf.mxu0
    %v2370 = vadd.f32 %v2341, %v2369
    %2371 = vdwg.mxu0
    %v2372 = vadd.f32 %v1708, %v2368
    %v2373 = vadd.f32 %v1709, %v2370
    %s2374 = scalar_lea.vmem %s9, 1
    %v2375 = vld [vmem:[%s2374] sm:$0x1]
    %s2376 = scalar_lea.vmem %s10, 1
    %v2377 = vld [vmem:[%s2376] sm:$0x1]
    %v2378 = vsel %vm188, %v2372, 0.0
    %2379 = vadd.xlane.f32.xlu0 %v2378
    %v2380 = vpop.xlane.xlu0 %2379
    %v2381 = vsel %vm188, %v2373, 0.0
    %2382 = vadd.xlane.f32.xlu0 %v2381
    %v2383 = vpop.xlane.xlu0 %2382
    %v2384 = vmul.f32 %v2380, %v1508
    %v2385 = vmul.f32 %v2383, %v1508
    %v2386 = vsub.f32 %v2372, %v2384
    %v2387 = vsub.f32 %v2373, %v2385
    %v2388 = vmul.f32 %v2386, %v2386
    %v2389 = vmul.f32 %v2387, %v2387
    %v2390 = vsel %vm188, %v2388, 0.0
    %2391 = vadd.xlane.f32.xlu0 %v2390
    %v2392 = vpop.xlane.xlu0 %2391
    %v2393 = vsel %vm188, %v2389, 0.0
    %2394 = vadd.xlane.f32.xlu0 %v2393
    %v2395 = vpop.xlane.xlu0 %2394
    %v2396 = vmul.f32 %v2392, %v1508
    %v2397 = vmul.f32 %v2395, %v1508
    %v2398 = vadd.f32 %v2396, 1e-05
    %v2399 = vadd.f32 %v2397, 1e-05
    %v2400 = vrsqrt.pop %v2398
    %v2401 = vmul.f32 %v2400, %v2398
    %v2402 = vmul.f32 %v2401, %v2400
    %v2403 = vmul.f32 0.5, %v2402
    %v2404 = vsub.f32 1.5, %v2403
    %v2405 = vmul.f32 %v2400, %v2404
    %vm2406 = vweird.f32 %v2398
    %vm2407 = vweird.f32 %v2400
    %vm2408 = vmor %vm2406, %vm2407
    %v2409 = vsel %vm2408, %v2400, %v2405
    %v2410 = vrsqrt.pop %v2399
    %v2411 = vmul.f32 %v2410, %v2399
    %v2412 = vmul.f32 %v2411, %v2410
    %v2413 = vmul.f32 0.5, %v2412
    %v2414 = vsub.f32 1.5, %v2413
    %v2415 = vmul.f32 %v2410, %v2414
    %vm2416 = vweird.f32 %v2399
    %vm2417 = vweird.f32 %v2410
    %vm2418 = vmor %vm2416, %vm2417
    %v2419 = vsel %vm2418, %v2410, %v2415
    %v2420 = vmul.f32 %v2386, %v2409
    %v2421 = vmul.f32 %v2387, %v2419
    %v2423 = vperm.slane %v2375, 0
    %v2425 = vmul.f32 %v2420, %v2423
    %v2426 = vmul.f32 %v2421, %v2423
    %v2428 = vperm.slane %v2377, 0
    %v2430 = vadd.f32 %v2425, %v2428
    %v2431 = vadd.f32 %v2426, %v2428
    %v2432 = vpack.c.bf16 %v2431, %v2430
    %s2433 = scalar_lea.vmem [#allocation8], 16
    %v2434 = vld [vmem:[%s2433] sm:$0xf]
    %v2435 = vld [vmem:[%s2433 + $0x4] sm:$0xf]
    %v2436 = vld [vmem:[%s2433 + $0x8] sm:$0xf]
    %v2437 = vld [vmem:[%s2433 + $0xc] sm:$0xf]
    %s2438 = scalar_lea.vmem %s6, 1
    %v2439 = vld [vmem:[%s2438] sm:$0x1]
    %v2441 = vperm.slane %v2439, 0
    %v2447 = vunpack.c.l.b16 %v2434
    %v2448 = vunpack.c.l.b16 %v2435
    %v2449 = vunpack.c.l.b16 %v2436
    %v2450 = vunpack.c.l.b16 %v2437
    %v2451 = vpack.c.b16 %v2448, %v2447
    %v2452 = vpack.c.b16 %v2450, %v2449
    %v2456 = vsel %vm188, %v2432, 0
    %2458 = vmatpush.bf16.msra.mxu0 0
    %2459 = vmatpush.bf16.msra.mxu0 0
    %2460 = vmatpush.bf16.msra.mxu0 0
    %2461 = vmatpush.bf16.msra.mxu0 0
    %2462 = vmatpush.bf16.msra.mxu0 0
    %2463 = vmatpush.bf16.msra.mxu0 0
    %2464 = vmatpush.bf16.msra.mxu0 %v2452
    %2465 = vmatpush.bf16.msra.mxu0 %v2451
    %2466 = vmatmul.bf16.gmra.mxu0 %v2456
    %v2467 = vpop.f32.mrf.mxu0
    %v2468 = vadd.f32 %v2441, %v2467
    %v2469 = vpop.f32.mrf.mxu0
    %v2470 = vadd.f32 %v2441, %v2469
    %2471 = vdwg.mxu0
    %v2472 = vmax.f32 %v2468, 0.0
    %v2473 = vmax.f32 %v2470, 0.0
    %v2474 = vpack.c.bf16 %v2473, %v2472
    %s2475 = scalar_lea.vmem %s7, 32
    %v2476 = vld [vmem:[%s2475] sm:$0xf]
    %v2477 = vld [vmem:[%s2475 + $0x4] sm:$0xf]
    %v2478 = vld [vmem:[%s2475 + $0x8] sm:$0xf]
    %v2479 = vld [vmem:[%s2475 + $0xc] sm:$0xf]
    %v2480 = vld [vmem:[%s2475 + $0x10] sm:$0xf]
    %v2481 = vld [vmem:[%s2475 + $0x14] sm:$0xf]
    %v2482 = vld [vmem:[%s2475 + $0x18] sm:$0xf]
    %v2483 = vld [vmem:[%s2475 + $0x1c] sm:$0xf]
    %s2484 = scalar_lea.vmem %s8, 1
    %v2485 = vld [vmem:[%s2484] sm:$0x1]
    %v2487 = vperm.slane %v2485, 0
    %v2497 = vunpack.c.l.b16 %v2476
    %v2498 = vunpack.c.l.b16 %v2477
    %v2499 = vunpack.c.l.b16 %v2478
    %v2500 = vunpack.c.l.b16 %v2479
    %v2501 = vunpack.c.l.b16 %v2480
    %v2502 = vunpack.c.l.b16 %v2481
    %v2503 = vunpack.c.l.b16 %v2482
    %v2504 = vunpack.c.l.b16 %v2483
    %v2505 = vpack.c.b16 %v2498, %v2497
    %v2506 = vpack.c.b16 %v2500, %v2499
    %v2507 = vpack.c.b16 %v2502, %v2501
    %v2508 = vpack.c.b16 %v2504, %v2503
    %v2514 = vsel %vm1634, %v2474, 0
    %2516 = vmatpush.bf16.msra.mxu0 0
    %2517 = vmatpush.bf16.msra.mxu0 0
    %2518 = vmatpush.bf16.msra.mxu0 0
    %2519 = vmatpush.bf16.msra.mxu0 0
    %2520 = vmatpush.bf16.msra.mxu0 %v2508
    %2521 = vmatpush.bf16.msra.mxu0 %v2507
    %2522 = vmatpush.bf16.msra.mxu0 %v2506
    %2523 = vmatpush.bf16.msra.mxu0 %v2505
    %2524 = vmatmul.bf16.gmra.mxu0 %v2514
    %v2525 = vpop.f32.mrf.mxu0
    %v2526 = vadd.f32 %v2487, %v2525
    %v2527 = vpop.f32.mrf.mxu0
    %v2528 = vadd.f32 %v2487, %v2527
    %2529 = vdwg.mxu0
    %v2530 = vadd.f32 %v2430, %v2526
    %v2531 = vadd.f32 %v2431, %v2528
    %s2532 = scalar_lea.vmem %s11, 1
    %v2533 = vld [vmem:[%s2532] sm:$0x1]
    %s2534 = scalar_lea.vmem %s12, 1
    %v2535 = vld [vmem:[%s2534] sm:$0x1]
    %v2536 = vsel %vm188, %v2530, 0.0
    %2537 = vadd.xlane.f32.xlu0 %v2536
    %v2538 = vpop.xlane.xlu0 %2537
    %v2539 = vsel %vm188, %v2531, 0.0
    %2540 = vadd.xlane.f32.xlu0 %v2539
    %v2541 = vpop.xlane.xlu0 %2540
    %v2542 = vmul.f32 %v2538, %v1508
    %v2543 = vmul.f32 %v2541, %v1508
    %v2544 = vsub.f32 %v2530, %v2542
    %v2545 = vsub.f32 %v2531, %v2543
    %v2546 = vmul.f32 %v2544, %v2544
    %v2547 = vmul.f32 %v2545, %v2545
    %v2548 = vsel %vm188, %v2546, 0.0
    %2549 = vadd.xlane.f32.xlu0 %v2548
    %v2550 = vpop.xlane.xlu0 %2549
    %v2551 = vsel %vm188, %v2547, 0.0
    %2552 = vadd.xlane.f32.xlu0 %v2551
    %v2553 = vpop.xlane.xlu0 %2552
    %v2554 = vmul.f32 %v2550, %v1508
    %v2555 = vmul.f32 %v2553, %v1508
    %v2556 = vadd.f32 %v2554, 1e-05
    %v2557 = vadd.f32 %v2555, 1e-05
    %v2558 = vrsqrt.pop %v2556
    %v2559 = vmul.f32 %v2558, %v2556
    %v2560 = vmul.f32 %v2559, %v2558
    %v2561 = vmul.f32 0.5, %v2560
    %v2562 = vsub.f32 1.5, %v2561
    %v2563 = vmul.f32 %v2558, %v2562
    %vm2564 = vweird.f32 %v2556
    %vm2565 = vweird.f32 %v2558
    %vm2566 = vmor %vm2564, %vm2565
    %v2567 = vsel %vm2566, %v2558, %v2563
    %v2568 = vrsqrt.pop %v2557
    %v2569 = vmul.f32 %v2568, %v2557
    %v2570 = vmul.f32 %v2569, %v2568
    %v2571 = vmul.f32 0.5, %v2570
    %v2572 = vsub.f32 1.5, %v2571
    %v2573 = vmul.f32 %v2568, %v2572
    %vm2574 = vweird.f32 %v2557
    %vm2575 = vweird.f32 %v2568
    %vm2576 = vmor %vm2574, %vm2575
    %v2577 = vsel %vm2576, %v2568, %v2573
    %v2578 = vmul.f32 %v2544, %v2567
    %v2579 = vmul.f32 %v2545, %v2577
    %v2581 = vperm.slane %v2533, 0
    %v2583 = vmul.f32 %v2578, %v2581
    %v2584 = vmul.f32 %v2579, %v2581
    %v2586 = vperm.slane %v2535, 0
    %v2588 = vadd.f32 %v2583, %v2586
    %v2589 = vadd.f32 %v2584, %v2586
    %v2591 = vrot.slane %v2588, 7
    %v2594 = vrot.slane %v2589, 6
    %vm2596 = vcmask 1040384
    %v2597 = vsel %vm2596, %v2591, %v2594
    %v2598 = vpack.c.bf16 %v2597, %v2597
    %v2599 = vld [vmem:[#allocation10] sm:$0xf]
    %v2600 = vld [vmem:[#allocation10 + $0x4] sm:$0xf]
    %v2601 = vld [vmem:[#allocation10 + $0x8] sm:$0xf]
    %v2602 = vld [vmem:[#allocation10 + $0xc] sm:$0xf]
    %v2603 = vld [vmem:[%s14] sm:$0x1]
    %v2605 = vperm.slane %v2603, 0
    %v2611 = vunpack.c.l.b16 %v2599
    %v2612 = vunpack.c.l.b16 %v2600
    %v2613 = vunpack.c.l.b16 %v2601
    %v2614 = vunpack.c.l.b16 %v2602
    %v2615 = vpack.c.b16 %v2612, %v2611
    %v2616 = vpack.c.b16 %v2614, %v2613
    %v2620 = vsel %vm188, %v2598, 0
    %2622 = vmatpush.bf16.msra.mxu0 0
    %2623 = vmatpush.bf16.msra.mxu0 0
    %2624 = vmatpush.bf16.msra.mxu0 0
    %2625 = vmatpush.bf16.msra.mxu0 0
    %2626 = vmatpush.bf16.msra.mxu0 0
    %2627 = vmatpush.bf16.msra.mxu0 0
    %2628 = vmatpush.bf16.msra.mxu0 %v2616
    %2629 = vmatpush.bf16.msra.mxu0 %v2615
    %2630 = vmatmul.bf16.gmra.mxu0 %v2620
    %v2631 = vpop.f32.mrf.mxu0
    %v2632 = vadd.f32 %v2605, %v2631
    %v2633 = vpop.f32.mrf.mxu0
    %2634 = vdwg.mxu0
    %v2635 = vmax.f32 %v2632, 0.0
    %v2636 = vpack.c.bf16 %v2635, %v2635
    %v2637 = vld [vmem:[#allocation11] sm:$0xf]
    %v2638 = vld [vmem:[#allocation11 + $0x4] sm:$0xf]
    %v2639 = vld [vmem:[#allocation11 + $0x8] sm:$0xf]
    %v2640 = vld [vmem:[#allocation11 + $0xc] sm:$0xf]
    %v2641 = vld [vmem:[#allocation11 + $0x10] sm:$0xf]
    %v2642 = vld [vmem:[#allocation11 + $0x14] sm:$0xf]
    %v2643 = vld [vmem:[#allocation11 + $0x18] sm:$0xf]
    %v2644 = vld [vmem:[#allocation11 + $0x1c] sm:$0xf]
    %v2645 = vld [vmem:[#allocation13] sm:$0x1]
    %v2647 = vperm.slane %v2645, 0
    %v2657 = vunpack.c.l.b16 %v2637
    %v2658 = vunpack.c.l.b16 %v2638
    %v2659 = vunpack.c.l.b16 %v2639
    %v2660 = vunpack.c.l.b16 %v2640
    %v2661 = vunpack.c.l.b16 %v2641
    %v2662 = vunpack.c.l.b16 %v2642
    %v2663 = vunpack.c.l.b16 %v2643
    %v2664 = vunpack.c.l.b16 %v2644
    %v2665 = vpack.c.b16 %v2658, %v2657
    %v2666 = vpack.c.b16 %v2660, %v2659
    %v2667 = vpack.c.b16 %v2662, %v2661
    %v2668 = vpack.c.b16 %v2664, %v2663
    %v2674 = vsel %vm1634, %v2636, 0
    %2676 = vmatpush.bf16.msra.mxu0 0
    %2677 = vmatpush.bf16.msra.mxu0 0
    %2678 = vmatpush.bf16.msra.mxu0 0
    %2679 = vmatpush.bf16.msra.mxu0 0
    %2680 = vmatpush.bf16.msra.mxu0 %v2668
    %2681 = vmatpush.bf16.msra.mxu0 %v2667
    %2682 = vmatpush.bf16.msra.mxu0 %v2666
    %2683 = vmatpush.bf16.msra.mxu0 %v2665
    %2684 = vmatmul.bf16.gmra.mxu0 %v2674
    %v2685 = vpop.f32.mrf.mxu0
    %v2686 = vadd.f32 %v2647, %v2685
    %v2687 = vpop.f32.mrf.mxu0
    %2688 = vdwg.mxu0
    %v2690 = vrot.slane %v2686, 1
    %2692 = vst [vmem:[#allocation14] sm:$0x1] %v2686
    %2693 = vst [vmem:[#allocation14 + $0x1] sm:$0x1] %v2690
    // Predicated region
    $region98: #{transformer_forward.1} parent=1 // pred_check
      _
    $region99: #{transformer_forward.1} parent=1 // pred_check_branch
      %2695 = sbr.rel (0) target = $region101
    $region100: #{transformer_forward.1} parent=1 // pred_region
      %2697 = vsyncadd [#allocation4], 0
      %s2698 = sshll.u32 [#allocation14], 4
      %s2699 = int_to_ptr.vmem [resolvable:$true] %s2698
      %s2700 = sshll.u32 %s17, 4
      %s2701 = int_to_ptr.hbm [resolvable:$true] %s2700
      %2706 = dma.vmem_to_hbm [thread:$0]  %s2699, 32, %s2701, [#allocation4], 16, 16, 1
    $region101: #{transformer_forward.1} parent=1 // pred_fallthru
      _
    // Predicated region
    $region102: #{transformer_forward.1} parent=1 // pred_check
      _
    $region103: #{transformer_forward.1} parent=1 // pred_check_branch
      %2708 = sbr.rel (0) target = $region105
    $region104: #{transformer_forward.1} parent=1 // pred_region
      %2710 = dma.done [#allocation4], 32
    $region105: #{transformer_forward.1} parent=1 // pred_fallthru
      _
    %2711 = vsyncpa [#allocation3], 1
    %2712 = vsyncpa [#allocation6], 1
    %2713 = vsyncpa [#allocation9], 1
    %2714 = vsyncpa [#allocation12], 1
    %2715 = vsyncpa [#allocation4], 1

</llo_original>
